<compile_context>
chip_gen: v5e
topology: v5e:2x2
jax: 0.10.0
libtpu: 0.0.40
codegen_flags: <defaults>
</compile_context>

<pallas_src>
import math
from functools import partial

import jax
import jax.numpy as jnp
from jax import lax
from jax.experimental import pallas as pl
from jax.experimental.pallas import tpu as pltpu


# ----------------------------------------------------------------------------
# fused kernel: RMSNorm -> proj_in -> SiLU -> (scale+1, shift) -> proj_out
# ----------------------------------------------------------------------------

def _feedforward_kernel(sc_ref, sh_ref, x_ref, win_ref, wout_ref, o_ref):
    D = x_ref.shape[-1]          # dim

    # ---- RMSNorm(scale=False): F.normalize(x, dim=-1) * sqrt(D)
    x = x_ref[0]                                          # (TN, D) f32
    ssq = jnp.sum(x * x, axis=-1, keepdims=True)
    inv = lax.rsqrt(jnp.maximum(ssq, 1e-24))              # == 1 / max(||x||, 1e-12)
    xn = (x * (inv * (D ** 0.5))).astype(jnp.bfloat16)

    # ---- proj_in: Linear(D -> H, no bias) + SiLU (bf16 MXU inputs, f32 accumulate)
    h = jnp.dot(xn, win_ref[...], preferred_element_type=jnp.float32)   # (TN, H) f32
    h = h * jax.nn.sigmoid(h)                             # SiLU in f32 (EUP)

    # ---- conditioning: h * (scale + 1) + shift, precomputed per-batch in wrapper.
    #      bf16 keeps the (TN, H) intermediate half-size through the FMA + proj_out.
    h = h.astype(jnp.bfloat16)
    h = h * sc_ref[0] + sh_ref[0]                         # broadcast (1, H) over (TN, H)

    # ---- proj_out: Linear(H -> D, no bias)   (Dropout(0.0) is a no-op)
    out = jnp.dot(h, wout_ref[...], preferred_element_type=jnp.float32)  # (TN, D)
    o_ref[0] = out.astype(o_ref.dtype)


# ----------------------------------------------------------------------------
# wrapper
# ----------------------------------------------------------------------------

def _round_up(a, b):
    return ((a + b - 1) // b) * b


def feedforward(x, t, params, *, tile_n=256):
    """x: (B, N, D) f32, t: (B, cond) f32 -> (B, N, D) f32."""
    B, N, D = x.shape
    w_ss, b_ss = params['w_ss'], params['b_ss']
    w_in, w_out = params['w_in'], params['w_out']
    H = w_in.shape[1]

    # --- conditioning path hoisted out of the kernel (tiny (B, 2H) tensor) ----
    ts = t * jax.nn.sigmoid(t)                            # SiLU(t), f32
    ss = ts @ w_ss + b_ss                                 # (B, 2H) f32
    scale1 = (ss[:, :H] + 1.0).astype(jnp.bfloat16).reshape(B, 1, H)
    shift = ss[:, H:].astype(jnp.bfloat16).reshape(B, 1, H)

    # --- bf16 resident weights (cast once, outside the grid loop) ------------
    w_in_bf = w_in.astype(jnp.bfloat16)
    w_out_bf = w_out.astype(jnp.bfloat16)

    # --- sequence tiling: big tile, multiple of 8; pad ragged N --------------
    tn = min(tile_n, _round_up(N, 8))
    n_pad = _round_up(N, tn)
    x_in = x if n_pad == N else jnp.pad(x, ((0, 0), (0, n_pad - N), (0, 0)))
    grid = (B, n_pad // tn)

    out = pl.pallas_call(
        _feedforward_kernel,
        grid=grid,
        in_specs=[
            pl.BlockSpec((1, 1, H), lambda b, i: (b, 0, 0)),   # scale + 1 (per batch)
            pl.BlockSpec((1, 1, H), lambda b, i: (b, 0, 0)),   # shift     (per batch)
            pl.BlockSpec((1, tn, D), lambda b, i: (b, i, 0)),  # x tile
            pl.BlockSpec((D, H), lambda b, i: (0, 0)),         # W_in  (bf16, resident)
            pl.BlockSpec((H, D), lambda b, i: (0, 0)),         # W_out (bf16, resident)
        ],
        out_specs=pl.BlockSpec((1, tn, D), lambda b, i: (b, i, 0)),
        out_shape=jax.ShapeDtypeStruct((B, n_pad, D), jnp.float32),
        compiler_params=pltpu.CompilerParams(
            dimension_semantics=("parallel", "parallel")),
    )(scale1, shift, x_in, w_in_bf, w_out_bf)

    return out if n_pad == N else out[:, :N, :]


# ----------------------------------------------------------------------------
# pure-JAX reference (f32) for correctness check
# ----------------------------------------------------------------------------

def feedforward_ref(x, t, params):
    D = x.shape[-1]
    nrm = jnp.maximum(jnp.sqrt(jnp.sum(x * x, axis=-1, keepdims=True)), 1e-12)
    xn = x / nrm * (D ** 0.5)
    h = xn @ params['w_in']
    h = h * jax.nn.sigmoid(h)
    ts = t * jax.nn.sigmoid(t)
    ss = ts @ params['w_ss'] + params['b_ss']
    scale, shift = jnp.split(ss, 2, axis=-1)
    h = h * (scale[:, None, :] + 1.0) + shift[:, None, :]
    return h @ params['w_out']


# ----------------------------------------------------------------------------
# main
# ----------------------------------------------------------------------------

if __name__ == "__main__":
    B, N, D = 2, 256, 128          # batch, seq, dim (lane-dense D)
    cond, mult = 64, 4
    H = D * mult

    key = jax.random.PRNGKey(0)
    ks = jax.random.split(key, 6)
    x = jax.random.normal(ks[0], (B, N, D), jnp.float32)
    t = jax.random.normal(ks[1], (B, cond), jnp.float32)

    # NOTE: the PyTorch module zero-inits the to_scale_shift Linear; small random
    # weights are used here so the scale/shift path is numerically exercised.
    params = {
        'w_in':  0.05 * jax.random.normal(ks[2], (D, H), jnp.float32),
        'w_out': 0.05 * jax.random.normal(ks[3], (H, D), jnp.float32),
        'w_ss':  0.05 * jax.random.normal(ks[4], (cond, 2 * H), jnp.float32),
        'b_ss':  0.05 * jax.random.normal(ks[5], (2 * H,), jnp.float32),
    }

    fwd = jax.jit(lambda xx, tt: feedforward(xx, tt, params))
    out = fwd(x, t)
    jax.block_until_ready(out)

    ref = feedforward_ref(x, t, params)
    assert out.shape == (B, N, D), out.shape
    assert bool(jnp.all(jnp.isfinite(out)))
    max_err = float(jnp.max(jnp.abs(out - ref)))
    assert max_err < 5e-2, f"max_err={max_err}"   # bf16-MXU / f32-accumulate tolerance
    print("KERNEL_OK")
</pallas_src>

<mosaic_0001>
module attributes {stable_mosaic.version = 11 : i64} {
  func.func @_feedforward_kernel(%arg0: i32, %arg1: i32, %arg2: memref<1x1x512xbf16, #tpu.memory_space<vmem>>, %arg3: memref<1x1x512xbf16, #tpu.memory_space<vmem>>, %arg4: memref<1x256x128xf32, #tpu.memory_space<vmem>>, %arg5: memref<128x512xbf16, #tpu.memory_space<vmem>>, %arg6: memref<512x128xbf16, #tpu.memory_space<vmem>>, %arg7: memref<1x256x128xf32, #tpu.memory_space<vmem>>) attributes {dimension_semantics = [#tpu.dimension_semantics<parallel>, #tpu.dimension_semantics<parallel>], iteration_bounds = array<i64: 2, 1>, scalar_prefetch = 0 : i64, scratch_operands = 0 : i64, tpu.core_type = #tpu.core_type<tc>, window_params = [{transform_indices = @transform_0, window_bounds = array<i64: 1, 1, 512>}, {transform_indices = @transform_1, window_bounds = array<i64: 1, 1, 512>}, {transform_indices = @transform_2, window_bounds = array<i64: 1, 256, 128>}, {pipeline_mode = #tpu.pipeline_mode<synchronous>, transform_indices = @transform_3, window_bounds = array<i64: 128, 512>}, {pipeline_mode = #tpu.pipeline_mode<synchronous>, transform_indices = @transform_4, window_bounds = array<i64: 512, 128>}, {transform_indices = @transform_5, window_bounds = array<i64: 1, 256, 128>}]} {
    %c0 = arith.constant 0 : index
    %c0_0 = arith.constant 0 : index
    %c0_1 = arith.constant 0 : index
    %0 = vector.load %arg4[%c0, %c0_0, %c0_1] : memref<1x256x128xf32, #tpu.memory_space<vmem>>, vector<1x256x128xf32>
    %1 = vector.shape_cast %0 : vector<1x256x128xf32> to vector<256x128xf32>
    %2 = arith.mulf %1, %1 : vector<256x128xf32>
    %cst = arith.constant dense<0.000000e+00> : vector<256xf32>
    %3 = vector.multi_reduction <add>, %2, %cst [1] : vector<256x128xf32> to vector<256xf32>
    %4 = vector.shape_cast %3 : vector<256xf32> to vector<256x1xf32>
    %cst_2 = arith.constant 1.000000e-24 : f32
    %5 = vector.broadcast %cst_2 : f32 to vector<256x1xf32>
    %6 = arith.maximumf %4, %5 : vector<256x1xf32>
    %7 = math.rsqrt %6 : vector<256x1xf32>
    %cst_3 = arith.constant 11.3137083 : f32
    %8 = vector.broadcast %cst_3 : f32 to vector<256x1xf32>
    %9 = arith.mulf %7, %8 : vector<256x1xf32>
    %10 = vector.broadcast %9 : vector<256x1xf32> to vector<256x128xf32>
    %11 = arith.mulf %1, %10 : vector<256x128xf32>
    %12 = arith.truncf %11 : vector<256x128xf32> to vector<256x128xbf16>
    %c0_4 = arith.constant 0 : index
    %c0_5 = arith.constant 0 : index
    %13 = vector.load %arg5[%c0_4, %c0_5] : memref<128x512xbf16, #tpu.memory_space<vmem>>, vector<128x512xbf16>
    %cst_6 = arith.constant dense<0.000000e+00> : vector<256x512xf32>
    %14 = tpu.matmul %12, %13, %cst_6 {dimension_numbers = #tpu.dot_dimension_numbers<[1], [0], [0], [1], [0, 0, 1, 1], [], []>} : vector<256x128xbf16>, vector<128x512xbf16>, vector<256x512xf32> -> vector<256x512xf32>
    %15 = arith.negf %14 : vector<256x512xf32>
    %16 = math.exp %15 : vector<256x512xf32>
    %cst_7 = arith.constant 1.000000e+00 : f32
    %17 = vector.broadcast %cst_7 : f32 to vector<256x512xf32>
    %18 = arith.addf %17, %16 : vector<256x512xf32>
    %19 = arith.divf %17, %18 : vector<256x512xf32>
    %20 = arith.mulf %14, %19 : vector<256x512xf32>
    %21 = arith.truncf %20 : vector<256x512xf32> to vector<256x512xbf16>
    %c0_8 = arith.constant 0 : index
    %c0_9 = arith.constant 0 : index
    %c0_10 = arith.constant 0 : index
    %22 = vector.load %arg2[%c0_8, %c0_9, %c0_10] : memref<1x1x512xbf16, #tpu.memory_space<vmem>>, vector<1x1x512xbf16>
    %23 = vector.shape_cast %22 : vector<1x1x512xbf16> to vector<1x512xbf16>
    %24 = vector.broadcast %23 : vector<1x512xbf16> to vector<256x512xbf16>
    %25 = arith.mulf %21, %24 : vector<256x512xbf16>
    %c0_11 = arith.constant 0 : index
    %c0_12 = arith.constant 0 : index
    %c0_13 = arith.constant 0 : index
    %26 = vector.load %arg3[%c0_11, %c0_12, %c0_13] : memref<1x1x512xbf16, #tpu.memory_space<vmem>>, vector<1x1x512xbf16>
    %27 = vector.shape_cast %26 : vector<1x1x512xbf16> to vector<1x512xbf16>
    %28 = vector.broadcast %27 : vector<1x512xbf16> to vector<256x512xbf16>
    %29 = arith.addf %25, %28 : vector<256x512xbf16>
    %c0_14 = arith.constant 0 : index
    %c0_15 = arith.constant 0 : index
    %30 = vector.load %arg6[%c0_14, %c0_15] : memref<512x128xbf16, #tpu.memory_space<vmem>>, vector<512x128xbf16>
    %cst_16 = arith.constant dense<0.000000e+00> : vector<256x128xf32>
    %31 = tpu.matmul %29, %30, %cst_16 {dimension_numbers = #tpu.dot_dimension_numbers<[1], [0], [0], [1], [0, 0, 1, 1], [], []>} : vector<256x512xbf16>, vector<512x128xbf16>, vector<256x128xf32> -> vector<256x128xf32>
    %c0_17 = arith.constant 0 : index
    %c0_18 = arith.constant 0 : index
    %c0_19 = arith.constant 0 : index
    %32 = vector.load %arg7[%c0_17, %c0_18, %c0_19] : memref<1x256x128xf32, #tpu.memory_space<vmem>>, vector<1x256x128xf32>
    %33 = vector.shape_cast %32 : vector<1x256x128xf32> to vector<256x128xf32>
    %34 = vector.shape_cast %31 : vector<256x128xf32> to vector<1x256x128xf32>
    tpu.vector_store %arg7[%c0_17, %c0_18, %c0_19], %34 {strides = array<i32>} : memref<1x256x128xf32, #tpu.memory_space<vmem>>, vector<1x256x128xf32>,
    return
  }
  func.func @transform_0(%arg0: i32, %arg1: i32) -> (i32, i32, i32) {
    %c0_i32 = arith.constant 0 : i32
    %c0_i32_0 = arith.constant 0 : i32
    %c0_i32_1 = arith.constant 0 : i32
    return %arg0, %c0_i32, %c0_i32_0 : i32, i32, i32
  }
  func.func @transform_1(%arg0: i32, %arg1: i32) -> (i32, i32, i32) {
    %c0_i32 = arith.constant 0 : i32
    %c0_i32_0 = arith.constant 0 : i32
    %c0_i32_1 = arith.constant 0 : i32
    return %arg0, %c0_i32, %c0_i32_0 : i32, i32, i32
  }
  func.func @transform_2(%arg0: i32, %arg1: i32) -> (i32, i32, i32) {
    %c0_i32 = arith.constant 0 : i32
    %c0_i32_0 = arith.constant 0 : i32
    return %arg0, %arg1, %c0_i32 : i32, i32, i32
  }
  func.func @transform_3(%arg0: i32, %arg1: i32) -> (i32, i32) {
    %c0_i32 = arith.constant 0 : i32
    %c0_i32_0 = arith.constant 0 : i32
    %c0_i32_1 = arith.constant 0 : i32
    return %c0_i32, %c0_i32_0 : i32, i32
  }
  func.func @transform_4(%arg0: i32, %arg1: i32) -> (i32, i32) {
    %c0_i32 = arith.constant 0 : i32
    %c0_i32_0 = arith.constant 0 : i32
    %c0_i32_1 = arith.constant 0 : i32
    return %c0_i32, %c0_i32_0 : i32, i32
  }
  func.func @transform_5(%arg0: i32, %arg1: i32) -> (i32, i32, i32) {
    %c0_i32 = arith.constant 0 : i32
    %c0_i32_0 = arith.constant 0 : i32
    return %arg0, %arg1, %c0_i32 : i32, i32, i32
  }
}

</mosaic_0001>

<llo_original>
// kernel: _lambda_.1
$region0: #{_lambda_.1}
  #allocation0 [shape = 'u32[]', space=smem, size = 0x4, offset = 0x4, fixed_abs, tag = 'smem constant byte address 0x4 - core index']
  #allocation1 [shape = 'u32[72,128]{1,0:T(1,128)}', space=vmem, size = 0x9000, scoped, tag = 'internal scratch']
  %s0 = inlined_call_operand.vmem [shape: bf16[2,1,512], index: 0, kind: input, shape index: {}]
  %s1 = inlined_call_operand.vmem [shape: bf16[2,1,512], index: 1, kind: input, shape index: {}]
  %s2 = inlined_call_operand.hbm [shape: f32[2,256,128], index: 2, kind: input, shape index: {}]
  %s3 = inlined_call_operand.vmem [shape: bf16[128,512], index: 3, kind: input, shape index: {}]
  %s4 = inlined_call_operand.hbm [shape: bf16[512,128], index: 4, kind: input, shape index: {}]
  %s5 = inlined_call_operand.hbm [shape: f32[2,256,128], index: 5, kind: output, shape index: {}]
  %s6 = sld [smem:[#allocation0]]
  $region61: #{_lambda_.1} parent=0
    _
  %s8 = ssub.s32 1, %s6
  %s9 = scalar_select 0, %s8, %s6
  $region1: #{_lambda_.1} parent=0
    #allocation2 [shape = 'u8[262144]{0}', space=vmem, size = 0x40000, scoped, tag = 'input window, operand 2']
    #allocation3 [shape = 's32[2]{0}', space=sflag, size = 0x8, scoped, tag = 'scoped memory for _lambda_.1']
    #allocation4 [shape = 's32[2]{0}', space=sflag, size = 0x8, scoped, tag = 'scoped memory for _lambda_.1']
    #allocation5 [shape = 'u8[131072]{0}', space=vmem, size = 0x20000, scoped, tag = 'input window, operand 4, single buffered']
    #allocation6 [shape = 's32[1]{0}', space=sflag, size = 0x4, scoped, tag = 'scoped memory for _lambda_.1']
    #allocation7 [shape = 'u8[262144]{0}', space=vmem, size = 0x40000, scoped, tag = 'output window, operand 0']
    %10 = vsyncpa [#allocation3], 0
    %s11 = scalar_lea.sflag [#allocation3], 1
    %12 = vsyncpa %s11, 0
    %13 = vsyncpa [#allocation6], 0
    %14 = vsyncpa [#allocation4], 0
    %s15 = scalar_lea.sflag [#allocation4], 1
    %16 = vsyncpa %s15, 0
    loop: start=0, step=1, limit=4
    $region2: #{_lambda_.1} parent=1 // loop_pre_header
      _
    $region3: #{_lambda_.1} parent=1 // loop_header
      %s18 = sphi 0, %s22
      %p19 = scmp.ge.s32.totalorder %s18, 4
      %s25 = sphi 0, %s37
      %s26 = sphi 0, %s33
      %s27 = sphi 0, %s25
      %s28 = sphi 0, %s26
      %s29 = sphi 0, %s27
      %s30 = sphi 0, %s28
      %s40 = sphi 0, %s42
      %s43 = sphi 0, %s40
      %s44 = sphi 0, %s43
      %s60 = sphi 0, %s44
      %s66 = sphi 0, %s68
      %s69 = sphi 0, %s66
      %s70 = sphi 0, %s69
      %s86 = sphi 0, %s70
      %s94 = sphi 0, %s96
      %s97 = sphi 0, %s94
      %s98 = sphi 0, %s97
      %s114 = sphi 0, %s98
      %s118 = sphi 0, %s118
      %s120 = sphi 0, %s118
      %s121 = sphi 0, %s120
      %s135 = sphi 0, %s121
      %s139 = sphi 0, %s139
      %s141 = sphi 0, %s139
      %s142 = sphi 0, %s141
      %s156 = sphi 0, %s142
      %s164 = sphi 0, %s166
      %s167 = sphi 0, %s164
      %s168 = sphi 0, %s167
      %s184 = sphi 0, %s168
    $region4: #{_lambda_.1} parent=1 // loop_header_branch
      %21 = sbr.rel (%p19) target = $region8
    $region5: #{_lambda_.1} parent=1 // loop_body
      %s23 = ssub.s32 %s18, 1
      %s24 = ssub.s32 %s18, 2
      %s31 = sadd.s32 1, %s26
      %p32 = scmp.ge.s32.totalorder %s31, 1
      %s33 = scalar_select %p32, 0, %s31
      %s34 = sadd.s32 1, %s25
      %s35 = scalar_select %p32, %s34, %s25
      %p36 = scmp.ge.s32.totalorder %s35, 2
      %s37 = scalar_select %p36, 0, %s35
      %s38 = ssub.s32 %s25, %s37
      %p39 = scmp.eq.s32.totalorder %s38, 0
      %s41 = sadd.s32 %s40, 1
      %s42 = scalar_select %p39, %s40, %s41
      %p45 = pneg %p39
      %p46 = scmp.eq.s32.totalorder %s18, 1
      %p47 = por %p45, %p46
      %p48 = scmp.ne.s32.totalorder %s40, %s43
      %p49 = scmp.eq.s32.totalorder %s18, 0
      %p50 = por %p48, %p49
      %p51 = scmp.ne.s32.totalorder %s40, %s43
      %p52 = scmp.eq.s32.totalorder %s23, 1
      %p53 = por %p51, %p52
      %p54 = scmp.ne.s32.totalorder %s43, %s44
      %p55 = scmp.eq.s32.totalorder %s23, 0
      %p56 = por %p54, %p55
      %p57 = scmp.ne.s32.totalorder %s43, %s44
      %p58 = scmp.eq.s32.totalorder %s24, 1
      %p59 = por %p57, %p58
      %p61 = scmp.ne.s32.totalorder %s44, %s60
      %p62 = scmp.eq.s32.totalorder %s24, 0
      %p63 = por %p61, %p62
      %s64 = ssub.s32 %s25, %s37
      %p65 = scmp.eq.s32.totalorder %s64, 0
      %s67 = sadd.s32 %s66, 1
      %s68 = scalar_select %p65, %s66, %s67
      %p71 = pneg %p65
      %p72 = scmp.eq.s32.totalorder %s18, 1
      %p73 = por %p71, %p72
      %p74 = scmp.ne.s32.totalorder %s66, %s69
      %p75 = scmp.eq.s32.totalorder %s18, 0
      %p76 = por %p74, %p75
      %p77 = scmp.ne.s32.totalorder %s66, %s69
      %p78 = scmp.eq.s32.totalorder %s23, 1
      %p79 = por %p77, %p78
      %p80 = scmp.ne.s32.totalorder %s69, %s70
      %p81 = scmp.eq.s32.totalorder %s23, 0
      %p82 = por %p80, %p81
      %p83 = scmp.ne.s32.totalorder %s69, %s70
      %p84 = scmp.eq.s32.totalorder %s24, 1
      %p85 = por %p83, %p84
      %p87 = scmp.ne.s32.totalorder %s70, %s86
      %p88 = scmp.eq.s32.totalorder %s24, 0
      %p89 = por %p87, %p88
      %s90 = ssub.s32 %s25, %s37
      %s91 = ssub.s32 %s26, %s33
      %s92 = sor.u32 %s90, %s91
      %p93 = scmp.eq.s32.totalorder %s92, 0
      %s95 = sadd.s32 %s94, 1
      %s96 = scalar_select %p93, %s94, %s95
      %p99 = pneg %p93
      %p100 = scmp.eq.s32.totalorder %s18, 1
      %p101 = por %p99, %p100
      %p102 = scmp.ne.s32.totalorder %s94, %s97
      %p103 = scmp.eq.s32.totalorder %s18, 0
      %p104 = por %p102, %p103
      %p105 = scmp.ne.s32.totalorder %s94, %s97
      %p106 = scmp.eq.s32.totalorder %s23, 1
      %p107 = por %p105, %p106
      %p108 = scmp.ne.s32.totalorder %s97, %s98
      %p109 = scmp.eq.s32.totalorder %s23, 0
      %p110 = por %p108, %p109
      %p111 = scmp.ne.s32.totalorder %s97, %s98
      %p112 = scmp.eq.s32.totalorder %s24, 1
      %p113 = por %p111, %p112
      %p115 = scmp.ne.s32.totalorder %s98, %s114
      %p116 = scmp.eq.s32.totalorder %s24, 0
      %p117 = por %p115, %p116
      %s119 = sadd.s32 %s118, 1
      %p122 = scmp.eq.s32.totalorder %s18, 1
      %p123 = scmp.ne.s32.totalorder %s118, %s120
      %p124 = scmp.eq.s32.totalorder %s18, 0
      %p125 = por %p123, %p124
      %p126 = scmp.ne.s32.totalorder %s118, %s120
      %p127 = scmp.eq.s32.totalorder %s23, 1
      %p128 = por %p126, %p127
      %p129 = scmp.ne.s32.totalorder %s120, %s121
      %p130 = scmp.eq.s32.totalorder %s23, 0
      %p131 = por %p129, %p130
      %p132 = scmp.ne.s32.totalorder %s120, %s121
      %p133 = scmp.eq.s32.totalorder %s24, 1
      %p134 = por %p132, %p133
      %p136 = scmp.ne.s32.totalorder %s121, %s135
      %p137 = scmp.eq.s32.totalorder %s24, 0
      %p138 = por %p136, %p137
      %s140 = sadd.s32 %s139, 1
      %p143 = scmp.eq.s32.totalorder %s18, 1
      %p144 = scmp.ne.s32.totalorder %s139, %s141
      %p145 = scmp.eq.s32.totalorder %s18, 0
      %p146 = por %p144, %p145
      %p147 = scmp.ne.s32.totalorder %s139, %s141
      %p148 = scmp.eq.s32.totalorder %s23, 1
      %p149 = por %p147, %p148
      %p150 = scmp.ne.s32.totalorder %s141, %s142
      %p151 = scmp.eq.s32.totalorder %s23, 0
      %p152 = por %p150, %p151
      %p153 = scmp.ne.s32.totalorder %s141, %s142
      %p154 = scmp.eq.s32.totalorder %s24, 1
      %p155 = por %p153, %p154
      %p157 = scmp.ne.s32.totalorder %s142, %s156
      %p158 = scmp.eq.s32.totalorder %s24, 0
      %p159 = por %p157, %p158
      %s160 = ssub.s32 %s25, %s37
      %s161 = ssub.s32 %s26, %s33
      %s162 = sor.u32 %s160, %s161
      %p163 = scmp.eq.s32.totalorder %s162, 0
      %s165 = sadd.s32 %s164, 1
      %s166 = scalar_select %p163, %s164, %s165
      %p169 = pneg %p163
      %p170 = scmp.eq.s32.totalorder %s18, 1
      %p171 = por %p169, %p170
      %p172 = scmp.ne.s32.totalorder %s164, %s167
      %p173 = scmp.eq.s32.totalorder %s18, 0
      %p174 = por %p172, %p173
      %p175 = scmp.ne.s32.totalorder %s164, %s167
      %p176 = scmp.eq.s32.totalorder %s23, 1
      %p177 = por %p175, %p176
      %p178 = scmp.ne.s32.totalorder %s167, %s168
      %p179 = scmp.eq.s32.totalorder %s23, 0
      %p180 = por %p178, %p179
      %p181 = scmp.ne.s32.totalorder %s167, %s168
      %p182 = scmp.eq.s32.totalorder %s24, 1
      %p183 = por %p181, %p182
      %p185 = scmp.ne.s32.totalorder %s168, %s184
      %p186 = scmp.eq.s32.totalorder %s24, 0
      %p187 = por %p185, %p186
      %p188 = scmp.le.s32.totalorder 1, %s18
      %p189 = scmp.lt.s32.totalorder %s18, 3
      %p190 = pnand %p188, %p189
      %p191 = pneg %p190
      // Predicated region
      $region9: #{_lambda_.1} parent=5 // pred_check
        _
      $region10: #{_lambda_.1} parent=5 // pred_check_branch
        %193 = sbr.rel (%p190) target = $region12
      $region11: #{_lambda_.1} parent=5 // pred_region
        %s194 = ssub.s32 %s18, 1
        // Predicated region
        $region13: #{_lambda_.1} parent=11 // pred_check
          %p195 = pneg %p131
        $region14: #{_lambda_.1} parent=11 // pred_check_branch
          %197 = sbr.rel (%p195) target = $region16
        $region15: #{_lambda_.1} parent=11 // pred_region
          _
        $region16: #{_lambda_.1} parent=11 // pred_fallthru
          _
        // Predicated region
        $region17: #{_lambda_.1} parent=11 // pred_check
          %p198 = pneg %p152
        $region18: #{_lambda_.1} parent=11 // pred_check_branch
          %200 = sbr.rel (%p198) target = $region20
        $region19: #{_lambda_.1} parent=11 // pred_region
          %202 = vsyncadd [#allocation6], 0
          %s203 = sshll.u32 %s4, 4
          %s204 = int_to_ptr.hbm [resolvable:$true] %s203
          %s205 = sshll.u32 [#allocation5], 4
          %s206 = int_to_ptr.vmem [resolvable:$true] %s205
          %211 = dma.hbm_to_vmem [thread:$0]  %s204, 4096, %s206, [#allocation6], 64, 64, 4
        $region20: #{_lambda_.1} parent=11 // pred_fallthru
          _
      $region12: #{_lambda_.1} parent=5 // pred_fallthru
        _
      %p212 = scmp.lt.s32.totalorder %s18, 2
      // Predicated region
      $region21: #{_lambda_.1} parent=5 // pred_check
        %p213 = pneg %p212
      $region22: #{_lambda_.1} parent=5 // pred_check_branch
        %215 = sbr.rel (%p213) target = $region24
      $region23: #{_lambda_.1} parent=5 // pred_region
        // Predicated region
        $region25: #{_lambda_.1} parent=23 // pred_check
          %p216 = pneg %p50
        $region26: #{_lambda_.1} parent=23 // pred_check_branch
          %218 = sbr.rel (%p216) target = $region28
        $region27: #{_lambda_.1} parent=23 // pred_region
          %p219 = scmp.lt.s32.totalorder %s25, 1
          %s220 = scalar_select %p219, %s25, 1
          %s221 = smul.addr %s220, 4
          %s222 = scalar_lea.vmem %s0, %s221
        $region28: #{_lambda_.1} parent=23 // pred_fallthru
          _
        // Predicated region
        $region29: #{_lambda_.1} parent=23 // pred_check
          %p223 = pneg %p76
        $region30: #{_lambda_.1} parent=23 // pred_check_branch
          %225 = sbr.rel (%p223) target = $region32
        $region31: #{_lambda_.1} parent=23 // pred_region
          %p226 = scmp.lt.s32.totalorder %s25, 1
          %s227 = scalar_select %p226, %s25, 1
          %s228 = smul.addr %s227, 4
          %s229 = scalar_lea.vmem %s1, %s228
        $region32: #{_lambda_.1} parent=23 // pred_fallthru
          _
        // Predicated region
        $region33: #{_lambda_.1} parent=23 // pred_check
          %p230 = pneg %p104
        $region34: #{_lambda_.1} parent=23 // pred_check_branch
          %232 = sbr.rel (%p230) target = $region36
        $region35: #{_lambda_.1} parent=23 // pred_region
          %s233 = sand.u32 %s94, 1
          %s234 = scalar_lea.sflag [#allocation3], %s233
          %s235 = sand.u32 %s94, 1
          %s236 = smul.addr %s235, 256
          %s237 = scalar_lea.vmem [#allocation2], %s236
          %s238 = smul.u32 32, %s26
          %240 = vsyncadd %s234, 0
          %s241 = smul.addr %s25, 32
          %s242 = sadd.s32 %s238, %s241
          %s243 = smul.addr %s242, 8
          %s244 = scalar_lea.hbm %s2, %s243
          %s245 = sshll.u32 %s244, 4
          %s246 = int_to_ptr.hbm [resolvable:$true] %s245
          %s247 = sshll.u32 %s237, 4
          %s248 = int_to_ptr.vmem [resolvable:$true] %s247
          %253 = dma.hbm_to_vmem [thread:$0]  %s246, 4096, %s248, %s234, 128, 128, 8
        $region36: #{_lambda_.1} parent=23 // pred_fallthru
          _
      $region24: #{_lambda_.1} parent=5 // pred_fallthru
        _
      %p254 = scmp.le.s32.totalorder 1, %s18
      %p255 = scmp.lt.s32.totalorder %s18, 3
      %p256 = pnand %p254, %p255
      %p257 = pneg %p256
      // Predicated region
      $region37: #{_lambda_.1} parent=5 // pred_check
        _
      $region38: #{_lambda_.1} parent=5 // pred_check_branch
        %259 = sbr.rel (%p256) target = $region40
      $region39: #{_lambda_.1} parent=5 // pred_region
        %s260 = ssub.s32 %s18, 1
        %s261 = sand.u32 %s97, 1
        %s262 = scalar_lea.sflag [#allocation3], %s261
        %s263 = sand.u32 %s97, 1
        %s264 = smul.addr %s263, 256
        %s265 = scalar_lea.vmem [#allocation2], %s264
        // Predicated region
        $region41: #{_lambda_.1} parent=39 // pred_check
          %p266 = pneg %p110
        $region42: #{_lambda_.1} parent=39 // pred_check_branch
          %268 = sbr.rel (%p266) target = $region44
        $region43: #{_lambda_.1} parent=39 // pred_region
          %270 = dma.done %s262, 4096
        $region44: #{_lambda_.1} parent=39 // pred_fallthru
          _
        // Predicated region
        $region45: #{_lambda_.1} parent=39 // pred_check
          %p271 = pneg %p152
        $region46: #{_lambda_.1} parent=39 // pred_check_branch
          %273 = sbr.rel (%p271) target = $region48
        $region47: #{_lambda_.1} parent=39 // pred_region
          %275 = dma.done [#allocation6], 4096
        $region48: #{_lambda_.1} parent=39 // pred_fallthru
          _
        %p276 = scmp.lt.s32.totalorder %s27, 1
        %s277 = scalar_select %p276, %s27, 1
        %s278 = smul.addr %s277, 4
        %s279 = scalar_lea.vmem %s0, %s278
        %p280 = pneg %p56
        %p281 = pneg %p53
        %p282 = scmp.lt.s32.totalorder %s27, 1
        %s283 = scalar_select %p282, %s27, 1
        %s284 = smul.addr %s283, 4
        %s285 = scalar_lea.vmem %s1, %s284
        %p286 = pneg %p82
        %p287 = pneg %p79
        %s288 = sand.u32 %s97, 1
        %s289 = scalar_lea.sflag [#allocation3], %s288
        %s290 = sand.u32 %s97, 1
        %s291 = smul.addr %s290, 256
        %s292 = scalar_lea.vmem [#allocation2], %s291
        %p293 = pneg %p110
        %p294 = pneg %p107
        %p295 = pneg %p131
        %p296 = pneg %p128
        %p297 = pneg %p152
        %p298 = pneg %p149
        %p299 = pneg %p180
        %p300 = pneg %p177
        %s301 = sand.u32 %s167, 1
        %s302 = scalar_lea.sflag [#allocation4], %s301
        %s303 = sand.u32 %s167, 1
        %s304 = smul.addr %s303, 256
        %s305 = scalar_lea.vmem [#allocation7], %s304
        %p306 = scmp.lt.s32.totalorder %s27, 1
        %s307 = scalar_select %p306, %s27, 1
        %s308 = smul.addr %s307, 4
        %s309 = scalar_lea.vmem %s0, %s308
        %p310 = scmp.lt.s32.totalorder %s27, 1
        %s311 = scalar_select %p310, %s27, 1
        %s312 = smul.addr %s311, 4
        %s313 = scalar_lea.vmem %s1, %s312
        %s314 = smul.u32 32, %s28
        %s315 = smul.u32 32, %s28
        %v316 = vld [vmem:[%s265] sm:$0xff]
        %v317 = vld [vmem:[%s265 + $0x8] sm:$0xff]
        %v318 = vld [vmem:[%s265 + $0x10] sm:$0xff]
        %v319 = vld [vmem:[%s265 + $0x18] sm:$0xff]
        %v320 = vld [vmem:[%s265 + $0x20] sm:$0xff]
        %v321 = vld [vmem:[%s265 + $0x28] sm:$0xff]
        %v322 = vld [vmem:[%s265 + $0x30] sm:$0xff]
        %v323 = vld [vmem:[%s265 + $0x38] sm:$0xff]
        %v324 = vld [vmem:[%s265 + $0x40] sm:$0xff]
        %v325 = vld [vmem:[%s265 + $0x48] sm:$0xff]
        %v326 = vld [vmem:[%s265 + $0x50] sm:$0xff]
        %v327 = vld [vmem:[%s265 + $0x58] sm:$0xff]
        %v328 = vld [vmem:[%s265 + $0x60] sm:$0xff]
        %v329 = vld [vmem:[%s265 + $0x68] sm:$0xff]
        %v330 = vld [vmem:[%s265 + $0x70] sm:$0xff]
        %v331 = vld [vmem:[%s265 + $0x78] sm:$0xff]
        %v332 = vld [vmem:[%s265 + $0x80] sm:$0xff]
        %v333 = vld [vmem:[%s265 + $0x88] sm:$0xff]
        %v334 = vld [vmem:[%s265 + $0x90] sm:$0xff]
        %v335 = vld [vmem:[%s265 + $0x98] sm:$0xff]
        %v336 = vld [vmem:[%s265 + $0xa0] sm:$0xff]
        %v337 = vld [vmem:[%s265 + $0xa8] sm:$0xff]
        %v338 = vld [vmem:[%s265 + $0xb0] sm:$0xff]
        %v339 = vld [vmem:[%s265 + $0xb8] sm:$0xff]
        %v340 = vld [vmem:[%s265 + $0xc0] sm:$0xff]
        %v341 = vld [vmem:[%s265 + $0xc8] sm:$0xff]
        %v342 = vld [vmem:[%s265 + $0xd0] sm:$0xff]
        %v343 = vld [vmem:[%s265 + $0xd8] sm:$0xff]
        %v344 = vld [vmem:[%s265 + $0xe0] sm:$0xff]
        %v345 = vld [vmem:[%s265 + $0xe8] sm:$0xff]
        %v346 = vld [vmem:[%s265 + $0xf0] sm:$0xff]
        %v347 = vld [vmem:[%s265 + $0xf8] sm:$0xff]
        %v348 = vmul.f32 %v316, %v316
        %v349 = vmul.f32 %v317, %v317
        %v350 = vmul.f32 %v318, %v318
        %v351 = vmul.f32 %v319, %v319
        %v352 = vmul.f32 %v320, %v320
        %v353 = vmul.f32 %v321, %v321
        %v354 = vmul.f32 %v322, %v322
        %v355 = vmul.f32 %v323, %v323
        %v356 = vmul.f32 %v324, %v324
        %v357 = vmul.f32 %v325, %v325
        %v358 = vmul.f32 %v326, %v326
        %v359 = vmul.f32 %v327, %v327
        %v360 = vmul.f32 %v328, %v328
        %v361 = vmul.f32 %v329, %v329
        %v362 = vmul.f32 %v330, %v330
        %v363 = vmul.f32 %v331, %v331
        %v364 = vmul.f32 %v332, %v332
        %v365 = vmul.f32 %v333, %v333
        %v366 = vmul.f32 %v334, %v334
        %v367 = vmul.f32 %v335, %v335
        %v368 = vmul.f32 %v336, %v336
        %v369 = vmul.f32 %v337, %v337
        %v370 = vmul.f32 %v338, %v338
        %v371 = vmul.f32 %v339, %v339
        %v372 = vmul.f32 %v340, %v340
        %v373 = vmul.f32 %v341, %v341
        %v374 = vmul.f32 %v342, %v342
        %v375 = vmul.f32 %v343, %v343
        %v376 = vmul.f32 %v344, %v344
        %v377 = vmul.f32 %v345, %v345
        %v378 = vmul.f32 %v346, %v346
        %v379 = vmul.f32 %v347, %v347
        %380 = vadd.xlane.f32.xlu0 %v348
        %v381 = vpop.xlane.xlu0 %380
        %382 = vadd.xlane.f32.xlu0 %v349
        %v383 = vpop.xlane.xlu0 %382
        %384 = vadd.xlane.f32.xlu0 %v350
        %v385 = vpop.xlane.xlu0 %384
        %386 = vadd.xlane.f32.xlu0 %v351
        %v387 = vpop.xlane.xlu0 %386
        %388 = vadd.xlane.f32.xlu0 %v352
        %v389 = vpop.xlane.xlu0 %388
        %390 = vadd.xlane.f32.xlu0 %v353
        %v391 = vpop.xlane.xlu0 %390
        %392 = vadd.xlane.f32.xlu0 %v354
        %v393 = vpop.xlane.xlu0 %392
        %394 = vadd.xlane.f32.xlu0 %v355
        %v395 = vpop.xlane.xlu0 %394
        %396 = vadd.xlane.f32.xlu0 %v356
        %v397 = vpop.xlane.xlu0 %396
        %398 = vadd.xlane.f32.xlu0 %v357
        %v399 = vpop.xlane.xlu0 %398
        %400 = vadd.xlane.f32.xlu0 %v358
        %v401 = vpop.xlane.xlu0 %400
        %402 = vadd.xlane.f32.xlu0 %v359
        %v403 = vpop.xlane.xlu0 %402
        %404 = vadd.xlane.f32.xlu0 %v360
        %v405 = vpop.xlane.xlu0 %404
        %406 = vadd.xlane.f32.xlu0 %v361
        %v407 = vpop.xlane.xlu0 %406
        %408 = vadd.xlane.f32.xlu0 %v362
        %v409 = vpop.xlane.xlu0 %408
        %410 = vadd.xlane.f32.xlu0 %v363
        %v411 = vpop.xlane.xlu0 %410
        %412 = vadd.xlane.f32.xlu0 %v364
        %v413 = vpop.xlane.xlu0 %412
        %414 = vadd.xlane.f32.xlu0 %v365
        %v415 = vpop.xlane.xlu0 %414
        %416 = vadd.xlane.f32.xlu0 %v366
        %v417 = vpop.xlane.xlu0 %416
        %418 = vadd.xlane.f32.xlu0 %v367
        %v419 = vpop.xlane.xlu0 %418
        %420 = vadd.xlane.f32.xlu0 %v368
        %v421 = vpop.xlane.xlu0 %420
        %422 = vadd.xlane.f32.xlu0 %v369
        %v423 = vpop.xlane.xlu0 %422
        %424 = vadd.xlane.f32.xlu0 %v370
        %v425 = vpop.xlane.xlu0 %424
        %426 = vadd.xlane.f32.xlu0 %v371
        %v427 = vpop.xlane.xlu0 %426
        %428 = vadd.xlane.f32.xlu0 %v372
        %v429 = vpop.xlane.xlu0 %428
        %430 = vadd.xlane.f32.xlu0 %v373
        %v431 = vpop.xlane.xlu0 %430
        %432 = vadd.xlane.f32.xlu0 %v374
        %v433 = vpop.xlane.xlu0 %432
        %434 = vadd.xlane.f32.xlu0 %v375
        %v435 = vpop.xlane.xlu0 %434
        %436 = vadd.xlane.f32.xlu0 %v376
        %v437 = vpop.xlane.xlu0 %436
        %438 = vadd.xlane.f32.xlu0 %v377
        %v439 = vpop.xlane.xlu0 %438
        %440 = vadd.xlane.f32.xlu0 %v378
        %v441 = vpop.xlane.xlu0 %440
        %442 = vadd.xlane.f32.xlu0 %v379
        %v443 = vpop.xlane.xlu0 %442
        %v444 = vmax.f32 %v381, 1e-24
        %v445 = vmax.f32 %v383, 1e-24
        %v446 = vmax.f32 %v385, 1e-24
        %v447 = vmax.f32 %v387, 1e-24
        %v448 = vmax.f32 %v389, 1e-24
        %v449 = vmax.f32 %v391, 1e-24
        %v450 = vmax.f32 %v393, 1e-24
        %v451 = vmax.f32 %v395, 1e-24
        %v452 = vmax.f32 %v397, 1e-24
        %v453 = vmax.f32 %v399, 1e-24
        %v454 = vmax.f32 %v401, 1e-24
        %v455 = vmax.f32 %v403, 1e-24
        %v456 = vmax.f32 %v405, 1e-24
        %v457 = vmax.f32 %v407, 1e-24
        %v458 = vmax.f32 %v409, 1e-24
        %v459 = vmax.f32 %v411, 1e-24
        %v460 = vmax.f32 %v413, 1e-24
        %v461 = vmax.f32 %v415, 1e-24
        %v462 = vmax.f32 %v417, 1e-24
        %v463 = vmax.f32 %v419, 1e-24
        %v464 = vmax.f32 %v421, 1e-24
        %v465 = vmax.f32 %v423, 1e-24
        %v466 = vmax.f32 %v425, 1e-24
        %v467 = vmax.f32 %v427, 1e-24
        %v468 = vmax.f32 %v429, 1e-24
        %v469 = vmax.f32 %v431, 1e-24
        %v470 = vmax.f32 %v433, 1e-24
        %v471 = vmax.f32 %v435, 1e-24
        %v472 = vmax.f32 %v437, 1e-24
        %v473 = vmax.f32 %v439, 1e-24
        %v474 = vmax.f32 %v441, 1e-24
        %v475 = vmax.f32 %v443, 1e-24
        %v476 = vrsqrt.pop %v444
        %v477 = vmul.f32 %v476, %v444
        %v478 = vmul.f32 %v477, %v476
        %v479 = vmul.f32 0.5, %v478
        %v480 = vsub.f32 1.5, %v479
        %v481 = vmul.f32 %v476, %v480
        %vm482 = vweird.f32 %v444
        %vm483 = vweird.f32 %v476
        %vm484 = vmor %vm482, %vm483
        %v485 = vsel %vm484, %v476, %v481
        %v486 = vrsqrt.pop %v445
        %v487 = vmul.f32 %v486, %v445
        %v488 = vmul.f32 %v487, %v486
        %v489 = vmul.f32 0.5, %v488
        %v490 = vsub.f32 1.5, %v489
        %v491 = vmul.f32 %v486, %v490
        %vm492 = vweird.f32 %v445
        %vm493 = vweird.f32 %v486
        %vm494 = vmor %vm492, %vm493
        %v495 = vsel %vm494, %v486, %v491
        %v496 = vrsqrt.pop %v446
        %v497 = vmul.f32 %v496, %v446
        %v498 = vmul.f32 %v497, %v496
        %v499 = vmul.f32 0.5, %v498
        %v500 = vsub.f32 1.5, %v499
        %v501 = vmul.f32 %v496, %v500
        %vm502 = vweird.f32 %v446
        %vm503 = vweird.f32 %v496
        %vm504 = vmor %vm502, %vm503
        %v505 = vsel %vm504, %v496, %v501
        %v506 = vrsqrt.pop %v447
        %v507 = vmul.f32 %v506, %v447
        %v508 = vmul.f32 %v507, %v506
        %v509 = vmul.f32 0.5, %v508
        %v510 = vsub.f32 1.5, %v509
        %v511 = vmul.f32 %v506, %v510
        %vm512 = vweird.f32 %v447
        %vm513 = vweird.f32 %v506
        %vm514 = vmor %vm512, %vm513
        %v515 = vsel %vm514, %v506, %v511
        %v516 = vrsqrt.pop %v448
        %v517 = vmul.f32 %v516, %v448
        %v518 = vmul.f32 %v517, %v516
        %v519 = vmul.f32 0.5, %v518
        %v520 = vsub.f32 1.5, %v519
        %v521 = vmul.f32 %v516, %v520
        %vm522 = vweird.f32 %v448
        %vm523 = vweird.f32 %v516
        %vm524 = vmor %vm522, %vm523
        %v525 = vsel %vm524, %v516, %v521
        %v526 = vrsqrt.pop %v449
        %v527 = vmul.f32 %v526, %v449
        %v528 = vmul.f32 %v527, %v526
        %v529 = vmul.f32 0.5, %v528
        %v530 = vsub.f32 1.5, %v529
        %v531 = vmul.f32 %v526, %v530
        %vm532 = vweird.f32 %v449
        %vm533 = vweird.f32 %v526
        %vm534 = vmor %vm532, %vm533
        %v535 = vsel %vm534, %v526, %v531
        %v536 = vrsqrt.pop %v450
        %v537 = vmul.f32 %v536, %v450
        %v538 = vmul.f32 %v537, %v536
        %v539 = vmul.f32 0.5, %v538
        %v540 = vsub.f32 1.5, %v539
        %v541 = vmul.f32 %v536, %v540
        %vm542 = vweird.f32 %v450
        %vm543 = vweird.f32 %v536
        %vm544 = vmor %vm542, %vm543
        %v545 = vsel %vm544, %v536, %v541
        %v546 = vrsqrt.pop %v451
        %v547 = vmul.f32 %v546, %v451
        %v548 = vmul.f32 %v547, %v546
        %v549 = vmul.f32 0.5, %v548
        %v550 = vsub.f32 1.5, %v549
        %v551 = vmul.f32 %v546, %v550
        %vm552 = vweird.f32 %v451
        %vm553 = vweird.f32 %v546
        %vm554 = vmor %vm552, %vm553
        %v555 = vsel %vm554, %v546, %v551
        %v556 = vrsqrt.pop %v452
        %v557 = vmul.f32 %v556, %v452
        %v558 = vmul.f32 %v557, %v556
        %v559 = vmul.f32 0.5, %v558
        %v560 = vsub.f32 1.5, %v559
        %v561 = vmul.f32 %v556, %v560
        %vm562 = vweird.f32 %v452
        %vm563 = vweird.f32 %v556
        %vm564 = vmor %vm562, %vm563
        %v565 = vsel %vm564, %v556, %v561
        %v566 = vrsqrt.pop %v453
        %v567 = vmul.f32 %v566, %v453
        %v568 = vmul.f32 %v567, %v566
        %v569 = vmul.f32 0.5, %v568
        %v570 = vsub.f32 1.5, %v569
        %v571 = vmul.f32 %v566, %v570
        %vm572 = vweird.f32 %v453
        %vm573 = vweird.f32 %v566
        %vm574 = vmor %vm572, %vm573
        %v575 = vsel %vm574, %v566, %v571
        %v576 = vrsqrt.pop %v454
        %v577 = vmul.f32 %v576, %v454
        %v578 = vmul.f32 %v577, %v576
        %v579 = vmul.f32 0.5, %v578
        %v580 = vsub.f32 1.5, %v579
        %v581 = vmul.f32 %v576, %v580
        %vm582 = vweird.f32 %v454
        %vm583 = vweird.f32 %v576
        %vm584 = vmor %vm582, %vm583
        %v585 = vsel %vm584, %v576, %v581
        %v586 = vrsqrt.pop %v455
        %v587 = vmul.f32 %v586, %v455
        %v588 = vmul.f32 %v587, %v586
        %v589 = vmul.f32 0.5, %v588
        %v590 = vsub.f32 1.5, %v589
        %v591 = vmul.f32 %v586, %v590
        %vm592 = vweird.f32 %v455
        %vm593 = vweird.f32 %v586
        %vm594 = vmor %vm592, %vm593
        %v595 = vsel %vm594, %v586, %v591
        %v596 = vrsqrt.pop %v456
        %v597 = vmul.f32 %v596, %v456
        %v598 = vmul.f32 %v597, %v596
        %v599 = vmul.f32 0.5, %v598
        %v600 = vsub.f32 1.5, %v599
        %v601 = vmul.f32 %v596, %v600
        %vm602 = vweird.f32 %v456
        %vm603 = vweird.f32 %v596
        %vm604 = vmor %vm602, %vm603
        %v605 = vsel %vm604, %v596, %v601
        %v606 = vrsqrt.pop %v457
        %v607 = vmul.f32 %v606, %v457
        %v608 = vmul.f32 %v607, %v606
        %v609 = vmul.f32 0.5, %v608
        %v610 = vsub.f32 1.5, %v609
        %v611 = vmul.f32 %v606, %v610
        %vm612 = vweird.f32 %v457
        %vm613 = vweird.f32 %v606
        %vm614 = vmor %vm612, %vm613
        %v615 = vsel %vm614, %v606, %v611
        %v616 = vrsqrt.pop %v458
        %v617 = vmul.f32 %v616, %v458
        %v618 = vmul.f32 %v617, %v616
        %v619 = vmul.f32 0.5, %v618
        %v620 = vsub.f32 1.5, %v619
        %v621 = vmul.f32 %v616, %v620
        %vm622 = vweird.f32 %v458
        %vm623 = vweird.f32 %v616
        %vm624 = vmor %vm622, %vm623
        %v625 = vsel %vm624, %v616, %v621
        %v626 = vrsqrt.pop %v459
        %v627 = vmul.f32 %v626, %v459
        %v628 = vmul.f32 %v627, %v626
        %v629 = vmul.f32 0.5, %v628
        %v630 = vsub.f32 1.5, %v629
        %v631 = vmul.f32 %v626, %v630
        %vm632 = vweird.f32 %v459
        %vm633 = vweird.f32 %v626
        %vm634 = vmor %vm632, %vm633
        %v635 = vsel %vm634, %v626, %v631
        %v636 = vrsqrt.pop %v460
        %v637 = vmul.f32 %v636, %v460
        %v638 = vmul.f32 %v637, %v636
        %v639 = vmul.f32 0.5, %v638
        %v640 = vsub.f32 1.5, %v639
        %v641 = vmul.f32 %v636, %v640
        %vm642 = vweird.f32 %v460
        %vm643 = vweird.f32 %v636
        %vm644 = vmor %vm642, %vm643
        %v645 = vsel %vm644, %v636, %v641
        %v646 = vrsqrt.pop %v461
        %v647 = vmul.f32 %v646, %v461
        %v648 = vmul.f32 %v647, %v646
        %v649 = vmul.f32 0.5, %v648
        %v650 = vsub.f32 1.5, %v649
        %v651 = vmul.f32 %v646, %v650
        %vm652 = vweird.f32 %v461
        %vm653 = vweird.f32 %v646
        %vm654 = vmor %vm652, %vm653
        %v655 = vsel %vm654, %v646, %v651
        %v656 = vrsqrt.pop %v462
        %v657 = vmul.f32 %v656, %v462
        %v658 = vmul.f32 %v657, %v656
        %v659 = vmul.f32 0.5, %v658
        %v660 = vsub.f32 1.5, %v659
        %v661 = vmul.f32 %v656, %v660
        %vm662 = vweird.f32 %v462
        %vm663 = vweird.f32 %v656
        %vm664 = vmor %vm662, %vm663
        %v665 = vsel %vm664, %v656, %v661
        %v666 = vrsqrt.pop %v463
        %v667 = vmul.f32 %v666, %v463
        %v668 = vmul.f32 %v667, %v666
        %v669 = vmul.f32 0.5, %v668
        %v670 = vsub.f32 1.5, %v669
        %v671 = vmul.f32 %v666, %v670
        %vm672 = vweird.f32 %v463
        %vm673 = vweird.f32 %v666
        %vm674 = vmor %vm672, %vm673
        %v675 = vsel %vm674, %v666, %v671
        %v676 = vrsqrt.pop %v464
        %v677 = vmul.f32 %v676, %v464
        %v678 = vmul.f32 %v677, %v676
        %v679 = vmul.f32 0.5, %v678
        %v680 = vsub.f32 1.5, %v679
        %v681 = vmul.f32 %v676, %v680
        %vm682 = vweird.f32 %v464
        %vm683 = vweird.f32 %v676
        %vm684 = vmor %vm682, %vm683
        %v685 = vsel %vm684, %v676, %v681
        %v686 = vrsqrt.pop %v465
        %v687 = vmul.f32 %v686, %v465
        %v688 = vmul.f32 %v687, %v686
        %v689 = vmul.f32 0.5, %v688
        %v690 = vsub.f32 1.5, %v689
        %v691 = vmul.f32 %v686, %v690
        %vm692 = vweird.f32 %v465
        %vm693 = vweird.f32 %v686
        %vm694 = vmor %vm692, %vm693
        %v695 = vsel %vm694, %v686, %v691
        %v696 = vrsqrt.pop %v466
        %v697 = vmul.f32 %v696, %v466
        %v698 = vmul.f32 %v697, %v696
        %v699 = vmul.f32 0.5, %v698
        %v700 = vsub.f32 1.5, %v699
        %v701 = vmul.f32 %v696, %v700
        %vm702 = vweird.f32 %v466
        %vm703 = vweird.f32 %v696
        %vm704 = vmor %vm702, %vm703
        %v705 = vsel %vm704, %v696, %v701
        %v706 = vrsqrt.pop %v467
        %v707 = vmul.f32 %v706, %v467
        %v708 = vmul.f32 %v707, %v706
        %v709 = vmul.f32 0.5, %v708
        %v710 = vsub.f32 1.5, %v709
        %v711 = vmul.f32 %v706, %v710
        %vm712 = vweird.f32 %v467
        %vm713 = vweird.f32 %v706
        %vm714 = vmor %vm712, %vm713
        %v715 = vsel %vm714, %v706, %v711
        %v716 = vrsqrt.pop %v468
        %v717 = vmul.f32 %v716, %v468
        %v718 = vmul.f32 %v717, %v716
        %v719 = vmul.f32 0.5, %v718
        %v720 = vsub.f32 1.5, %v719
        %v721 = vmul.f32 %v716, %v720
        %vm722 = vweird.f32 %v468
        %vm723 = vweird.f32 %v716
        %vm724 = vmor %vm722, %vm723
        %v725 = vsel %vm724, %v716, %v721
        %v726 = vrsqrt.pop %v469
        %v727 = vmul.f32 %v726, %v469
        %v728 = vmul.f32 %v727, %v726
        %v729 = vmul.f32 0.5, %v728
        %v730 = vsub.f32 1.5, %v729
        %v731 = vmul.f32 %v726, %v730
        %vm732 = vweird.f32 %v469
        %vm733 = vweird.f32 %v726
        %vm734 = vmor %vm732, %vm733
        %v735 = vsel %vm734, %v726, %v731
        %v736 = vrsqrt.pop %v470
        %v737 = vmul.f32 %v736, %v470
        %v738 = vmul.f32 %v737, %v736
        %v739 = vmul.f32 0.5, %v738
        %v740 = vsub.f32 1.5, %v739
        %v741 = vmul.f32 %v736, %v740
        %vm742 = vweird.f32 %v470
        %vm743 = vweird.f32 %v736
        %vm744 = vmor %vm742, %vm743
        %v745 = vsel %vm744, %v736, %v741
        %v746 = vrsqrt.pop %v471
        %v747 = vmul.f32 %v746, %v471
        %v748 = vmul.f32 %v747, %v746
        %v749 = vmul.f32 0.5, %v748
        %v750 = vsub.f32 1.5, %v749
        %v751 = vmul.f32 %v746, %v750
        %vm752 = vweird.f32 %v471
        %vm753 = vweird.f32 %v746
        %vm754 = vmor %vm752, %vm753
        %v755 = vsel %vm754, %v746, %v751
        %v756 = vrsqrt.pop %v472
        %v757 = vmul.f32 %v756, %v472
        %v758 = vmul.f32 %v757, %v756
        %v759 = vmul.f32 0.5, %v758
        %v760 = vsub.f32 1.5, %v759
        %v761 = vmul.f32 %v756, %v760
        %vm762 = vweird.f32 %v472
        %vm763 = vweird.f32 %v756
        %vm764 = vmor %vm762, %vm763
        %v765 = vsel %vm764, %v756, %v761
        %v766 = vrsqrt.pop %v473
        %v767 = vmul.f32 %v766, %v473
        %v768 = vmul.f32 %v767, %v766
        %v769 = vmul.f32 0.5, %v768
        %v770 = vsub.f32 1.5, %v769
        %v771 = vmul.f32 %v766, %v770
        %vm772 = vweird.f32 %v473
        %vm773 = vweird.f32 %v766
        %vm774 = vmor %vm772, %vm773
        %v775 = vsel %vm774, %v766, %v771
        %v776 = vrsqrt.pop %v474
        %v777 = vmul.f32 %v776, %v474
        %v778 = vmul.f32 %v777, %v776
        %v779 = vmul.f32 0.5, %v778
        %v780 = vsub.f32 1.5, %v779
        %v781 = vmul.f32 %v776, %v780
        %vm782 = vweird.f32 %v474
        %vm783 = vweird.f32 %v776
        %vm784 = vmor %vm782, %vm783
        %v785 = vsel %vm784, %v776, %v781
        %v786 = vrsqrt.pop %v475
        %v787 = vmul.f32 %v786, %v475
        %v788 = vmul.f32 %v787, %v786
        %v789 = vmul.f32 0.5, %v788
        %v790 = vsub.f32 1.5, %v789
        %v791 = vmul.f32 %v786, %v790
        %vm792 = vweird.f32 %v475
        %vm793 = vweird.f32 %v786
        %vm794 = vmor %vm792, %vm793
        %v795 = vsel %vm794, %v786, %v791
        %v796 = vmul.f32 %v485, 11.313708
        %v797 = vmul.f32 %v495, 11.313708
        %v798 = vmul.f32 %v505, 11.313708
        %v799 = vmul.f32 %v515, 11.313708
        %v800 = vmul.f32 %v525, 11.313708
        %v801 = vmul.f32 %v535, 11.313708
        %v802 = vmul.f32 %v545, 11.313708
        %v803 = vmul.f32 %v555, 11.313708
        %v804 = vmul.f32 %v565, 11.313708
        %v805 = vmul.f32 %v575, 11.313708
        %v806 = vmul.f32 %v585, 11.313708
        %v807 = vmul.f32 %v595, 11.313708
        %v808 = vmul.f32 %v605, 11.313708
        %v809 = vmul.f32 %v615, 11.313708
        %v810 = vmul.f32 %v625, 11.313708
        %v811 = vmul.f32 %v635, 11.313708
        %v812 = vmul.f32 %v645, 11.313708
        %v813 = vmul.f32 %v655, 11.313708
        %v814 = vmul.f32 %v665, 11.313708
        %v815 = vmul.f32 %v675, 11.313708
        %v816 = vmul.f32 %v685, 11.313708
        %v817 = vmul.f32 %v695, 11.313708
        %v818 = vmul.f32 %v705, 11.313708
        %v819 = vmul.f32 %v715, 11.313708
        %v820 = vmul.f32 %v725, 11.313708
        %v821 = vmul.f32 %v735, 11.313708
        %v822 = vmul.f32 %v745, 11.313708
        %v823 = vmul.f32 %v755, 11.313708
        %v824 = vmul.f32 %v765, 11.313708
        %v825 = vmul.f32 %v775, 11.313708
        %v826 = vmul.f32 %v785, 11.313708
        %v827 = vmul.f32 %v795, 11.313708
        %v828 = vmul.f32 %v316, %v796
        %v829 = vmul.f32 %v317, %v797
        %v830 = vmul.f32 %v318, %v798
        %v831 = vmul.f32 %v319, %v799
        %v832 = vmul.f32 %v320, %v800
        %v833 = vmul.f32 %v321, %v801
        %v834 = vmul.f32 %v322, %v802
        %v835 = vmul.f32 %v323, %v803
        %v836 = vmul.f32 %v324, %v804
        %v837 = vmul.f32 %v325, %v805
        %v838 = vmul.f32 %v326, %v806
        %v839 = vmul.f32 %v327, %v807
        %v840 = vmul.f32 %v328, %v808
        %v841 = vmul.f32 %v329, %v809
        %v842 = vmul.f32 %v330, %v810
        %v843 = vmul.f32 %v331, %v811
        %v844 = vmul.f32 %v332, %v812
        %v845 = vmul.f32 %v333, %v813
        %v846 = vmul.f32 %v334, %v814
        %v847 = vmul.f32 %v335, %v815
        %v848 = vmul.f32 %v336, %v816
        %v849 = vmul.f32 %v337, %v817
        %v850 = vmul.f32 %v338, %v818
        %v851 = vmul.f32 %v339, %v819
        %v852 = vmul.f32 %v340, %v820
        %v853 = vmul.f32 %v341, %v821
        %v854 = vmul.f32 %v342, %v822
        %v855 = vmul.f32 %v343, %v823
        %v856 = vmul.f32 %v344, %v824
        %v857 = vmul.f32 %v345, %v825
        %v858 = vmul.f32 %v346, %v826
        %v859 = vmul.f32 %v347, %v827
        %v860 = vpack.c.bf16 %v829, %v828
        %v861 = vpack.c.bf16 %v831, %v830
        %v862 = vpack.c.bf16 %v833, %v832
        %v863 = vpack.c.bf16 %v835, %v834
        %v864 = vpack.c.bf16 %v837, %v836
        %v865 = vpack.c.bf16 %v839, %v838
        %v866 = vpack.c.bf16 %v841, %v840
        %v867 = vpack.c.bf16 %v843, %v842
        %v868 = vpack.c.bf16 %v845, %v844
        %v869 = vpack.c.bf16 %v847, %v846
        %v870 = vpack.c.bf16 %v849, %v848
        %v871 = vpack.c.bf16 %v851, %v850
        %v872 = vpack.c.bf16 %v853, %v852
        %v873 = vpack.c.bf16 %v855, %v854
        %v874 = vpack.c.bf16 %v857, %v856
        %v875 = vpack.c.bf16 %v859, %v858
        %v876 = vld [vmem:[%s3] sm:$0xff]
        %v877 = vld [vmem:[%s3 + $0x8] sm:$0xff]
        %v878 = vld [vmem:[%s3 + $0x10] sm:$0xff]
        %v879 = vld [vmem:[%s3 + $0x18] sm:$0xff]
        %v880 = vld [vmem:[%s3 + $0x20] sm:$0xff]
        %v881 = vld [vmem:[%s3 + $0x28] sm:$0xff]
        %v882 = vld [vmem:[%s3 + $0x30] sm:$0xff]
        %v883 = vld [vmem:[%s3 + $0x38] sm:$0xff]
        %v884 = vld [vmem:[%s3 + $0x40] sm:$0xff]
        %v885 = vld [vmem:[%s3 + $0x48] sm:$0xff]
        %v886 = vld [vmem:[%s3 + $0x50] sm:$0xff]
        %v887 = vld [vmem:[%s3 + $0x58] sm:$0xff]
        %v888 = vld [vmem:[%s3 + $0x60] sm:$0xff]
        %v889 = vld [vmem:[%s3 + $0x68] sm:$0xff]
        %v890 = vld [vmem:[%s3 + $0x70] sm:$0xff]
        %v891 = vld [vmem:[%s3 + $0x78] sm:$0xff]
        %v892 = vld [vmem:[%s3 + $0x80] sm:$0xff]
        %v893 = vld [vmem:[%s3 + $0x88] sm:$0xff]
        %v894 = vld [vmem:[%s3 + $0x90] sm:$0xff]
        %v895 = vld [vmem:[%s3 + $0x98] sm:$0xff]
        %v896 = vld [vmem:[%s3 + $0xa0] sm:$0xff]
        %v897 = vld [vmem:[%s3 + $0xa8] sm:$0xff]
        %v898 = vld [vmem:[%s3 + $0xb0] sm:$0xff]
        %v899 = vld [vmem:[%s3 + $0xb8] sm:$0xff]
        %v900 = vld [vmem:[%s3 + $0xc0] sm:$0xff]
        %v901 = vld [vmem:[%s3 + $0xc8] sm:$0xff]
        %v902 = vld [vmem:[%s3 + $0xd0] sm:$0xff]
        %v903 = vld [vmem:[%s3 + $0xd8] sm:$0xff]
        %v904 = vld [vmem:[%s3 + $0xe0] sm:$0xff]
        %v905 = vld [vmem:[%s3 + $0xe8] sm:$0xff]
        %v906 = vld [vmem:[%s3 + $0xf0] sm:$0xff]
        %v907 = vld [vmem:[%s3 + $0xf8] sm:$0xff]
        %v940 = vunpack.c.l.b16 %v876
        %v941 = vunpack.c.h.b16 %v876
        %v942 = vunpack.c.l.b16 %v877
        %v943 = vunpack.c.h.b16 %v877
        %v944 = vunpack.c.l.b16 %v878
        %v945 = vunpack.c.h.b16 %v878
        %v946 = vunpack.c.l.b16 %v879
        %v947 = vunpack.c.h.b16 %v879
        %v948 = vunpack.c.l.b16 %v880
        %v949 = vunpack.c.h.b16 %v880
        %v950 = vunpack.c.l.b16 %v881
        %v951 = vunpack.c.h.b16 %v881
        %v952 = vunpack.c.l.b16 %v882
        %v953 = vunpack.c.h.b16 %v882
        %v954 = vunpack.c.l.b16 %v883
        %v955 = vunpack.c.h.b16 %v883
        %v956 = vunpack.c.l.b16 %v884
        %v957 = vunpack.c.h.b16 %v884
        %v958 = vunpack.c.l.b16 %v885
        %v959 = vunpack.c.h.b16 %v885
        %v960 = vunpack.c.l.b16 %v886
        %v961 = vunpack.c.h.b16 %v886
        %v962 = vunpack.c.l.b16 %v887
        %v963 = vunpack.c.h.b16 %v887
        %v964 = vunpack.c.l.b16 %v888
        %v965 = vunpack.c.h.b16 %v888
        %v966 = vunpack.c.l.b16 %v889
        %v967 = vunpack.c.h.b16 %v889
        %v968 = vunpack.c.l.b16 %v890
        %v969 = vunpack.c.h.b16 %v890
        %v970 = vunpack.c.l.b16 %v891
        %v971 = vunpack.c.h.b16 %v891
        %v972 = vunpack.c.l.b16 %v892
        %v973 = vunpack.c.h.b16 %v892
        %v974 = vunpack.c.l.b16 %v893
        %v975 = vunpack.c.h.b16 %v893
        %v976 = vunpack.c.l.b16 %v894
        %v977 = vunpack.c.h.b16 %v894
        %v978 = vunpack.c.l.b16 %v895
        %v979 = vunpack.c.h.b16 %v895
        %v980 = vunpack.c.l.b16 %v896
        %v981 = vunpack.c.h.b16 %v896
        %v982 = vunpack.c.l.b16 %v897
        %v983 = vunpack.c.h.b16 %v897
        %v984 = vunpack.c.l.b16 %v898
        %v985 = vunpack.c.h.b16 %v898
        %v986 = vunpack.c.l.b16 %v899
        %v987 = vunpack.c.h.b16 %v899
        %v988 = vunpack.c.l.b16 %v900
        %v989 = vunpack.c.h.b16 %v900
        %v990 = vunpack.c.l.b16 %v901
        %v991 = vunpack.c.h.b16 %v901
        %v992 = vunpack.c.l.b16 %v902
        %v993 = vunpack.c.h.b16 %v902
        %v994 = vunpack.c.l.b16 %v903
        %v995 = vunpack.c.h.b16 %v903
        %v996 = vunpack.c.l.b16 %v904
        %v997 = vunpack.c.h.b16 %v904
        %v998 = vunpack.c.l.b16 %v905
        %v999 = vunpack.c.h.b16 %v905
        %v1000 = vunpack.c.l.b16 %v906
        %v1001 = vunpack.c.h.b16 %v906
        %v1002 = vunpack.c.l.b16 %v907
        %v1003 = vunpack.c.h.b16 %v907
        %v1004 = vpack.c.b16 %v944, %v940
        %v1005 = vpack.c.b16 %v945, %v941
        %v1006 = vpack.c.b16 %v946, %v942
        %v1007 = vpack.c.b16 %v947, %v943
        %v1008 = vpack.c.b16 %v952, %v948
        %v1009 = vpack.c.b16 %v953, %v949
        %v1010 = vpack.c.b16 %v954, %v950
        %v1011 = vpack.c.b16 %v955, %v951
        %v1012 = vpack.c.b16 %v960, %v956
        %v1013 = vpack.c.b16 %v961, %v957
        %v1014 = vpack.c.b16 %v962, %v958
        %v1015 = vpack.c.b16 %v963, %v959
        %v1016 = vpack.c.b16 %v968, %v964
        %v1017 = vpack.c.b16 %v969, %v965
        %v1018 = vpack.c.b16 %v970, %v966
        %v1019 = vpack.c.b16 %v971, %v967
        %v1020 = vpack.c.b16 %v976, %v972
        %v1021 = vpack.c.b16 %v977, %v973
        %v1022 = vpack.c.b16 %v978, %v974
        %v1023 = vpack.c.b16 %v979, %v975
        %v1024 = vpack.c.b16 %v984, %v980
        %v1025 = vpack.c.b16 %v985, %v981
        %v1026 = vpack.c.b16 %v986, %v982
        %v1027 = vpack.c.b16 %v987, %v983
        %v1028 = vpack.c.b16 %v992, %v988
        %v1029 = vpack.c.b16 %v993, %v989
        %v1030 = vpack.c.b16 %v994, %v990
        %v1031 = vpack.c.b16 %v995, %v991
        %v1032 = vpack.c.b16 %v1000, %v996
        %v1033 = vpack.c.b16 %v1001, %v997
        %v1034 = vpack.c.b16 %v1002, %v998
        %v1035 = vpack.c.b16 %v1003, %v999
        %1068 = vmatpush.bf16.msra.mxu0 %v1032
        %1069 = vmatpush.bf16.msra.mxu0 %v1028
        %1070 = vmatpush.bf16.msra.mxu0 %v1024
        %1071 = vmatpush.bf16.msra.mxu0 %v1020
        %1072 = vmatpush.bf16.msra.mxu0 %v1016
        %1073 = vmatpush.bf16.msra.mxu0 %v1012
        %1074 = vmatpush.bf16.msra.mxu0 %v1008
        %1075 = vmatpush.bf16.msra.mxu0 %v1004
        %1076 = vmatmul.bf16.gmra.mxu0 %v860
        %v1077 = vpop.f32.mrf.mxu0
        %v1078 = vadd.f32 0.0, %v1077
        %v1079 = vpop.f32.mrf.mxu0
        %v1080 = vadd.f32 0.0, %v1079
        %1081 = vmatmul.bf16.gmra.mxu0 %v861
        %v1082 = vpop.f32.mrf.mxu0
        %v1083 = vadd.f32 0.0, %v1082
        %v1084 = vpop.f32.mrf.mxu0
        %v1085 = vadd.f32 0.0, %v1084
        %1086 = vmatmul.bf16.gmra.mxu0 %v862
        %v1087 = vpop.f32.mrf.mxu0
        %v1088 = vadd.f32 0.0, %v1087
        %v1089 = vpop.f32.mrf.mxu0
        %v1090 = vadd.f32 0.0, %v1089
        %1091 = vmatmul.bf16.gmra.mxu0 %v863
        %v1092 = vpop.f32.mrf.mxu0
        %v1093 = vadd.f32 0.0, %v1092
        %v1094 = vpop.f32.mrf.mxu0
        %v1095 = vadd.f32 0.0, %v1094
        %1096 = vmatmul.bf16.gmra.mxu0 %v864
        %v1097 = vpop.f32.mrf.mxu0
        %v1098 = vadd.f32 0.0, %v1097
        %v1099 = vpop.f32.mrf.mxu0
        %v1100 = vadd.f32 0.0, %v1099
        %1101 = vmatmul.bf16.gmra.mxu0 %v865
        %v1102 = vpop.f32.mrf.mxu0
        %v1103 = vadd.f32 0.0, %v1102
        %v1104 = vpop.f32.mrf.mxu0
        %v1105 = vadd.f32 0.0, %v1104
        %1106 = vmatmul.bf16.gmra.mxu0 %v866
        %v1107 = vpop.f32.mrf.mxu0
        %v1108 = vadd.f32 0.0, %v1107
        %v1109 = vpop.f32.mrf.mxu0
        %v1110 = vadd.f32 0.0, %v1109
        %1111 = vmatmul.bf16.gmra.mxu0 %v867
        %v1112 = vpop.f32.mrf.mxu0
        %v1113 = vadd.f32 0.0, %v1112
        %v1114 = vpop.f32.mrf.mxu0
        %v1115 = vadd.f32 0.0, %v1114
        %1116 = vmatmul.bf16.gmra.mxu0 %v868
        %v1117 = vpop.f32.mrf.mxu0
        %v1118 = vadd.f32 0.0, %v1117
        %v1119 = vpop.f32.mrf.mxu0
        %v1120 = vadd.f32 0.0, %v1119
        %1121 = vmatmul.bf16.gmra.mxu0 %v869
        %v1122 = vpop.f32.mrf.mxu0
        %v1123 = vadd.f32 0.0, %v1122
        %v1124 = vpop.f32.mrf.mxu0
        %v1125 = vadd.f32 0.0, %v1124
        %1126 = vmatmul.bf16.gmra.mxu0 %v870
        %v1127 = vpop.f32.mrf.mxu0
        %v1128 = vadd.f32 0.0, %v1127
        %v1129 = vpop.f32.mrf.mxu0
        %v1130 = vadd.f32 0.0, %v1129
        %1131 = vmatmul.bf16.gmra.mxu0 %v871
        %v1132 = vpop.f32.mrf.mxu0
        %v1133 = vadd.f32 0.0, %v1132
        %v1134 = vpop.f32.mrf.mxu0
        %v1135 = vadd.f32 0.0, %v1134
        %1136 = vmatmul.bf16.gmra.mxu0 %v872
        %v1137 = vpop.f32.mrf.mxu0
        %v1138 = vadd.f32 0.0, %v1137
        %v1139 = vpop.f32.mrf.mxu0
        %v1140 = vadd.f32 0.0, %v1139
        %1141 = vmatmul.bf16.gmra.mxu0 %v873
        %v1142 = vpop.f32.mrf.mxu0
        %v1143 = vadd.f32 0.0, %v1142
        %v1144 = vpop.f32.mrf.mxu0
        %v1145 = vadd.f32 0.0, %v1144
        %1146 = vmatmul.bf16.gmra.mxu0 %v874
        %v1147 = vpop.f32.mrf.mxu0
        %v1148 = vadd.f32 0.0, %v1147
        %v1149 = vpop.f32.mrf.mxu0
        %v1150 = vadd.f32 0.0, %v1149
        %1151 = vmatmul.bf16.gmra.mxu0 %v875
        %v1152 = vpop.f32.mrf.mxu0
        %v1153 = vadd.f32 0.0, %v1152
        %v1154 = vpop.f32.mrf.mxu0
        %v1155 = vadd.f32 0.0, %v1154
        %1156 = vdwg.mxu0
        %1157 = vmatpush.bf16.msra.mxu0 %v1033
        %1158 = vmatpush.bf16.msra.mxu0 %v1029
        %1159 = vmatpush.bf16.msra.mxu0 %v1025
        %1160 = vmatpush.bf16.msra.mxu0 %v1021
        %1161 = vmatpush.bf16.msra.mxu0 %v1017
        %1162 = vmatpush.bf16.msra.mxu0 %v1013
        %1163 = vmatpush.bf16.msra.mxu0 %v1009
        %1164 = vmatpush.bf16.msra.mxu0 %v1005
        %1165 = vmatmul.bf16.gmra.mxu0 %v860
        %v1166 = vpop.f32.mrf.mxu0
        %v1167 = vadd.f32 0.0, %v1166
        %v1168 = vpop.f32.mrf.mxu0
        %v1169 = vadd.f32 0.0, %v1168
        %1170 = vmatmul.bf16.gmra.mxu0 %v861
        %v1171 = vpop.f32.mrf.mxu0
        %v1172 = vadd.f32 0.0, %v1171
        %v1173 = vpop.f32.mrf.mxu0
        %v1174 = vadd.f32 0.0, %v1173
        %1175 = vmatmul.bf16.gmra.mxu0 %v862
        %v1176 = vpop.f32.mrf.mxu0
        %v1177 = vadd.f32 0.0, %v1176
        %v1178 = vpop.f32.mrf.mxu0
        %v1179 = vadd.f32 0.0, %v1178
        %1180 = vmatmul.bf16.gmra.mxu0 %v863
        %v1181 = vpop.f32.mrf.mxu0
        %v1182 = vadd.f32 0.0, %v1181
        %v1183 = vpop.f32.mrf.mxu0
        %v1184 = vadd.f32 0.0, %v1183
        %1185 = vmatmul.bf16.gmra.mxu0 %v864
        %v1186 = vpop.f32.mrf.mxu0
        %v1187 = vadd.f32 0.0, %v1186
        %v1188 = vpop.f32.mrf.mxu0
        %v1189 = vadd.f32 0.0, %v1188
        %1190 = vmatmul.bf16.gmra.mxu0 %v865
        %v1191 = vpop.f32.mrf.mxu0
        %v1192 = vadd.f32 0.0, %v1191
        %v1193 = vpop.f32.mrf.mxu0
        %v1194 = vadd.f32 0.0, %v1193
        %1195 = vmatmul.bf16.gmra.mxu0 %v866
        %v1196 = vpop.f32.mrf.mxu0
        %v1197 = vadd.f32 0.0, %v1196
        %v1198 = vpop.f32.mrf.mxu0
        %v1199 = vadd.f32 0.0, %v1198
        %1200 = vmatmul.bf16.gmra.mxu0 %v867
        %v1201 = vpop.f32.mrf.mxu0
        %v1202 = vadd.f32 0.0, %v1201
        %v1203 = vpop.f32.mrf.mxu0
        %v1204 = vadd.f32 0.0, %v1203
        %1205 = vmatmul.bf16.gmra.mxu0 %v868
        %v1206 = vpop.f32.mrf.mxu0
        %v1207 = vadd.f32 0.0, %v1206
        %v1208 = vpop.f32.mrf.mxu0
        %v1209 = vadd.f32 0.0, %v1208
        %1210 = vmatmul.bf16.gmra.mxu0 %v869
        %v1211 = vpop.f32.mrf.mxu0
        %v1212 = vadd.f32 0.0, %v1211
        %v1213 = vpop.f32.mrf.mxu0
        %v1214 = vadd.f32 0.0, %v1213
        %1215 = vmatmul.bf16.gmra.mxu0 %v870
        %v1216 = vpop.f32.mrf.mxu0
        %v1217 = vadd.f32 0.0, %v1216
        %v1218 = vpop.f32.mrf.mxu0
        %v1219 = vadd.f32 0.0, %v1218
        %1220 = vmatmul.bf16.gmra.mxu0 %v871
        %v1221 = vpop.f32.mrf.mxu0
        %v1222 = vadd.f32 0.0, %v1221
        %v1223 = vpop.f32.mrf.mxu0
        %v1224 = vadd.f32 0.0, %v1223
        %1225 = vmatmul.bf16.gmra.mxu0 %v872
        %v1226 = vpop.f32.mrf.mxu0
        %v1227 = vadd.f32 0.0, %v1226
        %v1228 = vpop.f32.mrf.mxu0
        %v1229 = vadd.f32 0.0, %v1228
        %1230 = vmatmul.bf16.gmra.mxu0 %v873
        %v1231 = vpop.f32.mrf.mxu0
        %v1232 = vadd.f32 0.0, %v1231
        %v1233 = vpop.f32.mrf.mxu0
        %v1234 = vadd.f32 0.0, %v1233
        %1235 = vmatmul.bf16.gmra.mxu0 %v874
        %v1236 = vpop.f32.mrf.mxu0
        %v1237 = vadd.f32 0.0, %v1236
        %v1238 = vpop.f32.mrf.mxu0
        %v1239 = vadd.f32 0.0, %v1238
        %1240 = vmatmul.bf16.gmra.mxu0 %v875
        %v1241 = vpop.f32.mrf.mxu0
        %v1242 = vadd.f32 0.0, %v1241
        %v1243 = vpop.f32.mrf.mxu0
        %v1244 = vadd.f32 0.0, %v1243
        %1245 = vdwg.mxu0
        %1246 = vmatpush.bf16.msra.mxu0 %v1034
        %1247 = vmatpush.bf16.msra.mxu0 %v1030
        %1248 = vmatpush.bf16.msra.mxu0 %v1026
        %1249 = vmatpush.bf16.msra.mxu0 %v1022
        %1250 = vmatpush.bf16.msra.mxu0 %v1018
        %1251 = vmatpush.bf16.msra.mxu0 %v1014
        %1252 = vmatpush.bf16.msra.mxu0 %v1010
        %1253 = vmatpush.bf16.msra.mxu0 %v1006
        %1254 = vmatmul.bf16.gmra.mxu0 %v860
        %v1255 = vpop.f32.mrf.mxu0
        %v1256 = vadd.f32 0.0, %v1255
        %v1257 = vpop.f32.mrf.mxu0
        %v1258 = vadd.f32 0.0, %v1257
        %1259 = vmatmul.bf16.gmra.mxu0 %v861
        %v1260 = vpop.f32.mrf.mxu0
        %v1261 = vadd.f32 0.0, %v1260
        %v1262 = vpop.f32.mrf.mxu0
        %v1263 = vadd.f32 0.0, %v1262
        %1264 = vmatmul.bf16.gmra.mxu0 %v862
        %v1265 = vpop.f32.mrf.mxu0
        %v1266 = vadd.f32 0.0, %v1265
        %v1267 = vpop.f32.mrf.mxu0
        %v1268 = vadd.f32 0.0, %v1267
        %1269 = vmatmul.bf16.gmra.mxu0 %v863
        %v1270 = vpop.f32.mrf.mxu0
        %v1271 = vadd.f32 0.0, %v1270
        %v1272 = vpop.f32.mrf.mxu0
        %v1273 = vadd.f32 0.0, %v1272
        %1274 = vmatmul.bf16.gmra.mxu0 %v864
        %v1275 = vpop.f32.mrf.mxu0
        %v1276 = vadd.f32 0.0, %v1275
        %v1277 = vpop.f32.mrf.mxu0
        %v1278 = vadd.f32 0.0, %v1277
        %1279 = vmatmul.bf16.gmra.mxu0 %v865
        %v1280 = vpop.f32.mrf.mxu0
        %v1281 = vadd.f32 0.0, %v1280
        %v1282 = vpop.f32.mrf.mxu0
        %v1283 = vadd.f32 0.0, %v1282
        %1284 = vmatmul.bf16.gmra.mxu0 %v866
        %v1285 = vpop.f32.mrf.mxu0
        %v1286 = vadd.f32 0.0, %v1285
        %v1287 = vpop.f32.mrf.mxu0
        %v1288 = vadd.f32 0.0, %v1287
        %1289 = vmatmul.bf16.gmra.mxu0 %v867
        %v1290 = vpop.f32.mrf.mxu0
        %v1291 = vadd.f32 0.0, %v1290
        %v1292 = vpop.f32.mrf.mxu0
        %v1293 = vadd.f32 0.0, %v1292
        %1294 = vmatmul.bf16.gmra.mxu0 %v868
        %v1295 = vpop.f32.mrf.mxu0
        %v1296 = vadd.f32 0.0, %v1295
        %v1297 = vpop.f32.mrf.mxu0
        %v1298 = vadd.f32 0.0, %v1297
        %1299 = vmatmul.bf16.gmra.mxu0 %v869
        %v1300 = vpop.f32.mrf.mxu0
        %v1301 = vadd.f32 0.0, %v1300
        %v1302 = vpop.f32.mrf.mxu0
        %v1303 = vadd.f32 0.0, %v1302
        %1304 = vmatmul.bf16.gmra.mxu0 %v870
        %v1305 = vpop.f32.mrf.mxu0
        %v1306 = vadd.f32 0.0, %v1305
        %v1307 = vpop.f32.mrf.mxu0
        %v1308 = vadd.f32 0.0, %v1307
        %1309 = vmatmul.bf16.gmra.mxu0 %v871
        %v1310 = vpop.f32.mrf.mxu0
        %v1311 = vadd.f32 0.0, %v1310
        %v1312 = vpop.f32.mrf.mxu0
        %v1313 = vadd.f32 0.0, %v1312
        %1314 = vmatmul.bf16.gmra.mxu0 %v872
        %v1315 = vpop.f32.mrf.mxu0
        %v1316 = vadd.f32 0.0, %v1315
        %v1317 = vpop.f32.mrf.mxu0
        %v1318 = vadd.f32 0.0, %v1317
        %1319 = vmatmul.bf16.gmra.mxu0 %v873
        %v1320 = vpop.f32.mrf.mxu0
        %v1321 = vadd.f32 0.0, %v1320
        %v1322 = vpop.f32.mrf.mxu0
        %v1323 = vadd.f32 0.0, %v1322
        %1324 = vmatmul.bf16.gmra.mxu0 %v874
        %v1325 = vpop.f32.mrf.mxu0
        %v1326 = vadd.f32 0.0, %v1325
        %v1327 = vpop.f32.mrf.mxu0
        %v1328 = vadd.f32 0.0, %v1327
        %1329 = vmatmul.bf16.gmra.mxu0 %v875
        %v1330 = vpop.f32.mrf.mxu0
        %v1331 = vadd.f32 0.0, %v1330
        %v1332 = vpop.f32.mrf.mxu0
        %v1333 = vadd.f32 0.0, %v1332
        %1334 = vdwg.mxu0
        %1335 = vmatpush.bf16.msra.mxu0 %v1035
        %1336 = vmatpush.bf16.msra.mxu0 %v1031
        %1337 = vmatpush.bf16.msra.mxu0 %v1027
        %1338 = vmatpush.bf16.msra.mxu0 %v1023
        %1339 = vmatpush.bf16.msra.mxu0 %v1019
        %1340 = vmatpush.bf16.msra.mxu0 %v1015
        %1341 = vmatpush.bf16.msra.mxu0 %v1011
        %1342 = vmatpush.bf16.msra.mxu0 %v1007
        %1343 = vmatmul.bf16.gmra.mxu0 %v860
        %v1344 = vpop.f32.mrf.mxu0
        %v1345 = vadd.f32 0.0, %v1344
        %v1346 = vpop.f32.mrf.mxu0
        %v1347 = vadd.f32 0.0, %v1346
        %1348 = vmatmul.bf16.gmra.mxu0 %v861
        %v1349 = vpop.f32.mrf.mxu0
        %v1350 = vadd.f32 0.0, %v1349
        %v1351 = vpop.f32.mrf.mxu0
        %v1352 = vadd.f32 0.0, %v1351
        %1353 = vmatmul.bf16.gmra.mxu0 %v862
        %v1354 = vpop.f32.mrf.mxu0
        %v1355 = vadd.f32 0.0, %v1354
        %v1356 = vpop.f32.mrf.mxu0
        %v1357 = vadd.f32 0.0, %v1356
        %1358 = vmatmul.bf16.gmra.mxu0 %v863
        %v1359 = vpop.f32.mrf.mxu0
        %v1360 = vadd.f32 0.0, %v1359
        %v1361 = vpop.f32.mrf.mxu0
        %v1362 = vadd.f32 0.0, %v1361
        %1363 = vmatmul.bf16.gmra.mxu0 %v864
        %v1364 = vpop.f32.mrf.mxu0
        %v1365 = vadd.f32 0.0, %v1364
        %v1366 = vpop.f32.mrf.mxu0
        %v1367 = vadd.f32 0.0, %v1366
        %1368 = vmatmul.bf16.gmra.mxu0 %v865
        %v1369 = vpop.f32.mrf.mxu0
        %v1370 = vadd.f32 0.0, %v1369
        %v1371 = vpop.f32.mrf.mxu0
        %v1372 = vadd.f32 0.0, %v1371
        %1373 = vmatmul.bf16.gmra.mxu0 %v866
        %v1374 = vpop.f32.mrf.mxu0
        %v1375 = vadd.f32 0.0, %v1374
        %v1376 = vpop.f32.mrf.mxu0
        %v1377 = vadd.f32 0.0, %v1376
        %1378 = vmatmul.bf16.gmra.mxu0 %v867
        %v1379 = vpop.f32.mrf.mxu0
        %v1380 = vadd.f32 0.0, %v1379
        %v1381 = vpop.f32.mrf.mxu0
        %v1382 = vadd.f32 0.0, %v1381
        %1383 = vmatmul.bf16.gmra.mxu0 %v868
        %v1384 = vpop.f32.mrf.mxu0
        %v1385 = vadd.f32 0.0, %v1384
        %v1386 = vpop.f32.mrf.mxu0
        %v1387 = vadd.f32 0.0, %v1386
        %1388 = vmatmul.bf16.gmra.mxu0 %v869
        %v1389 = vpop.f32.mrf.mxu0
        %v1390 = vadd.f32 0.0, %v1389
        %v1391 = vpop.f32.mrf.mxu0
        %v1392 = vadd.f32 0.0, %v1391
        %1393 = vmatmul.bf16.gmra.mxu0 %v870
        %v1394 = vpop.f32.mrf.mxu0
        %v1395 = vadd.f32 0.0, %v1394
        %v1396 = vpop.f32.mrf.mxu0
        %v1397 = vadd.f32 0.0, %v1396
        %1398 = vmatmul.bf16.gmra.mxu0 %v871
        %v1399 = vpop.f32.mrf.mxu0
        %v1400 = vadd.f32 0.0, %v1399
        %v1401 = vpop.f32.mrf.mxu0
        %v1402 = vadd.f32 0.0, %v1401
        %1403 = vmatmul.bf16.gmra.mxu0 %v872
        %v1404 = vpop.f32.mrf.mxu0
        %v1405 = vadd.f32 0.0, %v1404
        %v1406 = vpop.f32.mrf.mxu0
        %v1407 = vadd.f32 0.0, %v1406
        %1408 = vmatmul.bf16.gmra.mxu0 %v873
        %v1409 = vpop.f32.mrf.mxu0
        %v1410 = vadd.f32 0.0, %v1409
        %v1411 = vpop.f32.mrf.mxu0
        %v1412 = vadd.f32 0.0, %v1411
        %1413 = vmatmul.bf16.gmra.mxu0 %v874
        %v1414 = vpop.f32.mrf.mxu0
        %v1415 = vadd.f32 0.0, %v1414
        %v1416 = vpop.f32.mrf.mxu0
        %v1417 = vadd.f32 0.0, %v1416
        %1418 = vmatmul.bf16.gmra.mxu0 %v875
        %v1419 = vpop.f32.mrf.mxu0
        %v1420 = vadd.f32 0.0, %v1419
        %v1421 = vpop.f32.mrf.mxu0
        %v1422 = vadd.f32 0.0, %v1421
        %1423 = vdwg.mxu0
        %v1424 = vxor.u32 %v1078, 2147483648
        %v1425 = vxor.u32 %v1167, 2147483648
        %v1426 = vxor.u32 %v1256, 2147483648
        %v1427 = vxor.u32 %v1345, 2147483648
        %v1428 = vxor.u32 %v1080, 2147483648
        %v1429 = vxor.u32 %v1169, 2147483648
        %v1430 = vxor.u32 %v1258, 2147483648
        %v1431 = vxor.u32 %v1347, 2147483648
        %v1432 = vxor.u32 %v1083, 2147483648
        %v1433 = vxor.u32 %v1172, 2147483648
        %v1434 = vxor.u32 %v1261, 2147483648
        %v1435 = vxor.u32 %v1350, 2147483648
        %v1436 = vxor.u32 %v1085, 2147483648
        %v1437 = vxor.u32 %v1174, 2147483648
        %v1438 = vxor.u32 %v1263, 2147483648
        %v1439 = vxor.u32 %v1352, 2147483648
        %v1440 = vxor.u32 %v1088, 2147483648
        %v1441 = vxor.u32 %v1177, 2147483648
        %v1442 = vxor.u32 %v1266, 2147483648
        %v1443 = vxor.u32 %v1355, 2147483648
        %v1444 = vxor.u32 %v1090, 2147483648
        %v1445 = vxor.u32 %v1179, 2147483648
        %v1446 = vxor.u32 %v1268, 2147483648
        %v1447 = vxor.u32 %v1357, 2147483648
        %v1448 = vxor.u32 %v1093, 2147483648
        %v1449 = vxor.u32 %v1182, 2147483648
        %v1450 = vxor.u32 %v1271, 2147483648
        %v1451 = vxor.u32 %v1360, 2147483648
        %v1452 = vxor.u32 %v1095, 2147483648
        %v1453 = vxor.u32 %v1184, 2147483648
        %v1454 = vxor.u32 %v1273, 2147483648
        %v1455 = vxor.u32 %v1362, 2147483648
        %v1456 = vxor.u32 %v1098, 2147483648
        %v1457 = vxor.u32 %v1187, 2147483648
        %v1458 = vxor.u32 %v1276, 2147483648
        %v1459 = vxor.u32 %v1365, 2147483648
        %v1460 = vxor.u32 %v1100, 2147483648
        %v1461 = vxor.u32 %v1189, 2147483648
        %v1462 = vxor.u32 %v1278, 2147483648
        %v1463 = vxor.u32 %v1367, 2147483648
        %v1464 = vxor.u32 %v1103, 2147483648
        %v1465 = vxor.u32 %v1192, 2147483648
        %v1466 = vxor.u32 %v1281, 2147483648
        %v1467 = vxor.u32 %v1370, 2147483648
        %v1468 = vxor.u32 %v1105, 2147483648
        %v1469 = vxor.u32 %v1194, 2147483648
        %v1470 = vxor.u32 %v1283, 2147483648
        %v1471 = vxor.u32 %v1372, 2147483648
        %v1472 = vxor.u32 %v1108, 2147483648
        %v1473 = vxor.u32 %v1197, 2147483648
        %v1474 = vxor.u32 %v1286, 2147483648
        %v1475 = vxor.u32 %v1375, 2147483648
        %v1476 = vxor.u32 %v1110, 2147483648
        %v1477 = vxor.u32 %v1199, 2147483648
        %v1478 = vxor.u32 %v1288, 2147483648
        %v1479 = vxor.u32 %v1377, 2147483648
        %v1480 = vxor.u32 %v1113, 2147483648
        %v1481 = vxor.u32 %v1202, 2147483648
        %v1482 = vxor.u32 %v1291, 2147483648
        %v1483 = vxor.u32 %v1380, 2147483648
        %v1484 = vxor.u32 %v1115, 2147483648
        %v1485 = vxor.u32 %v1204, 2147483648
        %v1486 = vxor.u32 %v1293, 2147483648
        %v1487 = vxor.u32 %v1382, 2147483648
        %v1488 = vxor.u32 %v1118, 2147483648
        %v1489 = vxor.u32 %v1207, 2147483648
        %v1490 = vxor.u32 %v1296, 2147483648
        %v1491 = vxor.u32 %v1385, 2147483648
        %v1492 = vxor.u32 %v1120, 2147483648
        %v1493 = vxor.u32 %v1209, 2147483648
        %v1494 = vxor.u32 %v1298, 2147483648
        %v1495 = vxor.u32 %v1387, 2147483648
        %v1496 = vxor.u32 %v1123, 2147483648
        %v1497 = vxor.u32 %v1212, 2147483648
        %v1498 = vxor.u32 %v1301, 2147483648
        %v1499 = vxor.u32 %v1390, 2147483648
        %v1500 = vxor.u32 %v1125, 2147483648
        %v1501 = vxor.u32 %v1214, 2147483648
        %v1502 = vxor.u32 %v1303, 2147483648
        %v1503 = vxor.u32 %v1392, 2147483648
        %v1504 = vxor.u32 %v1128, 2147483648
        %v1505 = vxor.u32 %v1217, 2147483648
        %v1506 = vxor.u32 %v1306, 2147483648
        %v1507 = vxor.u32 %v1395, 2147483648
        %v1508 = vxor.u32 %v1130, 2147483648
        %v1509 = vxor.u32 %v1219, 2147483648
        %v1510 = vxor.u32 %v1308, 2147483648
        %v1511 = vxor.u32 %v1397, 2147483648
        %v1512 = vxor.u32 %v1133, 2147483648
        %v1513 = vxor.u32 %v1222, 2147483648
        %v1514 = vxor.u32 %v1311, 2147483648
        %v1515 = vxor.u32 %v1400, 2147483648
        %v1516 = vxor.u32 %v1135, 2147483648
        %v1517 = vxor.u32 %v1224, 2147483648
        %v1518 = vxor.u32 %v1313, 2147483648
        %v1519 = vxor.u32 %v1402, 2147483648
        %v1520 = vxor.u32 %v1138, 2147483648
        %v1521 = vxor.u32 %v1227, 2147483648
        %v1522 = vxor.u32 %v1316, 2147483648
        %v1523 = vxor.u32 %v1405, 2147483648
        %v1524 = vxor.u32 %v1140, 2147483648
        %v1525 = vxor.u32 %v1229, 2147483648
        %v1526 = vxor.u32 %v1318, 2147483648
        %v1527 = vxor.u32 %v1407, 2147483648
        %v1528 = vxor.u32 %v1143, 2147483648
        %v1529 = vxor.u32 %v1232, 2147483648
        %v1530 = vxor.u32 %v1321, 2147483648
        %v1531 = vxor.u32 %v1410, 2147483648
        %v1532 = vxor.u32 %v1145, 2147483648
        %v1533 = vxor.u32 %v1234, 2147483648
        %v1534 = vxor.u32 %v1323, 2147483648
        %v1535 = vxor.u32 %v1412, 2147483648
        %v1536 = vxor.u32 %v1148, 2147483648
        %v1537 = vxor.u32 %v1237, 2147483648
        %v1538 = vxor.u32 %v1326, 2147483648
        %v1539 = vxor.u32 %v1415, 2147483648
        %v1540 = vxor.u32 %v1150, 2147483648
        %v1541 = vxor.u32 %v1239, 2147483648
        %v1542 = vxor.u32 %v1328, 2147483648
        %v1543 = vxor.u32 %v1417, 2147483648
        %v1544 = vxor.u32 %v1153, 2147483648
        %v1545 = vxor.u32 %v1242, 2147483648
        %v1546 = vxor.u32 %v1331, 2147483648
        %v1547 = vxor.u32 %v1420, 2147483648
        %v1548 = vxor.u32 %v1155, 2147483648
        %v1549 = vxor.u32 %v1244, 2147483648
        %v1550 = vxor.u32 %v1333, 2147483648
        %v1551 = vxor.u32 %v1422, 2147483648
        %v1552 = vmul.f32 %v1424, 1.442695
        %v1553 = vpow.pop %v1552
        %v1554 = vmul.f32 %v1425, 1.442695
        %v1555 = vpow.pop %v1554
        %v1556 = vmul.f32 %v1426, 1.442695
        %v1557 = vpow.pop %v1556
        %v1558 = vmul.f32 %v1427, 1.442695
        %v1559 = vpow.pop %v1558
        %v1560 = vmul.f32 %v1428, 1.442695
        %v1561 = vpow.pop %v1560
        %v1562 = vmul.f32 %v1429, 1.442695
        %v1563 = vpow.pop %v1562
        %v1564 = vmul.f32 %v1430, 1.442695
        %v1565 = vpow.pop %v1564
        %v1566 = vmul.f32 %v1431, 1.442695
        %v1567 = vpow.pop %v1566
        %v1568 = vmul.f32 %v1432, 1.442695
        %v1569 = vpow.pop %v1568
        %v1570 = vmul.f32 %v1433, 1.442695
        %v1571 = vpow.pop %v1570
        %v1572 = vmul.f32 %v1434, 1.442695
        %v1573 = vpow.pop %v1572
        %v1574 = vmul.f32 %v1435, 1.442695
        %v1575 = vpow.pop %v1574
        %v1576 = vmul.f32 %v1436, 1.442695
        %v1577 = vpow.pop %v1576
        %v1578 = vmul.f32 %v1437, 1.442695
        %v1579 = vpow.pop %v1578
        %v1580 = vmul.f32 %v1438, 1.442695
        %v1581 = vpow.pop %v1580
        %v1582 = vmul.f32 %v1439, 1.442695
        %v1583 = vpow.pop %v1582
        %v1584 = vmul.f32 %v1440, 1.442695
        %v1585 = vpow.pop %v1584
        %v1586 = vmul.f32 %v1441, 1.442695
        %v1587 = vpow.pop %v1586
        %v1588 = vmul.f32 %v1442, 1.442695
        %v1589 = vpow.pop %v1588
        %v1590 = vmul.f32 %v1443, 1.442695
        %v1591 = vpow.pop %v1590
        %v1592 = vmul.f32 %v1444, 1.442695
        %v1593 = vpow.pop %v1592
        %v1594 = vmul.f32 %v1445, 1.442695
        %v1595 = vpow.pop %v1594
        %v1596 = vmul.f32 %v1446, 1.442695
        %v1597 = vpow.pop %v1596
        %v1598 = vmul.f32 %v1447, 1.442695
        %v1599 = vpow.pop %v1598
        %v1600 = vmul.f32 %v1448, 1.442695
        %v1601 = vpow.pop %v1600
        %v1602 = vmul.f32 %v1449, 1.442695
        %v1603 = vpow.pop %v1602
        %v1604 = vmul.f32 %v1450, 1.442695
        %v1605 = vpow.pop %v1604
        %v1606 = vmul.f32 %v1451, 1.442695
        %v1607 = vpow.pop %v1606
        %v1608 = vmul.f32 %v1452, 1.442695
        %v1609 = vpow.pop %v1608
        %v1610 = vmul.f32 %v1453, 1.442695
        %v1611 = vpow.pop %v1610
        %v1612 = vmul.f32 %v1454, 1.442695
        %v1613 = vpow.pop %v1612
        %v1614 = vmul.f32 %v1455, 1.442695
        %v1615 = vpow.pop %v1614
        %v1616 = vmul.f32 %v1456, 1.442695
        %v1617 = vpow.pop %v1616
        %v1618 = vmul.f32 %v1457, 1.442695
        %v1619 = vpow.pop %v1618
        %v1620 = vmul.f32 %v1458, 1.442695
        %v1621 = vpow.pop %v1620
        %v1622 = vmul.f32 %v1459, 1.442695
        %v1623 = vpow.pop %v1622
        %v1624 = vmul.f32 %v1460, 1.442695
        %v1625 = vpow.pop %v1624
        %v1626 = vmul.f32 %v1461, 1.442695
        %v1627 = vpow.pop %v1626
        %v1628 = vmul.f32 %v1462, 1.442695
        %v1629 = vpow.pop %v1628
        %v1630 = vmul.f32 %v1463, 1.442695
        %v1631 = vpow.pop %v1630
        %v1632 = vmul.f32 %v1464, 1.442695
        %v1633 = vpow.pop %v1632
        %v1634 = vmul.f32 %v1465, 1.442695
        %v1635 = vpow.pop %v1634
        %v1636 = vmul.f32 %v1466, 1.442695
        %v1637 = vpow.pop %v1636
        %v1638 = vmul.f32 %v1467, 1.442695
        %v1639 = vpow.pop %v1638
        %v1640 = vmul.f32 %v1468, 1.442695
        %v1641 = vpow.pop %v1640
        %v1642 = vmul.f32 %v1469, 1.442695
        %v1643 = vpow.pop %v1642
        %v1644 = vmul.f32 %v1470, 1.442695
        %v1645 = vpow.pop %v1644
        %v1646 = vmul.f32 %v1471, 1.442695
        %v1647 = vpow.pop %v1646
        %v1648 = vmul.f32 %v1472, 1.442695
        %v1649 = vpow.pop %v1648
        %v1650 = vmul.f32 %v1473, 1.442695
        %v1651 = vpow.pop %v1650
        %v1652 = vmul.f32 %v1474, 1.442695
        %v1653 = vpow.pop %v1652
        %v1654 = vmul.f32 %v1475, 1.442695
        %v1655 = vpow.pop %v1654
        %v1656 = vmul.f32 %v1476, 1.442695
        %v1657 = vpow.pop %v1656
        %v1658 = vmul.f32 %v1477, 1.442695
        %v1659 = vpow.pop %v1658
        %v1660 = vmul.f32 %v1478, 1.442695
        %v1661 = vpow.pop %v1660
        %v1662 = vmul.f32 %v1479, 1.442695
        %v1663 = vpow.pop %v1662
        %v1664 = vmul.f32 %v1480, 1.442695
        %v1665 = vpow.pop %v1664
        %v1666 = vmul.f32 %v1481, 1.442695
        %v1667 = vpow.pop %v1666
        %v1668 = vmul.f32 %v1482, 1.442695
        %v1669 = vpow.pop %v1668
        %v1670 = vmul.f32 %v1483, 1.442695
        %v1671 = vpow.pop %v1670
        %v1672 = vmul.f32 %v1484, 1.442695
        %v1673 = vpow.pop %v1672
        %v1674 = vmul.f32 %v1485, 1.442695
        %v1675 = vpow.pop %v1674
        %v1676 = vmul.f32 %v1486, 1.442695
        %v1677 = vpow.pop %v1676
        %v1678 = vmul.f32 %v1487, 1.442695
        %v1679 = vpow.pop %v1678
        %v1680 = vmul.f32 %v1488, 1.442695
        %v1681 = vpow.pop %v1680
        %v1682 = vmul.f32 %v1489, 1.442695
        %v1683 = vpow.pop %v1682
        %v1684 = vmul.f32 %v1490, 1.442695
        %v1685 = vpow.pop %v1684
        %v1686 = vmul.f32 %v1491, 1.442695
        %v1687 = vpow.pop %v1686
        %v1688 = vmul.f32 %v1492, 1.442695
        %v1689 = vpow.pop %v1688
        %v1690 = vmul.f32 %v1493, 1.442695
        %v1691 = vpow.pop %v1690
        %v1692 = vmul.f32 %v1494, 1.442695
        %v1693 = vpow.pop %v1692
        %v1694 = vmul.f32 %v1495, 1.442695
        %v1695 = vpow.pop %v1694
        %v1696 = vmul.f32 %v1496, 1.442695
        %v1697 = vpow.pop %v1696
        %v1698 = vmul.f32 %v1497, 1.442695
        %v1699 = vpow.pop %v1698
        %v1700 = vmul.f32 %v1498, 1.442695
        %v1701 = vpow.pop %v1700
        %v1702 = vmul.f32 %v1499, 1.442695
        %v1703 = vpow.pop %v1702
        %v1704 = vmul.f32 %v1500, 1.442695
        %v1705 = vpow.pop %v1704
        %v1706 = vmul.f32 %v1501, 1.442695
        %v1707 = vpow.pop %v1706
        %v1708 = vmul.f32 %v1502, 1.442695
        %v1709 = vpow.pop %v1708
        %v1710 = vmul.f32 %v1503, 1.442695
        %v1711 = vpow.pop %v1710
        %v1712 = vmul.f32 %v1504, 1.442695
        %v1713 = vpow.pop %v1712
        %v1714 = vmul.f32 %v1505, 1.442695
        %v1715 = vpow.pop %v1714
        %v1716 = vmul.f32 %v1506, 1.442695
        %v1717 = vpow.pop %v1716
        %v1718 = vmul.f32 %v1507, 1.442695
        %v1719 = vpow.pop %v1718
        %v1720 = vmul.f32 %v1508, 1.442695
        %v1721 = vpow.pop %v1720
        %v1722 = vmul.f32 %v1509, 1.442695
        %v1723 = vpow.pop %v1722
        %v1724 = vmul.f32 %v1510, 1.442695
        %v1725 = vpow.pop %v1724
        %v1726 = vmul.f32 %v1511, 1.442695
        %v1727 = vpow.pop %v1726
        %v1728 = vmul.f32 %v1512, 1.442695
        %v1729 = vpow.pop %v1728
        %v1730 = vmul.f32 %v1513, 1.442695
        %v1731 = vpow.pop %v1730
        %v1732 = vmul.f32 %v1514, 1.442695
        %v1733 = vpow.pop %v1732
        %v1734 = vmul.f32 %v1515, 1.442695
        %v1735 = vpow.pop %v1734
        %v1736 = vmul.f32 %v1516, 1.442695
        %v1737 = vpow.pop %v1736
        %v1738 = vmul.f32 %v1517, 1.442695
        %v1739 = vpow.pop %v1738
        %v1740 = vmul.f32 %v1518, 1.442695
        %v1741 = vpow.pop %v1740
        %v1742 = vmul.f32 %v1519, 1.442695
        %v1743 = vpow.pop %v1742
        %v1744 = vmul.f32 %v1520, 1.442695
        %v1745 = vpow.pop %v1744
        %v1746 = vmul.f32 %v1521, 1.442695
        %v1747 = vpow.pop %v1746
        %v1748 = vmul.f32 %v1522, 1.442695
        %v1749 = vpow.pop %v1748
        %v1750 = vmul.f32 %v1523, 1.442695
        %v1751 = vpow.pop %v1750
        %v1752 = vmul.f32 %v1524, 1.442695
        %v1753 = vpow.pop %v1752
        %v1754 = vmul.f32 %v1525, 1.442695
        %v1755 = vpow.pop %v1754
        %v1756 = vmul.f32 %v1526, 1.442695
        %v1757 = vpow.pop %v1756
        %v1758 = vmul.f32 %v1527, 1.442695
        %v1759 = vpow.pop %v1758
        %v1760 = vmul.f32 %v1528, 1.442695
        %v1761 = vpow.pop %v1760
        %v1762 = vmul.f32 %v1529, 1.442695
        %v1763 = vpow.pop %v1762
        %v1764 = vmul.f32 %v1530, 1.442695
        %v1765 = vpow.pop %v1764
        %v1766 = vmul.f32 %v1531, 1.442695
        %v1767 = vpow.pop %v1766
        %v1768 = vmul.f32 %v1532, 1.442695
        %v1769 = vpow.pop %v1768
        %v1770 = vmul.f32 %v1533, 1.442695
        %v1771 = vpow.pop %v1770
        %v1772 = vmul.f32 %v1534, 1.442695
        %v1773 = vpow.pop %v1772
        %v1774 = vmul.f32 %v1535, 1.442695
        %v1775 = vpow.pop %v1774
        %v1776 = vmul.f32 %v1536, 1.442695
        %v1777 = vpow.pop %v1776
        %v1778 = vmul.f32 %v1537, 1.442695
        %v1779 = vpow.pop %v1778
        %v1780 = vmul.f32 %v1538, 1.442695
        %v1781 = vpow.pop %v1780
        %v1782 = vmul.f32 %v1539, 1.442695
        %v1783 = vpow.pop %v1782
        %v1784 = vmul.f32 %v1540, 1.442695
        %v1785 = vpow.pop %v1784
        %v1786 = vmul.f32 %v1541, 1.442695
        %v1787 = vpow.pop %v1786
        %v1788 = vmul.f32 %v1542, 1.442695
        %v1789 = vpow.pop %v1788
        %v1790 = vmul.f32 %v1543, 1.442695
        %v1791 = vpow.pop %v1790
        %v1792 = vmul.f32 %v1544, 1.442695
        %v1793 = vpow.pop %v1792
        %v1794 = vmul.f32 %v1545, 1.442695
        %v1795 = vpow.pop %v1794
        %v1796 = vmul.f32 %v1546, 1.442695
        %v1797 = vpow.pop %v1796
        %v1798 = vmul.f32 %v1547, 1.442695
        %v1799 = vpow.pop %v1798
        %v1800 = vmul.f32 %v1548, 1.442695
        %v1801 = vpow.pop %v1800
        %v1802 = vmul.f32 %v1549, 1.442695
        %v1803 = vpow.pop %v1802
        %v1804 = vmul.f32 %v1550, 1.442695
        %v1805 = vpow.pop %v1804
        %v1806 = vmul.f32 %v1551, 1.442695
        %v1807 = vpow.pop %v1806
        %v1808 = vadd.f32 %v1553, 1.0
        %v1809 = vadd.f32 %v1555, 1.0
        %v1810 = vadd.f32 %v1557, 1.0
        %v1811 = vadd.f32 %v1559, 1.0
        %v1812 = vadd.f32 %v1561, 1.0
        %v1813 = vadd.f32 %v1563, 1.0
        %v1814 = vadd.f32 %v1565, 1.0
        %v1815 = vadd.f32 %v1567, 1.0
        %v1816 = vadd.f32 %v1569, 1.0
        %v1817 = vadd.f32 %v1571, 1.0
        %v1818 = vadd.f32 %v1573, 1.0
        %v1819 = vadd.f32 %v1575, 1.0
        %v1820 = vadd.f32 %v1577, 1.0
        %v1821 = vadd.f32 %v1579, 1.0
        %v1822 = vadd.f32 %v1581, 1.0
        %v1823 = vadd.f32 %v1583, 1.0
        %v1824 = vadd.f32 %v1585, 1.0
        %v1825 = vadd.f32 %v1587, 1.0
        %v1826 = vadd.f32 %v1589, 1.0
        %v1827 = vadd.f32 %v1591, 1.0
        %v1828 = vadd.f32 %v1593, 1.0
        %v1829 = vadd.f32 %v1595, 1.0
        %v1830 = vadd.f32 %v1597, 1.0
        %v1831 = vadd.f32 %v1599, 1.0
        %v1832 = vadd.f32 %v1601, 1.0
        %v1833 = vadd.f32 %v1603, 1.0
        %v1834 = vadd.f32 %v1605, 1.0
        %v1835 = vadd.f32 %v1607, 1.0
        %v1836 = vadd.f32 %v1609, 1.0
        %v1837 = vadd.f32 %v1611, 1.0
        %v1838 = vadd.f32 %v1613, 1.0
        %v1839 = vadd.f32 %v1615, 1.0
        %v1840 = vadd.f32 %v1617, 1.0
        %v1841 = vadd.f32 %v1619, 1.0
        %v1842 = vadd.f32 %v1621, 1.0
        %v1843 = vadd.f32 %v1623, 1.0
        %v1844 = vadd.f32 %v1625, 1.0
        %v1845 = vadd.f32 %v1627, 1.0
        %v1846 = vadd.f32 %v1629, 1.0
        %v1847 = vadd.f32 %v1631, 1.0
        %v1848 = vadd.f32 %v1633, 1.0
        %v1849 = vadd.f32 %v1635, 1.0
        %v1850 = vadd.f32 %v1637, 1.0
        %v1851 = vadd.f32 %v1639, 1.0
        %v1852 = vadd.f32 %v1641, 1.0
        %v1853 = vadd.f32 %v1643, 1.0
        %v1854 = vadd.f32 %v1645, 1.0
        %v1855 = vadd.f32 %v1647, 1.0
        %v1856 = vadd.f32 %v1649, 1.0
        %v1857 = vadd.f32 %v1651, 1.0
        %v1858 = vadd.f32 %v1653, 1.0
        %v1859 = vadd.f32 %v1655, 1.0
        %v1860 = vadd.f32 %v1657, 1.0
        %v1861 = vadd.f32 %v1659, 1.0
        %v1862 = vadd.f32 %v1661, 1.0
        %v1863 = vadd.f32 %v1663, 1.0
        %v1864 = vadd.f32 %v1665, 1.0
        %v1865 = vadd.f32 %v1667, 1.0
        %v1866 = vadd.f32 %v1669, 1.0
        %v1867 = vadd.f32 %v1671, 1.0
        %v1868 = vadd.f32 %v1673, 1.0
        %v1869 = vadd.f32 %v1675, 1.0
        %v1870 = vadd.f32 %v1677, 1.0
        %v1871 = vadd.f32 %v1679, 1.0
        %v1872 = vadd.f32 %v1681, 1.0
        %v1873 = vadd.f32 %v1683, 1.0
        %v1874 = vadd.f32 %v1685, 1.0
        %v1875 = vadd.f32 %v1687, 1.0
        %v1876 = vadd.f32 %v1689, 1.0
        %v1877 = vadd.f32 %v1691, 1.0
        %v1878 = vadd.f32 %v1693, 1.0
        %v1879 = vadd.f32 %v1695, 1.0
        %v1880 = vadd.f32 %v1697, 1.0
        %v1881 = vadd.f32 %v1699, 1.0
        %v1882 = vadd.f32 %v1701, 1.0
        %v1883 = vadd.f32 %v1703, 1.0
        %v1884 = vadd.f32 %v1705, 1.0
        %v1885 = vadd.f32 %v1707, 1.0
        %v1886 = vadd.f32 %v1709, 1.0
        %v1887 = vadd.f32 %v1711, 1.0
        %v1888 = vadd.f32 %v1713, 1.0
        %v1889 = vadd.f32 %v1715, 1.0
        %v1890 = vadd.f32 %v1717, 1.0
        %v1891 = vadd.f32 %v1719, 1.0
        %v1892 = vadd.f32 %v1721, 1.0
        %v1893 = vadd.f32 %v1723, 1.0
        %v1894 = vadd.f32 %v1725, 1.0
        %v1895 = vadd.f32 %v1727, 1.0
        %v1896 = vadd.f32 %v1729, 1.0
        %v1897 = vadd.f32 %v1731, 1.0
        %v1898 = vadd.f32 %v1733, 1.0
        %v1899 = vadd.f32 %v1735, 1.0
        %v1900 = vadd.f32 %v1737, 1.0
        %v1901 = vadd.f32 %v1739, 1.0
        %v1902 = vadd.f32 %v1741, 1.0
        %v1903 = vadd.f32 %v1743, 1.0
        %v1904 = vadd.f32 %v1745, 1.0
        %v1905 = vadd.f32 %v1747, 1.0
        %v1906 = vadd.f32 %v1749, 1.0
        %v1907 = vadd.f32 %v1751, 1.0
        %v1908 = vadd.f32 %v1753, 1.0
        %v1909 = vadd.f32 %v1755, 1.0
        %v1910 = vadd.f32 %v1757, 1.0
        %v1911 = vadd.f32 %v1759, 1.0
        %v1912 = vadd.f32 %v1761, 1.0
        %v1913 = vadd.f32 %v1763, 1.0
        %v1914 = vadd.f32 %v1765, 1.0
        %v1915 = vadd.f32 %v1767, 1.0
        %v1916 = vadd.f32 %v1769, 1.0
        %v1917 = vadd.f32 %v1771, 1.0
        %v1918 = vadd.f32 %v1773, 1.0
        %v1919 = vadd.f32 %v1775, 1.0
        %v1920 = vadd.f32 %v1777, 1.0
        %v1921 = vadd.f32 %v1779, 1.0
        %v1922 = vadd.f32 %v1781, 1.0
        %v1923 = vadd.f32 %v1783, 1.0
        %v1924 = vadd.f32 %v1785, 1.0
        %v1925 = vadd.f32 %v1787, 1.0
        %v1926 = vadd.f32 %v1789, 1.0
        %v1927 = vadd.f32 %v1791, 1.0
        %v1928 = vadd.f32 %v1793, 1.0
        %v1929 = vadd.f32 %v1795, 1.0
        %v1930 = vadd.f32 %v1797, 1.0
        %v1931 = vadd.f32 %v1799, 1.0
        %v1932 = vadd.f32 %v1801, 1.0
        %v1933 = vadd.f32 %v1803, 1.0
        %v1934 = vadd.f32 %v1805, 1.0
        %v1935 = vadd.f32 %v1807, 1.0
        %v1936 = vrcp.pop %v1808
        %v1937 = vmul.f32 %v1808, %v1936
        %v1938 = vsub.f32 1.0, %v1937
        %v1939 = vmul.f32 %v1936, %v1938
        %v1940 = vadd.f32 %v1936, %v1939
        %vm1941 = vweird.f32 %v1808
        %vm1942 = vweird.f32 %v1936
        %vm1943 = vmor %vm1941, %vm1942
        %v1944 = vsel %vm1943, %v1936, %v1940
        %v1945 = vand.u32 2147483647, %v1808
        %vm1946 = vcmp.eq.f32.partialorder %v1945, 8.507059e+37
        %v1947 = vand.u32 %v1808, 2147483648
        %v1948 = vor.u32 1.1754944e-38, %v1947
        %v1949 = vsel %vm1946, %v1948, %v1944
        %v1950 = vmul.f32 1.0, %v1949
        %v1951 = vrcp.pop %v1809
        %v1952 = vmul.f32 %v1809, %v1951
        %v1953 = vsub.f32 1.0, %v1952
        %v1954 = vmul.f32 %v1951, %v1953
        %v1955 = vadd.f32 %v1951, %v1954
        %vm1956 = vweird.f32 %v1809
        %vm1957 = vweird.f32 %v1951
        %vm1958 = vmor %vm1956, %vm1957
        %v1959 = vsel %vm1958, %v1951, %v1955
        %v1960 = vand.u32 2147483647, %v1809
        %vm1961 = vcmp.eq.f32.partialorder %v1960, 8.507059e+37
        %v1962 = vand.u32 %v1809, 2147483648
        %v1963 = vor.u32 1.1754944e-38, %v1962
        %v1964 = vsel %vm1961, %v1963, %v1959
        %v1965 = vmul.f32 1.0, %v1964
        %v1966 = vrcp.pop %v1810
        %v1967 = vmul.f32 %v1810, %v1966
        %v1968 = vsub.f32 1.0, %v1967
        %v1969 = vmul.f32 %v1966, %v1968
        %v1970 = vadd.f32 %v1966, %v1969
        %vm1971 = vweird.f32 %v1810
        %vm1972 = vweird.f32 %v1966
        %vm1973 = vmor %vm1971, %vm1972
        %v1974 = vsel %vm1973, %v1966, %v1970
        %v1975 = vand.u32 2147483647, %v1810
        %vm1976 = vcmp.eq.f32.partialorder %v1975, 8.507059e+37
        %v1977 = vand.u32 %v1810, 2147483648
        %v1978 = vor.u32 1.1754944e-38, %v1977
        %v1979 = vsel %vm1976, %v1978, %v1974
        %v1980 = vmul.f32 1.0, %v1979
        %v1981 = vrcp.pop %v1811
        %v1982 = vmul.f32 %v1811, %v1981
        %v1983 = vsub.f32 1.0, %v1982
        %v1984 = vmul.f32 %v1981, %v1983
        %v1985 = vadd.f32 %v1981, %v1984
        %vm1986 = vweird.f32 %v1811
        %vm1987 = vweird.f32 %v1981
        %vm1988 = vmor %vm1986, %vm1987
        %v1989 = vsel %vm1988, %v1981, %v1985
        %v1990 = vand.u32 2147483647, %v1811
        %vm1991 = vcmp.eq.f32.partialorder %v1990, 8.507059e+37
        %v1992 = vand.u32 %v1811, 2147483648
        %v1993 = vor.u32 1.1754944e-38, %v1992
        %v1994 = vsel %vm1991, %v1993, %v1989
        %v1995 = vmul.f32 1.0, %v1994
        %v1996 = vrcp.pop %v1812
        %v1997 = vmul.f32 %v1812, %v1996
        %v1998 = vsub.f32 1.0, %v1997
        %v1999 = vmul.f32 %v1996, %v1998
        %v2000 = vadd.f32 %v1996, %v1999
        %vm2001 = vweird.f32 %v1812
        %vm2002 = vweird.f32 %v1996
        %vm2003 = vmor %vm2001, %vm2002
        %v2004 = vsel %vm2003, %v1996, %v2000
        %v2005 = vand.u32 2147483647, %v1812
        %vm2006 = vcmp.eq.f32.partialorder %v2005, 8.507059e+37
        %v2007 = vand.u32 %v1812, 2147483648
        %v2008 = vor.u32 1.1754944e-38, %v2007
        %v2009 = vsel %vm2006, %v2008, %v2004
        %v2010 = vmul.f32 1.0, %v2009
        %v2011 = vrcp.pop %v1813
        %v2012 = vmul.f32 %v1813, %v2011
        %v2013 = vsub.f32 1.0, %v2012
        %v2014 = vmul.f32 %v2011, %v2013
        %v2015 = vadd.f32 %v2011, %v2014
        %vm2016 = vweird.f32 %v1813
        %vm2017 = vweird.f32 %v2011
        %vm2018 = vmor %vm2016, %vm2017
        %v2019 = vsel %vm2018, %v2011, %v2015
        %v2020 = vand.u32 2147483647, %v1813
        %vm2021 = vcmp.eq.f32.partialorder %v2020, 8.507059e+37
        %v2022 = vand.u32 %v1813, 2147483648
        %v2023 = vor.u32 1.1754944e-38, %v2022
        %v2024 = vsel %vm2021, %v2023, %v2019
        %v2025 = vmul.f32 1.0, %v2024
        %v2026 = vrcp.pop %v1814
        %v2027 = vmul.f32 %v1814, %v2026
        %v2028 = vsub.f32 1.0, %v2027
        %v2029 = vmul.f32 %v2026, %v2028
        %v2030 = vadd.f32 %v2026, %v2029
        %vm2031 = vweird.f32 %v1814
        %vm2032 = vweird.f32 %v2026
        %vm2033 = vmor %vm2031, %vm2032
        %v2034 = vsel %vm2033, %v2026, %v2030
        %v2035 = vand.u32 2147483647, %v1814
        %vm2036 = vcmp.eq.f32.partialorder %v2035, 8.507059e+37
        %v2037 = vand.u32 %v1814, 2147483648
        %v2038 = vor.u32 1.1754944e-38, %v2037
        %v2039 = vsel %vm2036, %v2038, %v2034
        %v2040 = vmul.f32 1.0, %v2039
        %v2041 = vrcp.pop %v1815
        %v2042 = vmul.f32 %v1815, %v2041
        %v2043 = vsub.f32 1.0, %v2042
        %v2044 = vmul.f32 %v2041, %v2043
        %v2045 = vadd.f32 %v2041, %v2044
        %vm2046 = vweird.f32 %v1815
        %vm2047 = vweird.f32 %v2041
        %vm2048 = vmor %vm2046, %vm2047
        %v2049 = vsel %vm2048, %v2041, %v2045
        %v2050 = vand.u32 2147483647, %v1815
        %vm2051 = vcmp.eq.f32.partialorder %v2050, 8.507059e+37
        %v2052 = vand.u32 %v1815, 2147483648
        %v2053 = vor.u32 1.1754944e-38, %v2052
        %v2054 = vsel %vm2051, %v2053, %v2049
        %v2055 = vmul.f32 1.0, %v2054
        %v2056 = vrcp.pop %v1816
        %v2057 = vmul.f32 %v1816, %v2056
        %v2058 = vsub.f32 1.0, %v2057
        %v2059 = vmul.f32 %v2056, %v2058
        %v2060 = vadd.f32 %v2056, %v2059
        %vm2061 = vweird.f32 %v1816
        %vm2062 = vweird.f32 %v2056
        %vm2063 = vmor %vm2061, %vm2062
        %v2064 = vsel %vm2063, %v2056, %v2060
        %v2065 = vand.u32 2147483647, %v1816
        %vm2066 = vcmp.eq.f32.partialorder %v2065, 8.507059e+37
        %v2067 = vand.u32 %v1816, 2147483648
        %v2068 = vor.u32 1.1754944e-38, %v2067
        %v2069 = vsel %vm2066, %v2068, %v2064
        %v2070 = vmul.f32 1.0, %v2069
        %v2071 = vrcp.pop %v1817
        %v2072 = vmul.f32 %v1817, %v2071
        %v2073 = vsub.f32 1.0, %v2072
        %v2074 = vmul.f32 %v2071, %v2073
        %v2075 = vadd.f32 %v2071, %v2074
        %vm2076 = vweird.f32 %v1817
        %vm2077 = vweird.f32 %v2071
        %vm2078 = vmor %vm2076, %vm2077
        %v2079 = vsel %vm2078, %v2071, %v2075
        %v2080 = vand.u32 2147483647, %v1817
        %vm2081 = vcmp.eq.f32.partialorder %v2080, 8.507059e+37
        %v2082 = vand.u32 %v1817, 2147483648
        %v2083 = vor.u32 1.1754944e-38, %v2082
        %v2084 = vsel %vm2081, %v2083, %v2079
        %v2085 = vmul.f32 1.0, %v2084
        %v2086 = vrcp.pop %v1818
        %v2087 = vmul.f32 %v1818, %v2086
        %v2088 = vsub.f32 1.0, %v2087
        %v2089 = vmul.f32 %v2086, %v2088
        %v2090 = vadd.f32 %v2086, %v2089
        %vm2091 = vweird.f32 %v1818
        %vm2092 = vweird.f32 %v2086
        %vm2093 = vmor %vm2091, %vm2092
        %v2094 = vsel %vm2093, %v2086, %v2090
        %v2095 = vand.u32 2147483647, %v1818
        %vm2096 = vcmp.eq.f32.partialorder %v2095, 8.507059e+37
        %v2097 = vand.u32 %v1818, 2147483648
        %v2098 = vor.u32 1.1754944e-38, %v2097
        %v2099 = vsel %vm2096, %v2098, %v2094
        %v2100 = vmul.f32 1.0, %v2099
        %v2101 = vrcp.pop %v1819
        %v2102 = vmul.f32 %v1819, %v2101
        %v2103 = vsub.f32 1.0, %v2102
        %v2104 = vmul.f32 %v2101, %v2103
        %v2105 = vadd.f32 %v2101, %v2104
        %vm2106 = vweird.f32 %v1819
        %vm2107 = vweird.f32 %v2101
        %vm2108 = vmor %vm2106, %vm2107
        %v2109 = vsel %vm2108, %v2101, %v2105
        %v2110 = vand.u32 2147483647, %v1819
        %vm2111 = vcmp.eq.f32.partialorder %v2110, 8.507059e+37
        %v2112 = vand.u32 %v1819, 2147483648
        %v2113 = vor.u32 1.1754944e-38, %v2112
        %v2114 = vsel %vm2111, %v2113, %v2109
        %v2115 = vmul.f32 1.0, %v2114
        %v2116 = vrcp.pop %v1820
        %v2117 = vmul.f32 %v1820, %v2116
        %v2118 = vsub.f32 1.0, %v2117
        %v2119 = vmul.f32 %v2116, %v2118
        %v2120 = vadd.f32 %v2116, %v2119
        %vm2121 = vweird.f32 %v1820
        %vm2122 = vweird.f32 %v2116
        %vm2123 = vmor %vm2121, %vm2122
        %v2124 = vsel %vm2123, %v2116, %v2120
        %v2125 = vand.u32 2147483647, %v1820
        %vm2126 = vcmp.eq.f32.partialorder %v2125, 8.507059e+37
        %v2127 = vand.u32 %v1820, 2147483648
        %v2128 = vor.u32 1.1754944e-38, %v2127
        %v2129 = vsel %vm2126, %v2128, %v2124
        %v2130 = vmul.f32 1.0, %v2129
        %v2131 = vrcp.pop %v1821
        %v2132 = vmul.f32 %v1821, %v2131
        %v2133 = vsub.f32 1.0, %v2132
        %v2134 = vmul.f32 %v2131, %v2133
        %v2135 = vadd.f32 %v2131, %v2134
        %vm2136 = vweird.f32 %v1821
        %vm2137 = vweird.f32 %v2131
        %vm2138 = vmor %vm2136, %vm2137
        %v2139 = vsel %vm2138, %v2131, %v2135
        %v2140 = vand.u32 2147483647, %v1821
        %vm2141 = vcmp.eq.f32.partialorder %v2140, 8.507059e+37
        %v2142 = vand.u32 %v1821, 2147483648
        %v2143 = vor.u32 1.1754944e-38, %v2142
        %v2144 = vsel %vm2141, %v2143, %v2139
        %v2145 = vmul.f32 1.0, %v2144
        %v2146 = vrcp.pop %v1822
        %v2147 = vmul.f32 %v1822, %v2146
        %v2148 = vsub.f32 1.0, %v2147
        %v2149 = vmul.f32 %v2146, %v2148
        %v2150 = vadd.f32 %v2146, %v2149
        %vm2151 = vweird.f32 %v1822
        %vm2152 = vweird.f32 %v2146
        %vm2153 = vmor %vm2151, %vm2152
        %v2154 = vsel %vm2153, %v2146, %v2150
        %v2155 = vand.u32 2147483647, %v1822
        %vm2156 = vcmp.eq.f32.partialorder %v2155, 8.507059e+37
        %v2157 = vand.u32 %v1822, 2147483648
        %v2158 = vor.u32 1.1754944e-38, %v2157
        %v2159 = vsel %vm2156, %v2158, %v2154
        %v2160 = vmul.f32 1.0, %v2159
        %v2161 = vrcp.pop %v1823
        %v2162 = vmul.f32 %v1823, %v2161
        %v2163 = vsub.f32 1.0, %v2162
        %v2164 = vmul.f32 %v2161, %v2163
        %v2165 = vadd.f32 %v2161, %v2164
        %vm2166 = vweird.f32 %v1823
        %vm2167 = vweird.f32 %v2161
        %vm2168 = vmor %vm2166, %vm2167
        %v2169 = vsel %vm2168, %v2161, %v2165
        %v2170 = vand.u32 2147483647, %v1823
        %vm2171 = vcmp.eq.f32.partialorder %v2170, 8.507059e+37
        %v2172 = vand.u32 %v1823, 2147483648
        %v2173 = vor.u32 1.1754944e-38, %v2172
        %v2174 = vsel %vm2171, %v2173, %v2169
        %v2175 = vmul.f32 1.0, %v2174
        %v2176 = vrcp.pop %v1824
        %v2177 = vmul.f32 %v1824, %v2176
        %v2178 = vsub.f32 1.0, %v2177
        %v2179 = vmul.f32 %v2176, %v2178
        %v2180 = vadd.f32 %v2176, %v2179
        %vm2181 = vweird.f32 %v1824
        %vm2182 = vweird.f32 %v2176
        %vm2183 = vmor %vm2181, %vm2182
        %v2184 = vsel %vm2183, %v2176, %v2180
        %v2185 = vand.u32 2147483647, %v1824
        %vm2186 = vcmp.eq.f32.partialorder %v2185, 8.507059e+37
        %v2187 = vand.u32 %v1824, 2147483648
        %v2188 = vor.u32 1.1754944e-38, %v2187
        %v2189 = vsel %vm2186, %v2188, %v2184
        %v2190 = vmul.f32 1.0, %v2189
        %v2191 = vrcp.pop %v1825
        %v2192 = vmul.f32 %v1825, %v2191
        %v2193 = vsub.f32 1.0, %v2192
        %v2194 = vmul.f32 %v2191, %v2193
        %v2195 = vadd.f32 %v2191, %v2194
        %vm2196 = vweird.f32 %v1825
        %vm2197 = vweird.f32 %v2191
        %vm2198 = vmor %vm2196, %vm2197
        %v2199 = vsel %vm2198, %v2191, %v2195
        %v2200 = vand.u32 2147483647, %v1825
        %vm2201 = vcmp.eq.f32.partialorder %v2200, 8.507059e+37
        %v2202 = vand.u32 %v1825, 2147483648
        %v2203 = vor.u32 1.1754944e-38, %v2202
        %v2204 = vsel %vm2201, %v2203, %v2199
        %v2205 = vmul.f32 1.0, %v2204
        %v2206 = vrcp.pop %v1826
        %v2207 = vmul.f32 %v1826, %v2206
        %v2208 = vsub.f32 1.0, %v2207
        %v2209 = vmul.f32 %v2206, %v2208
        %v2210 = vadd.f32 %v2206, %v2209
        %vm2211 = vweird.f32 %v1826
        %vm2212 = vweird.f32 %v2206
        %vm2213 = vmor %vm2211, %vm2212
        %v2214 = vsel %vm2213, %v2206, %v2210
        %v2215 = vand.u32 2147483647, %v1826
        %vm2216 = vcmp.eq.f32.partialorder %v2215, 8.507059e+37
        %v2217 = vand.u32 %v1826, 2147483648
        %v2218 = vor.u32 1.1754944e-38, %v2217
        %v2219 = vsel %vm2216, %v2218, %v2214
        %v2220 = vmul.f32 1.0, %v2219
        %v2221 = vrcp.pop %v1827
        %v2222 = vmul.f32 %v1827, %v2221
        %v2223 = vsub.f32 1.0, %v2222
        %v2224 = vmul.f32 %v2221, %v2223
        %v2225 = vadd.f32 %v2221, %v2224
        %vm2226 = vweird.f32 %v1827
        %vm2227 = vweird.f32 %v2221
        %vm2228 = vmor %vm2226, %vm2227
        %v2229 = vsel %vm2228, %v2221, %v2225
        %v2230 = vand.u32 2147483647, %v1827
        %vm2231 = vcmp.eq.f32.partialorder %v2230, 8.507059e+37
        %v2232 = vand.u32 %v1827, 2147483648
        %v2233 = vor.u32 1.1754944e-38, %v2232
        %v2234 = vsel %vm2231, %v2233, %v2229
        %v2235 = vmul.f32 1.0, %v2234
        %v2236 = vrcp.pop %v1828
        %v2237 = vmul.f32 %v1828, %v2236
        %v2238 = vsub.f32 1.0, %v2237
        %v2239 = vmul.f32 %v2236, %v2238
        %v2240 = vadd.f32 %v2236, %v2239
        %vm2241 = vweird.f32 %v1828
        %vm2242 = vweird.f32 %v2236
        %vm2243 = vmor %vm2241, %vm2242
        %v2244 = vsel %vm2243, %v2236, %v2240
        %v2245 = vand.u32 2147483647, %v1828
        %vm2246 = vcmp.eq.f32.partialorder %v2245, 8.507059e+37
        %v2247 = vand.u32 %v1828, 2147483648
        %v2248 = vor.u32 1.1754944e-38, %v2247
        %v2249 = vsel %vm2246, %v2248, %v2244
        %v2250 = vmul.f32 1.0, %v2249
        %v2251 = vrcp.pop %v1829
        %v2252 = vmul.f32 %v1829, %v2251
        %v2253 = vsub.f32 1.0, %v2252
        %v2254 = vmul.f32 %v2251, %v2253
        %v2255 = vadd.f32 %v2251, %v2254
        %vm2256 = vweird.f32 %v1829
        %vm2257 = vweird.f32 %v2251
        %vm2258 = vmor %vm2256, %vm2257
        %v2259 = vsel %vm2258, %v2251, %v2255
        %v2260 = vand.u32 2147483647, %v1829
        %vm2261 = vcmp.eq.f32.partialorder %v2260, 8.507059e+37
        %v2262 = vand.u32 %v1829, 2147483648
        %v2263 = vor.u32 1.1754944e-38, %v2262
        %v2264 = vsel %vm2261, %v2263, %v2259
        %v2265 = vmul.f32 1.0, %v2264
        %v2266 = vrcp.pop %v1830
        %v2267 = vmul.f32 %v1830, %v2266
        %v2268 = vsub.f32 1.0, %v2267
        %v2269 = vmul.f32 %v2266, %v2268
        %v2270 = vadd.f32 %v2266, %v2269
        %vm2271 = vweird.f32 %v1830
        %vm2272 = vweird.f32 %v2266
        %vm2273 = vmor %vm2271, %vm2272
        %v2274 = vsel %vm2273, %v2266, %v2270
        %v2275 = vand.u32 2147483647, %v1830
        %vm2276 = vcmp.eq.f32.partialorder %v2275, 8.507059e+37
        %v2277 = vand.u32 %v1830, 2147483648
        %v2278 = vor.u32 1.1754944e-38, %v2277
        %v2279 = vsel %vm2276, %v2278, %v2274
        %v2280 = vmul.f32 1.0, %v2279
        %v2281 = vrcp.pop %v1831
        %v2282 = vmul.f32 %v1831, %v2281
        %v2283 = vsub.f32 1.0, %v2282
        %v2284 = vmul.f32 %v2281, %v2283
        %v2285 = vadd.f32 %v2281, %v2284
        %vm2286 = vweird.f32 %v1831
        %vm2287 = vweird.f32 %v2281
        %vm2288 = vmor %vm2286, %vm2287
        %v2289 = vsel %vm2288, %v2281, %v2285
        %v2290 = vand.u32 2147483647, %v1831
        %vm2291 = vcmp.eq.f32.partialorder %v2290, 8.507059e+37
        %v2292 = vand.u32 %v1831, 2147483648
        %v2293 = vor.u32 1.1754944e-38, %v2292
        %v2294 = vsel %vm2291, %v2293, %v2289
        %v2295 = vmul.f32 1.0, %v2294
        %v2296 = vrcp.pop %v1832
        %v2297 = vmul.f32 %v1832, %v2296
        %v2298 = vsub.f32 1.0, %v2297
        %v2299 = vmul.f32 %v2296, %v2298
        %v2300 = vadd.f32 %v2296, %v2299
        %vm2301 = vweird.f32 %v1832
        %vm2302 = vweird.f32 %v2296
        %vm2303 = vmor %vm2301, %vm2302
        %v2304 = vsel %vm2303, %v2296, %v2300
        %v2305 = vand.u32 2147483647, %v1832
        %vm2306 = vcmp.eq.f32.partialorder %v2305, 8.507059e+37
        %v2307 = vand.u32 %v1832, 2147483648
        %v2308 = vor.u32 1.1754944e-38, %v2307
        %v2309 = vsel %vm2306, %v2308, %v2304
        %v2310 = vmul.f32 1.0, %v2309
        %v2311 = vrcp.pop %v1833
        %v2312 = vmul.f32 %v1833, %v2311
        %v2313 = vsub.f32 1.0, %v2312
        %v2314 = vmul.f32 %v2311, %v2313
        %v2315 = vadd.f32 %v2311, %v2314
        %vm2316 = vweird.f32 %v1833
        %vm2317 = vweird.f32 %v2311
        %vm2318 = vmor %vm2316, %vm2317
        %v2319 = vsel %vm2318, %v2311, %v2315
        %v2320 = vand.u32 2147483647, %v1833
        %vm2321 = vcmp.eq.f32.partialorder %v2320, 8.507059e+37
        %v2322 = vand.u32 %v1833, 2147483648
        %v2323 = vor.u32 1.1754944e-38, %v2322
        %v2324 = vsel %vm2321, %v2323, %v2319
        %v2325 = vmul.f32 1.0, %v2324
        %v2326 = vrcp.pop %v1834
        %v2327 = vmul.f32 %v1834, %v2326
        %v2328 = vsub.f32 1.0, %v2327
        %v2329 = vmul.f32 %v2326, %v2328
        %v2330 = vadd.f32 %v2326, %v2329
        %vm2331 = vweird.f32 %v1834
        %vm2332 = vweird.f32 %v2326
        %vm2333 = vmor %vm2331, %vm2332
        %v2334 = vsel %vm2333, %v2326, %v2330
        %v2335 = vand.u32 2147483647, %v1834
        %vm2336 = vcmp.eq.f32.partialorder %v2335, 8.507059e+37
        %v2337 = vand.u32 %v1834, 2147483648
        %v2338 = vor.u32 1.1754944e-38, %v2337
        %v2339 = vsel %vm2336, %v2338, %v2334
        %v2340 = vmul.f32 1.0, %v2339
        %v2341 = vrcp.pop %v1835
        %v2342 = vmul.f32 %v1835, %v2341
        %v2343 = vsub.f32 1.0, %v2342
        %v2344 = vmul.f32 %v2341, %v2343
        %v2345 = vadd.f32 %v2341, %v2344
        %vm2346 = vweird.f32 %v1835
        %vm2347 = vweird.f32 %v2341
        %vm2348 = vmor %vm2346, %vm2347
        %v2349 = vsel %vm2348, %v2341, %v2345
        %v2350 = vand.u32 2147483647, %v1835
        %vm2351 = vcmp.eq.f32.partialorder %v2350, 8.507059e+37
        %v2352 = vand.u32 %v1835, 2147483648
        %v2353 = vor.u32 1.1754944e-38, %v2352
        %v2354 = vsel %vm2351, %v2353, %v2349
        %v2355 = vmul.f32 1.0, %v2354
        %v2356 = vrcp.pop %v1836
        %v2357 = vmul.f32 %v1836, %v2356
        %v2358 = vsub.f32 1.0, %v2357
        %v2359 = vmul.f32 %v2356, %v2358
        %v2360 = vadd.f32 %v2356, %v2359
        %vm2361 = vweird.f32 %v1836
        %vm2362 = vweird.f32 %v2356
        %vm2363 = vmor %vm2361, %vm2362
        %v2364 = vsel %vm2363, %v2356, %v2360
        %v2365 = vand.u32 2147483647, %v1836
        %vm2366 = vcmp.eq.f32.partialorder %v2365, 8.507059e+37
        %v2367 = vand.u32 %v1836, 2147483648
        %v2368 = vor.u32 1.1754944e-38, %v2367
        %v2369 = vsel %vm2366, %v2368, %v2364
        %v2370 = vmul.f32 1.0, %v2369
        %v2371 = vrcp.pop %v1837
        %v2372 = vmul.f32 %v1837, %v2371
        %v2373 = vsub.f32 1.0, %v2372
        %v2374 = vmul.f32 %v2371, %v2373
        %v2375 = vadd.f32 %v2371, %v2374
        %vm2376 = vweird.f32 %v1837
        %vm2377 = vweird.f32 %v2371
        %vm2378 = vmor %vm2376, %vm2377
        %v2379 = vsel %vm2378, %v2371, %v2375
        %v2380 = vand.u32 2147483647, %v1837
        %vm2381 = vcmp.eq.f32.partialorder %v2380, 8.507059e+37
        %v2382 = vand.u32 %v1837, 2147483648
        %v2383 = vor.u32 1.1754944e-38, %v2382
        %v2384 = vsel %vm2381, %v2383, %v2379
        %v2385 = vmul.f32 1.0, %v2384
        %v2386 = vrcp.pop %v1838
        %v2387 = vmul.f32 %v1838, %v2386
        %v2388 = vsub.f32 1.0, %v2387
        %v2389 = vmul.f32 %v2386, %v2388
        %v2390 = vadd.f32 %v2386, %v2389
        %vm2391 = vweird.f32 %v1838
        %vm2392 = vweird.f32 %v2386
        %vm2393 = vmor %vm2391, %vm2392
        %v2394 = vsel %vm2393, %v2386, %v2390
        %v2395 = vand.u32 2147483647, %v1838
        %vm2396 = vcmp.eq.f32.partialorder %v2395, 8.507059e+37
        %v2397 = vand.u32 %v1838, 2147483648
        %v2398 = vor.u32 1.1754944e-38, %v2397
        %v2399 = vsel %vm2396, %v2398, %v2394
        %v2400 = vmul.f32 1.0, %v2399
        %v2401 = vrcp.pop %v1839
        %v2402 = vmul.f32 %v1839, %v2401
        %v2403 = vsub.f32 1.0, %v2402
        %v2404 = vmul.f32 %v2401, %v2403
        %v2405 = vadd.f32 %v2401, %v2404
        %vm2406 = vweird.f32 %v1839
        %vm2407 = vweird.f32 %v2401
        %vm2408 = vmor %vm2406, %vm2407
        %v2409 = vsel %vm2408, %v2401, %v2405
        %v2410 = vand.u32 2147483647, %v1839
        %vm2411 = vcmp.eq.f32.partialorder %v2410, 8.507059e+37
        %v2412 = vand.u32 %v1839, 2147483648
        %v2413 = vor.u32 1.1754944e-38, %v2412
        %v2414 = vsel %vm2411, %v2413, %v2409
        %v2415 = vmul.f32 1.0, %v2414
        %v2416 = vrcp.pop %v1840
        %v2417 = vmul.f32 %v1840, %v2416
        %v2418 = vsub.f32 1.0, %v2417
        %v2419 = vmul.f32 %v2416, %v2418
        %v2420 = vadd.f32 %v2416, %v2419
        %vm2421 = vweird.f32 %v1840
        %vm2422 = vweird.f32 %v2416
        %vm2423 = vmor %vm2421, %vm2422
        %v2424 = vsel %vm2423, %v2416, %v2420
        %v2425 = vand.u32 2147483647, %v1840
        %vm2426 = vcmp.eq.f32.partialorder %v2425, 8.507059e+37
        %v2427 = vand.u32 %v1840, 2147483648
        %v2428 = vor.u32 1.1754944e-38, %v2427
        %v2429 = vsel %vm2426, %v2428, %v2424
        %v2430 = vmul.f32 1.0, %v2429
        %v2431 = vrcp.pop %v1841
        %v2432 = vmul.f32 %v1841, %v2431
        %v2433 = vsub.f32 1.0, %v2432
        %v2434 = vmul.f32 %v2431, %v2433
        %v2435 = vadd.f32 %v2431, %v2434
        %vm2436 = vweird.f32 %v1841
        %vm2437 = vweird.f32 %v2431
        %vm2438 = vmor %vm2436, %vm2437
        %v2439 = vsel %vm2438, %v2431, %v2435
        %v2440 = vand.u32 2147483647, %v1841
        %vm2441 = vcmp.eq.f32.partialorder %v2440, 8.507059e+37
        %v2442 = vand.u32 %v1841, 2147483648
        %v2443 = vor.u32 1.1754944e-38, %v2442
        %v2444 = vsel %vm2441, %v2443, %v2439
        %v2445 = vmul.f32 1.0, %v2444
        %v2446 = vrcp.pop %v1842
        %v2447 = vmul.f32 %v1842, %v2446
        %v2448 = vsub.f32 1.0, %v2447
        %v2449 = vmul.f32 %v2446, %v2448
        %v2450 = vadd.f32 %v2446, %v2449
        %vm2451 = vweird.f32 %v1842
        %vm2452 = vweird.f32 %v2446
        %vm2453 = vmor %vm2451, %vm2452
        %v2454 = vsel %vm2453, %v2446, %v2450
        %v2455 = vand.u32 2147483647, %v1842
        %vm2456 = vcmp.eq.f32.partialorder %v2455, 8.507059e+37
        %v2457 = vand.u32 %v1842, 2147483648
        %v2458 = vor.u32 1.1754944e-38, %v2457
        %v2459 = vsel %vm2456, %v2458, %v2454
        %v2460 = vmul.f32 1.0, %v2459
        %v2461 = vrcp.pop %v1843
        %v2462 = vmul.f32 %v1843, %v2461
        %v2463 = vsub.f32 1.0, %v2462
        %v2464 = vmul.f32 %v2461, %v2463
        %v2465 = vadd.f32 %v2461, %v2464
        %vm2466 = vweird.f32 %v1843
        %vm2467 = vweird.f32 %v2461
        %vm2468 = vmor %vm2466, %vm2467
        %v2469 = vsel %vm2468, %v2461, %v2465
        %v2470 = vand.u32 2147483647, %v1843
        %vm2471 = vcmp.eq.f32.partialorder %v2470, 8.507059e+37
        %v2472 = vand.u32 %v1843, 2147483648
        %v2473 = vor.u32 1.1754944e-38, %v2472
        %v2474 = vsel %vm2471, %v2473, %v2469
        %v2475 = vmul.f32 1.0, %v2474
        %v2476 = vrcp.pop %v1844
        %v2477 = vmul.f32 %v1844, %v2476
        %v2478 = vsub.f32 1.0, %v2477
        %v2479 = vmul.f32 %v2476, %v2478
        %v2480 = vadd.f32 %v2476, %v2479
        %vm2481 = vweird.f32 %v1844
        %vm2482 = vweird.f32 %v2476
        %vm2483 = vmor %vm2481, %vm2482
        %v2484 = vsel %vm2483, %v2476, %v2480
        %v2485 = vand.u32 2147483647, %v1844
        %vm2486 = vcmp.eq.f32.partialorder %v2485, 8.507059e+37
        %v2487 = vand.u32 %v1844, 2147483648
        %v2488 = vor.u32 1.1754944e-38, %v2487
        %v2489 = vsel %vm2486, %v2488, %v2484
        %v2490 = vmul.f32 1.0, %v2489
        %v2491 = vrcp.pop %v1845
        %v2492 = vmul.f32 %v1845, %v2491
        %v2493 = vsub.f32 1.0, %v2492
        %v2494 = vmul.f32 %v2491, %v2493
        %v2495 = vadd.f32 %v2491, %v2494
        %vm2496 = vweird.f32 %v1845
        %vm2497 = vweird.f32 %v2491
        %vm2498 = vmor %vm2496, %vm2497
        %v2499 = vsel %vm2498, %v2491, %v2495
        %v2500 = vand.u32 2147483647, %v1845
        %vm2501 = vcmp.eq.f32.partialorder %v2500, 8.507059e+37
        %v2502 = vand.u32 %v1845, 2147483648
        %v2503 = vor.u32 1.1754944e-38, %v2502
        %v2504 = vsel %vm2501, %v2503, %v2499
        %v2505 = vmul.f32 1.0, %v2504
        %v2506 = vrcp.pop %v1846
        %v2507 = vmul.f32 %v1846, %v2506
        %v2508 = vsub.f32 1.0, %v2507
        %v2509 = vmul.f32 %v2506, %v2508
        %v2510 = vadd.f32 %v2506, %v2509
        %vm2511 = vweird.f32 %v1846
        %vm2512 = vweird.f32 %v2506
        %vm2513 = vmor %vm2511, %vm2512
        %v2514 = vsel %vm2513, %v2506, %v2510
        %v2515 = vand.u32 2147483647, %v1846
        %vm2516 = vcmp.eq.f32.partialorder %v2515, 8.507059e+37
        %v2517 = vand.u32 %v1846, 2147483648
        %v2518 = vor.u32 1.1754944e-38, %v2517
        %v2519 = vsel %vm2516, %v2518, %v2514
        %v2520 = vmul.f32 1.0, %v2519
        %v2521 = vrcp.pop %v1847
        %v2522 = vmul.f32 %v1847, %v2521
        %v2523 = vsub.f32 1.0, %v2522
        %v2524 = vmul.f32 %v2521, %v2523
        %v2525 = vadd.f32 %v2521, %v2524
        %vm2526 = vweird.f32 %v1847
        %vm2527 = vweird.f32 %v2521
        %vm2528 = vmor %vm2526, %vm2527
        %v2529 = vsel %vm2528, %v2521, %v2525
        %v2530 = vand.u32 2147483647, %v1847
        %vm2531 = vcmp.eq.f32.partialorder %v2530, 8.507059e+37
        %v2532 = vand.u32 %v1847, 2147483648
        %v2533 = vor.u32 1.1754944e-38, %v2532
        %v2534 = vsel %vm2531, %v2533, %v2529
        %v2535 = vmul.f32 1.0, %v2534
        %v2536 = vrcp.pop %v1848
        %v2537 = vmul.f32 %v1848, %v2536
        %v2538 = vsub.f32 1.0, %v2537
        %v2539 = vmul.f32 %v2536, %v2538
        %v2540 = vadd.f32 %v2536, %v2539
        %vm2541 = vweird.f32 %v1848
        %vm2542 = vweird.f32 %v2536
        %vm2543 = vmor %vm2541, %vm2542
        %v2544 = vsel %vm2543, %v2536, %v2540
        %v2545 = vand.u32 2147483647, %v1848
        %vm2546 = vcmp.eq.f32.partialorder %v2545, 8.507059e+37
        %v2547 = vand.u32 %v1848, 2147483648
        %v2548 = vor.u32 1.1754944e-38, %v2547
        %v2549 = vsel %vm2546, %v2548, %v2544
        %v2550 = vmul.f32 1.0, %v2549
        %v2551 = vrcp.pop %v1849
        %v2552 = vmul.f32 %v1849, %v2551
        %v2553 = vsub.f32 1.0, %v2552
        %v2554 = vmul.f32 %v2551, %v2553
        %v2555 = vadd.f32 %v2551, %v2554
        %vm2556 = vweird.f32 %v1849
        %vm2557 = vweird.f32 %v2551
        %vm2558 = vmor %vm2556, %vm2557
        %v2559 = vsel %vm2558, %v2551, %v2555
        %v2560 = vand.u32 2147483647, %v1849
        %vm2561 = vcmp.eq.f32.partialorder %v2560, 8.507059e+37
        %v2562 = vand.u32 %v1849, 2147483648
        %v2563 = vor.u32 1.1754944e-38, %v2562
        %v2564 = vsel %vm2561, %v2563, %v2559
        %v2565 = vmul.f32 1.0, %v2564
        %v2566 = vrcp.pop %v1850
        %v2567 = vmul.f32 %v1850, %v2566
        %v2568 = vsub.f32 1.0, %v2567
        %v2569 = vmul.f32 %v2566, %v2568
        %v2570 = vadd.f32 %v2566, %v2569
        %vm2571 = vweird.f32 %v1850
        %vm2572 = vweird.f32 %v2566
        %vm2573 = vmor %vm2571, %vm2572
        %v2574 = vsel %vm2573, %v2566, %v2570
        %v2575 = vand.u32 2147483647, %v1850
        %vm2576 = vcmp.eq.f32.partialorder %v2575, 8.507059e+37
        %v2577 = vand.u32 %v1850, 2147483648
        %v2578 = vor.u32 1.1754944e-38, %v2577
        %v2579 = vsel %vm2576, %v2578, %v2574
        %v2580 = vmul.f32 1.0, %v2579
        %v2581 = vrcp.pop %v1851
        %v2582 = vmul.f32 %v1851, %v2581
        %v2583 = vsub.f32 1.0, %v2582
        %v2584 = vmul.f32 %v2581, %v2583
        %v2585 = vadd.f32 %v2581, %v2584
        %vm2586 = vweird.f32 %v1851
        %vm2587 = vweird.f32 %v2581
        %vm2588 = vmor %vm2586, %vm2587
        %v2589 = vsel %vm2588, %v2581, %v2585
        %v2590 = vand.u32 2147483647, %v1851
        %vm2591 = vcmp.eq.f32.partialorder %v2590, 8.507059e+37
        %v2592 = vand.u32 %v1851, 2147483648
        %v2593 = vor.u32 1.1754944e-38, %v2592
        %v2594 = vsel %vm2591, %v2593, %v2589
        %v2595 = vmul.f32 1.0, %v2594
        %v2596 = vrcp.pop %v1852
        %v2597 = vmul.f32 %v1852, %v2596
        %v2598 = vsub.f32 1.0, %v2597
        %v2599 = vmul.f32 %v2596, %v2598
        %v2600 = vadd.f32 %v2596, %v2599
        %vm2601 = vweird.f32 %v1852
        %vm2602 = vweird.f32 %v2596
        %vm2603 = vmor %vm2601, %vm2602
        %v2604 = vsel %vm2603, %v2596, %v2600
        %v2605 = vand.u32 2147483647, %v1852
        %vm2606 = vcmp.eq.f32.partialorder %v2605, 8.507059e+37
        %v2607 = vand.u32 %v1852, 2147483648
        %v2608 = vor.u32 1.1754944e-38, %v2607
        %v2609 = vsel %vm2606, %v2608, %v2604
        %v2610 = vmul.f32 1.0, %v2609
        %v2611 = vrcp.pop %v1853
        %v2612 = vmul.f32 %v1853, %v2611
        %v2613 = vsub.f32 1.0, %v2612
        %v2614 = vmul.f32 %v2611, %v2613
        %v2615 = vadd.f32 %v2611, %v2614
        %vm2616 = vweird.f32 %v1853
        %vm2617 = vweird.f32 %v2611
        %vm2618 = vmor %vm2616, %vm2617
        %v2619 = vsel %vm2618, %v2611, %v2615
        %v2620 = vand.u32 2147483647, %v1853
        %vm2621 = vcmp.eq.f32.partialorder %v2620, 8.507059e+37
        %v2622 = vand.u32 %v1853, 2147483648
        %v2623 = vor.u32 1.1754944e-38, %v2622
        %v2624 = vsel %vm2621, %v2623, %v2619
        %v2625 = vmul.f32 1.0, %v2624
        %v2626 = vrcp.pop %v1854
        %v2627 = vmul.f32 %v1854, %v2626
        %v2628 = vsub.f32 1.0, %v2627
        %v2629 = vmul.f32 %v2626, %v2628
        %v2630 = vadd.f32 %v2626, %v2629
        %vm2631 = vweird.f32 %v1854
        %vm2632 = vweird.f32 %v2626
        %vm2633 = vmor %vm2631, %vm2632
        %v2634 = vsel %vm2633, %v2626, %v2630
        %v2635 = vand.u32 2147483647, %v1854
        %vm2636 = vcmp.eq.f32.partialorder %v2635, 8.507059e+37
        %v2637 = vand.u32 %v1854, 2147483648
        %v2638 = vor.u32 1.1754944e-38, %v2637
        %v2639 = vsel %vm2636, %v2638, %v2634
        %v2640 = vmul.f32 1.0, %v2639
        %v2641 = vrcp.pop %v1855
        %v2642 = vmul.f32 %v1855, %v2641
        %v2643 = vsub.f32 1.0, %v2642
        %v2644 = vmul.f32 %v2641, %v2643
        %v2645 = vadd.f32 %v2641, %v2644
        %vm2646 = vweird.f32 %v1855
        %vm2647 = vweird.f32 %v2641
        %vm2648 = vmor %vm2646, %vm2647
        %v2649 = vsel %vm2648, %v2641, %v2645
        %v2650 = vand.u32 2147483647, %v1855
        %vm2651 = vcmp.eq.f32.partialorder %v2650, 8.507059e+37
        %v2652 = vand.u32 %v1855, 2147483648
        %v2653 = vor.u32 1.1754944e-38, %v2652
        %v2654 = vsel %vm2651, %v2653, %v2649
        %v2655 = vmul.f32 1.0, %v2654
        %v2656 = vrcp.pop %v1856
        %v2657 = vmul.f32 %v1856, %v2656
        %v2658 = vsub.f32 1.0, %v2657
        %v2659 = vmul.f32 %v2656, %v2658
        %v2660 = vadd.f32 %v2656, %v2659
        %vm2661 = vweird.f32 %v1856
        %vm2662 = vweird.f32 %v2656
        %vm2663 = vmor %vm2661, %vm2662
        %v2664 = vsel %vm2663, %v2656, %v2660
        %v2665 = vand.u32 2147483647, %v1856
        %vm2666 = vcmp.eq.f32.partialorder %v2665, 8.507059e+37
        %v2667 = vand.u32 %v1856, 2147483648
        %v2668 = vor.u32 1.1754944e-38, %v2667
        %v2669 = vsel %vm2666, %v2668, %v2664
        %v2670 = vmul.f32 1.0, %v2669
        %v2671 = vrcp.pop %v1857
        %v2672 = vmul.f32 %v1857, %v2671
        %v2673 = vsub.f32 1.0, %v2672
        %v2674 = vmul.f32 %v2671, %v2673
        %v2675 = vadd.f32 %v2671, %v2674
        %vm2676 = vweird.f32 %v1857
        %vm2677 = vweird.f32 %v2671
        %vm2678 = vmor %vm2676, %vm2677
        %v2679 = vsel %vm2678, %v2671, %v2675
        %v2680 = vand.u32 2147483647, %v1857
        %vm2681 = vcmp.eq.f32.partialorder %v2680, 8.507059e+37
        %v2682 = vand.u32 %v1857, 2147483648
        %v2683 = vor.u32 1.1754944e-38, %v2682
        %v2684 = vsel %vm2681, %v2683, %v2679
        %v2685 = vmul.f32 1.0, %v2684
        %v2686 = vrcp.pop %v1858
        %v2687 = vmul.f32 %v1858, %v2686
        %v2688 = vsub.f32 1.0, %v2687
        %v2689 = vmul.f32 %v2686, %v2688
        %v2690 = vadd.f32 %v2686, %v2689
        %vm2691 = vweird.f32 %v1858
        %vm2692 = vweird.f32 %v2686
        %vm2693 = vmor %vm2691, %vm2692
        %v2694 = vsel %vm2693, %v2686, %v2690
        %v2695 = vand.u32 2147483647, %v1858
        %vm2696 = vcmp.eq.f32.partialorder %v2695, 8.507059e+37
        %v2697 = vand.u32 %v1858, 2147483648
        %v2698 = vor.u32 1.1754944e-38, %v2697
        %v2699 = vsel %vm2696, %v2698, %v2694
        %v2700 = vmul.f32 1.0, %v2699
        %v2701 = vrcp.pop %v1859
        %v2702 = vmul.f32 %v1859, %v2701
        %v2703 = vsub.f32 1.0, %v2702
        %v2704 = vmul.f32 %v2701, %v2703
        %v2705 = vadd.f32 %v2701, %v2704
        %vm2706 = vweird.f32 %v1859
        %vm2707 = vweird.f32 %v2701
        %vm2708 = vmor %vm2706, %vm2707
        %v2709 = vsel %vm2708, %v2701, %v2705
        %v2710 = vand.u32 2147483647, %v1859
        %vm2711 = vcmp.eq.f32.partialorder %v2710, 8.507059e+37
        %v2712 = vand.u32 %v1859, 2147483648
        %v2713 = vor.u32 1.1754944e-38, %v2712
        %v2714 = vsel %vm2711, %v2713, %v2709
        %v2715 = vmul.f32 1.0, %v2714
        %v2716 = vrcp.pop %v1860
        %v2717 = vmul.f32 %v1860, %v2716
        %v2718 = vsub.f32 1.0, %v2717
        %v2719 = vmul.f32 %v2716, %v2718
        %v2720 = vadd.f32 %v2716, %v2719
        %vm2721 = vweird.f32 %v1860
        %vm2722 = vweird.f32 %v2716
        %vm2723 = vmor %vm2721, %vm2722
        %v2724 = vsel %vm2723, %v2716, %v2720
        %v2725 = vand.u32 2147483647, %v1860
        %vm2726 = vcmp.eq.f32.partialorder %v2725, 8.507059e+37
        %v2727 = vand.u32 %v1860, 2147483648
        %v2728 = vor.u32 1.1754944e-38, %v2727
        %v2729 = vsel %vm2726, %v2728, %v2724
        %v2730 = vmul.f32 1.0, %v2729
        %v2731 = vrcp.pop %v1861
        %v2732 = vmul.f32 %v1861, %v2731
        %v2733 = vsub.f32 1.0, %v2732
        %v2734 = vmul.f32 %v2731, %v2733
        %v2735 = vadd.f32 %v2731, %v2734
        %vm2736 = vweird.f32 %v1861
        %vm2737 = vweird.f32 %v2731
        %vm2738 = vmor %vm2736, %vm2737
        %v2739 = vsel %vm2738, %v2731, %v2735
        %v2740 = vand.u32 2147483647, %v1861
        %vm2741 = vcmp.eq.f32.partialorder %v2740, 8.507059e+37
        %v2742 = vand.u32 %v1861, 2147483648
        %v2743 = vor.u32 1.1754944e-38, %v2742
        %v2744 = vsel %vm2741, %v2743, %v2739
        %v2745 = vmul.f32 1.0, %v2744
        %v2746 = vrcp.pop %v1862
        %v2747 = vmul.f32 %v1862, %v2746
        %v2748 = vsub.f32 1.0, %v2747
        %v2749 = vmul.f32 %v2746, %v2748
        %v2750 = vadd.f32 %v2746, %v2749
        %vm2751 = vweird.f32 %v1862
        %vm2752 = vweird.f32 %v2746
        %vm2753 = vmor %vm2751, %vm2752
        %v2754 = vsel %vm2753, %v2746, %v2750
        %v2755 = vand.u32 2147483647, %v1862
        %vm2756 = vcmp.eq.f32.partialorder %v2755, 8.507059e+37
        %v2757 = vand.u32 %v1862, 2147483648
        %v2758 = vor.u32 1.1754944e-38, %v2757
        %v2759 = vsel %vm2756, %v2758, %v2754
        %v2760 = vmul.f32 1.0, %v2759
        %v2761 = vrcp.pop %v1863
        %v2762 = vmul.f32 %v1863, %v2761
        %v2763 = vsub.f32 1.0, %v2762
        %v2764 = vmul.f32 %v2761, %v2763
        %v2765 = vadd.f32 %v2761, %v2764
        %vm2766 = vweird.f32 %v1863
        %vm2767 = vweird.f32 %v2761
        %vm2768 = vmor %vm2766, %vm2767
        %v2769 = vsel %vm2768, %v2761, %v2765
        %v2770 = vand.u32 2147483647, %v1863
        %vm2771 = vcmp.eq.f32.partialorder %v2770, 8.507059e+37
        %v2772 = vand.u32 %v1863, 2147483648
        %v2773 = vor.u32 1.1754944e-38, %v2772
        %v2774 = vsel %vm2771, %v2773, %v2769
        %v2775 = vmul.f32 1.0, %v2774
        %v2776 = vrcp.pop %v1864
        %v2777 = vmul.f32 %v1864, %v2776
        %v2778 = vsub.f32 1.0, %v2777
        %v2779 = vmul.f32 %v2776, %v2778
        %v2780 = vadd.f32 %v2776, %v2779
        %vm2781 = vweird.f32 %v1864
        %vm2782 = vweird.f32 %v2776
        %vm2783 = vmor %vm2781, %vm2782
        %v2784 = vsel %vm2783, %v2776, %v2780
        %v2785 = vand.u32 2147483647, %v1864
        %vm2786 = vcmp.eq.f32.partialorder %v2785, 8.507059e+37
        %v2787 = vand.u32 %v1864, 2147483648
        %v2788 = vor.u32 1.1754944e-38, %v2787
        %v2789 = vsel %vm2786, %v2788, %v2784
        %v2790 = vmul.f32 1.0, %v2789
        %v2791 = vrcp.pop %v1865
        %v2792 = vmul.f32 %v1865, %v2791
        %v2793 = vsub.f32 1.0, %v2792
        %v2794 = vmul.f32 %v2791, %v2793
        %v2795 = vadd.f32 %v2791, %v2794
        %vm2796 = vweird.f32 %v1865
        %vm2797 = vweird.f32 %v2791
        %vm2798 = vmor %vm2796, %vm2797
        %v2799 = vsel %vm2798, %v2791, %v2795
        %v2800 = vand.u32 2147483647, %v1865
        %vm2801 = vcmp.eq.f32.partialorder %v2800, 8.507059e+37
        %v2802 = vand.u32 %v1865, 2147483648
        %v2803 = vor.u32 1.1754944e-38, %v2802
        %v2804 = vsel %vm2801, %v2803, %v2799
        %v2805 = vmul.f32 1.0, %v2804
        %v2806 = vrcp.pop %v1866
        %v2807 = vmul.f32 %v1866, %v2806
        %v2808 = vsub.f32 1.0, %v2807
        %v2809 = vmul.f32 %v2806, %v2808
        %v2810 = vadd.f32 %v2806, %v2809
        %vm2811 = vweird.f32 %v1866
        %vm2812 = vweird.f32 %v2806
        %vm2813 = vmor %vm2811, %vm2812
        %v2814 = vsel %vm2813, %v2806, %v2810
        %v2815 = vand.u32 2147483647, %v1866
        %vm2816 = vcmp.eq.f32.partialorder %v2815, 8.507059e+37
        %v2817 = vand.u32 %v1866, 2147483648
        %v2818 = vor.u32 1.1754944e-38, %v2817
        %v2819 = vsel %vm2816, %v2818, %v2814
        %v2820 = vmul.f32 1.0, %v2819
        %v2821 = vrcp.pop %v1867
        %v2822 = vmul.f32 %v1867, %v2821
        %v2823 = vsub.f32 1.0, %v2822
        %v2824 = vmul.f32 %v2821, %v2823
        %v2825 = vadd.f32 %v2821, %v2824
        %vm2826 = vweird.f32 %v1867
        %vm2827 = vweird.f32 %v2821
        %vm2828 = vmor %vm2826, %vm2827
        %v2829 = vsel %vm2828, %v2821, %v2825
        %v2830 = vand.u32 2147483647, %v1867
        %vm2831 = vcmp.eq.f32.partialorder %v2830, 8.507059e+37
        %v2832 = vand.u32 %v1867, 2147483648
        %v2833 = vor.u32 1.1754944e-38, %v2832
        %v2834 = vsel %vm2831, %v2833, %v2829
        %v2835 = vmul.f32 1.0, %v2834
        %v2836 = vrcp.pop %v1868
        %v2837 = vmul.f32 %v1868, %v2836
        %v2838 = vsub.f32 1.0, %v2837
        %v2839 = vmul.f32 %v2836, %v2838
        %v2840 = vadd.f32 %v2836, %v2839
        %vm2841 = vweird.f32 %v1868
        %vm2842 = vweird.f32 %v2836
        %vm2843 = vmor %vm2841, %vm2842
        %v2844 = vsel %vm2843, %v2836, %v2840
        %v2845 = vand.u32 2147483647, %v1868
        %vm2846 = vcmp.eq.f32.partialorder %v2845, 8.507059e+37
        %v2847 = vand.u32 %v1868, 2147483648
        %v2848 = vor.u32 1.1754944e-38, %v2847
        %v2849 = vsel %vm2846, %v2848, %v2844
        %v2850 = vmul.f32 1.0, %v2849
        %v2851 = vrcp.pop %v1869
        %v2852 = vmul.f32 %v1869, %v2851
        %v2853 = vsub.f32 1.0, %v2852
        %v2854 = vmul.f32 %v2851, %v2853
        %v2855 = vadd.f32 %v2851, %v2854
        %vm2856 = vweird.f32 %v1869
        %vm2857 = vweird.f32 %v2851
        %vm2858 = vmor %vm2856, %vm2857
        %v2859 = vsel %vm2858, %v2851, %v2855
        %v2860 = vand.u32 2147483647, %v1869
        %vm2861 = vcmp.eq.f32.partialorder %v2860, 8.507059e+37
        %v2862 = vand.u32 %v1869, 2147483648
        %v2863 = vor.u32 1.1754944e-38, %v2862
        %v2864 = vsel %vm2861, %v2863, %v2859
        %v2865 = vmul.f32 1.0, %v2864
        %v2866 = vrcp.pop %v1870
        %v2867 = vmul.f32 %v1870, %v2866
        %v2868 = vsub.f32 1.0, %v2867
        %v2869 = vmul.f32 %v2866, %v2868
        %v2870 = vadd.f32 %v2866, %v2869
        %vm2871 = vweird.f32 %v1870
        %vm2872 = vweird.f32 %v2866
        %vm2873 = vmor %vm2871, %vm2872
        %v2874 = vsel %vm2873, %v2866, %v2870
        %v2875 = vand.u32 2147483647, %v1870
        %vm2876 = vcmp.eq.f32.partialorder %v2875, 8.507059e+37
        %v2877 = vand.u32 %v1870, 2147483648
        %v2878 = vor.u32 1.1754944e-38, %v2877
        %v2879 = vsel %vm2876, %v2878, %v2874
        %v2880 = vmul.f32 1.0, %v2879
        %v2881 = vrcp.pop %v1871
        %v2882 = vmul.f32 %v1871, %v2881
        %v2883 = vsub.f32 1.0, %v2882
        %v2884 = vmul.f32 %v2881, %v2883
        %v2885 = vadd.f32 %v2881, %v2884
        %vm2886 = vweird.f32 %v1871
        %vm2887 = vweird.f32 %v2881
        %vm2888 = vmor %vm2886, %vm2887
        %v2889 = vsel %vm2888, %v2881, %v2885
        %v2890 = vand.u32 2147483647, %v1871
        %vm2891 = vcmp.eq.f32.partialorder %v2890, 8.507059e+37
        %v2892 = vand.u32 %v1871, 2147483648
        %v2893 = vor.u32 1.1754944e-38, %v2892
        %v2894 = vsel %vm2891, %v2893, %v2889
        %v2895 = vmul.f32 1.0, %v2894
        %v2896 = vrcp.pop %v1872
        %v2897 = vmul.f32 %v1872, %v2896
        %v2898 = vsub.f32 1.0, %v2897
        %v2899 = vmul.f32 %v2896, %v2898
        %v2900 = vadd.f32 %v2896, %v2899
        %vm2901 = vweird.f32 %v1872
        %vm2902 = vweird.f32 %v2896
        %vm2903 = vmor %vm2901, %vm2902
        %v2904 = vsel %vm2903, %v2896, %v2900
        %v2905 = vand.u32 2147483647, %v1872
        %vm2906 = vcmp.eq.f32.partialorder %v2905, 8.507059e+37
        %v2907 = vand.u32 %v1872, 2147483648
        %v2908 = vor.u32 1.1754944e-38, %v2907
        %v2909 = vsel %vm2906, %v2908, %v2904
        %v2910 = vmul.f32 1.0, %v2909
        %v2911 = vrcp.pop %v1873
        %v2912 = vmul.f32 %v1873, %v2911
        %v2913 = vsub.f32 1.0, %v2912
        %v2914 = vmul.f32 %v2911, %v2913
        %v2915 = vadd.f32 %v2911, %v2914
        %vm2916 = vweird.f32 %v1873
        %vm2917 = vweird.f32 %v2911
        %vm2918 = vmor %vm2916, %vm2917
        %v2919 = vsel %vm2918, %v2911, %v2915
        %v2920 = vand.u32 2147483647, %v1873
        %vm2921 = vcmp.eq.f32.partialorder %v2920, 8.507059e+37
        %v2922 = vand.u32 %v1873, 2147483648
        %v2923 = vor.u32 1.1754944e-38, %v2922
        %v2924 = vsel %vm2921, %v2923, %v2919
        %v2925 = vmul.f32 1.0, %v2924
        %v2926 = vrcp.pop %v1874
        %v2927 = vmul.f32 %v1874, %v2926
        %v2928 = vsub.f32 1.0, %v2927
        %v2929 = vmul.f32 %v2926, %v2928
        %v2930 = vadd.f32 %v2926, %v2929
        %vm2931 = vweird.f32 %v1874
        %vm2932 = vweird.f32 %v2926
        %vm2933 = vmor %vm2931, %vm2932
        %v2934 = vsel %vm2933, %v2926, %v2930
        %v2935 = vand.u32 2147483647, %v1874
        %vm2936 = vcmp.eq.f32.partialorder %v2935, 8.507059e+37
        %v2937 = vand.u32 %v1874, 2147483648
        %v2938 = vor.u32 1.1754944e-38, %v2937
        %v2939 = vsel %vm2936, %v2938, %v2934
        %v2940 = vmul.f32 1.0, %v2939
        %v2941 = vrcp.pop %v1875
        %v2942 = vmul.f32 %v1875, %v2941
        %v2943 = vsub.f32 1.0, %v2942
        %v2944 = vmul.f32 %v2941, %v2943
        %v2945 = vadd.f32 %v2941, %v2944
        %vm2946 = vweird.f32 %v1875
        %vm2947 = vweird.f32 %v2941
        %vm2948 = vmor %vm2946, %vm2947
        %v2949 = vsel %vm2948, %v2941, %v2945
        %v2950 = vand.u32 2147483647, %v1875
        %vm2951 = vcmp.eq.f32.partialorder %v2950, 8.507059e+37
        %v2952 = vand.u32 %v1875, 2147483648
        %v2953 = vor.u32 1.1754944e-38, %v2952
        %v2954 = vsel %vm2951, %v2953, %v2949
        %v2955 = vmul.f32 1.0, %v2954
        %v2956 = vrcp.pop %v1876
        %v2957 = vmul.f32 %v1876, %v2956
        %v2958 = vsub.f32 1.0, %v2957
        %v2959 = vmul.f32 %v2956, %v2958
        %v2960 = vadd.f32 %v2956, %v2959
        %vm2961 = vweird.f32 %v1876
        %vm2962 = vweird.f32 %v2956
        %vm2963 = vmor %vm2961, %vm2962
        %v2964 = vsel %vm2963, %v2956, %v2960
        %v2965 = vand.u32 2147483647, %v1876
        %vm2966 = vcmp.eq.f32.partialorder %v2965, 8.507059e+37
        %v2967 = vand.u32 %v1876, 2147483648
        %v2968 = vor.u32 1.1754944e-38, %v2967
        %v2969 = vsel %vm2966, %v2968, %v2964
        %v2970 = vmul.f32 1.0, %v2969
        %v2971 = vrcp.pop %v1877
        %v2972 = vmul.f32 %v1877, %v2971
        %v2973 = vsub.f32 1.0, %v2972
        %v2974 = vmul.f32 %v2971, %v2973
        %v2975 = vadd.f32 %v2971, %v2974
        %vm2976 = vweird.f32 %v1877
        %vm2977 = vweird.f32 %v2971
        %vm2978 = vmor %vm2976, %vm2977
        %v2979 = vsel %vm2978, %v2971, %v2975
        %v2980 = vand.u32 2147483647, %v1877
        %vm2981 = vcmp.eq.f32.partialorder %v2980, 8.507059e+37
        %v2982 = vand.u32 %v1877, 2147483648
        %v2983 = vor.u32 1.1754944e-38, %v2982
        %v2984 = vsel %vm2981, %v2983, %v2979
        %v2985 = vmul.f32 1.0, %v2984
        %v2986 = vrcp.pop %v1878
        %v2987 = vmul.f32 %v1878, %v2986
        %v2988 = vsub.f32 1.0, %v2987
        %v2989 = vmul.f32 %v2986, %v2988
        %v2990 = vadd.f32 %v2986, %v2989
        %vm2991 = vweird.f32 %v1878
        %vm2992 = vweird.f32 %v2986
        %vm2993 = vmor %vm2991, %vm2992
        %v2994 = vsel %vm2993, %v2986, %v2990
        %v2995 = vand.u32 2147483647, %v1878
        %vm2996 = vcmp.eq.f32.partialorder %v2995, 8.507059e+37
        %v2997 = vand.u32 %v1878, 2147483648
        %v2998 = vor.u32 1.1754944e-38, %v2997
        %v2999 = vsel %vm2996, %v2998, %v2994
        %v3000 = vmul.f32 1.0, %v2999
        %v3001 = vrcp.pop %v1879
        %v3002 = vmul.f32 %v1879, %v3001
        %v3003 = vsub.f32 1.0, %v3002
        %v3004 = vmul.f32 %v3001, %v3003
        %v3005 = vadd.f32 %v3001, %v3004
        %vm3006 = vweird.f32 %v1879
        %vm3007 = vweird.f32 %v3001
        %vm3008 = vmor %vm3006, %vm3007
        %v3009 = vsel %vm3008, %v3001, %v3005
        %v3010 = vand.u32 2147483647, %v1879
        %vm3011 = vcmp.eq.f32.partialorder %v3010, 8.507059e+37
        %v3012 = vand.u32 %v1879, 2147483648
        %v3013 = vor.u32 1.1754944e-38, %v3012
        %v3014 = vsel %vm3011, %v3013, %v3009
        %v3015 = vmul.f32 1.0, %v3014
        %v3016 = vrcp.pop %v1880
        %v3017 = vmul.f32 %v1880, %v3016
        %v3018 = vsub.f32 1.0, %v3017
        %v3019 = vmul.f32 %v3016, %v3018
        %v3020 = vadd.f32 %v3016, %v3019
        %vm3021 = vweird.f32 %v1880
        %vm3022 = vweird.f32 %v3016
        %vm3023 = vmor %vm3021, %vm3022
        %v3024 = vsel %vm3023, %v3016, %v3020
        %v3025 = vand.u32 2147483647, %v1880
        %vm3026 = vcmp.eq.f32.partialorder %v3025, 8.507059e+37
        %v3027 = vand.u32 %v1880, 2147483648
        %v3028 = vor.u32 1.1754944e-38, %v3027
        %v3029 = vsel %vm3026, %v3028, %v3024
        %v3030 = vmul.f32 1.0, %v3029
        %v3031 = vrcp.pop %v1881
        %v3032 = vmul.f32 %v1881, %v3031
        %v3033 = vsub.f32 1.0, %v3032
        %v3034 = vmul.f32 %v3031, %v3033
        %v3035 = vadd.f32 %v3031, %v3034
        %vm3036 = vweird.f32 %v1881
        %vm3037 = vweird.f32 %v3031
        %vm3038 = vmor %vm3036, %vm3037
        %v3039 = vsel %vm3038, %v3031, %v3035
        %v3040 = vand.u32 2147483647, %v1881
        %vm3041 = vcmp.eq.f32.partialorder %v3040, 8.507059e+37
        %v3042 = vand.u32 %v1881, 2147483648
        %v3043 = vor.u32 1.1754944e-38, %v3042
        %v3044 = vsel %vm3041, %v3043, %v3039
        %v3045 = vmul.f32 1.0, %v3044
        %v3046 = vrcp.pop %v1882
        %v3047 = vmul.f32 %v1882, %v3046
        %v3048 = vsub.f32 1.0, %v3047
        %v3049 = vmul.f32 %v3046, %v3048
        %v3050 = vadd.f32 %v3046, %v3049
        %vm3051 = vweird.f32 %v1882
        %vm3052 = vweird.f32 %v3046
        %vm3053 = vmor %vm3051, %vm3052
        %v3054 = vsel %vm3053, %v3046, %v3050
        %v3055 = vand.u32 2147483647, %v1882
        %vm3056 = vcmp.eq.f32.partialorder %v3055, 8.507059e+37
        %v3057 = vand.u32 %v1882, 2147483648
        %v3058 = vor.u32 1.1754944e-38, %v3057
        %v3059 = vsel %vm3056, %v3058, %v3054
        %v3060 = vmul.f32 1.0, %v3059
        %v3061 = vrcp.pop %v1883
        %v3062 = vmul.f32 %v1883, %v3061
        %v3063 = vsub.f32 1.0, %v3062
        %v3064 = vmul.f32 %v3061, %v3063
        %v3065 = vadd.f32 %v3061, %v3064
        %vm3066 = vweird.f32 %v1883
        %vm3067 = vweird.f32 %v3061
        %vm3068 = vmor %vm3066, %vm3067
        %v3069 = vsel %vm3068, %v3061, %v3065
        %v3070 = vand.u32 2147483647, %v1883
        %vm3071 = vcmp.eq.f32.partialorder %v3070, 8.507059e+37
        %v3072 = vand.u32 %v1883, 2147483648
        %v3073 = vor.u32 1.1754944e-38, %v3072
        %v3074 = vsel %vm3071, %v3073, %v3069
        %v3075 = vmul.f32 1.0, %v3074
        %v3076 = vrcp.pop %v1884
        %v3077 = vmul.f32 %v1884, %v3076
        %v3078 = vsub.f32 1.0, %v3077
        %v3079 = vmul.f32 %v3076, %v3078
        %v3080 = vadd.f32 %v3076, %v3079
        %vm3081 = vweird.f32 %v1884
        %vm3082 = vweird.f32 %v3076
        %vm3083 = vmor %vm3081, %vm3082
        %v3084 = vsel %vm3083, %v3076, %v3080
        %v3085 = vand.u32 2147483647, %v1884
        %vm3086 = vcmp.eq.f32.partialorder %v3085, 8.507059e+37
        %v3087 = vand.u32 %v1884, 2147483648
        %v3088 = vor.u32 1.1754944e-38, %v3087
        %v3089 = vsel %vm3086, %v3088, %v3084
        %v3090 = vmul.f32 1.0, %v3089
        %v3091 = vrcp.pop %v1885
        %v3092 = vmul.f32 %v1885, %v3091
        %v3093 = vsub.f32 1.0, %v3092
        %v3094 = vmul.f32 %v3091, %v3093
        %v3095 = vadd.f32 %v3091, %v3094
        %vm3096 = vweird.f32 %v1885
        %vm3097 = vweird.f32 %v3091
        %vm3098 = vmor %vm3096, %vm3097
        %v3099 = vsel %vm3098, %v3091, %v3095
        %v3100 = vand.u32 2147483647, %v1885
        %vm3101 = vcmp.eq.f32.partialorder %v3100, 8.507059e+37
        %v3102 = vand.u32 %v1885, 2147483648
        %v3103 = vor.u32 1.1754944e-38, %v3102
        %v3104 = vsel %vm3101, %v3103, %v3099
        %v3105 = vmul.f32 1.0, %v3104
        %v3106 = vrcp.pop %v1886
        %v3107 = vmul.f32 %v1886, %v3106
        %v3108 = vsub.f32 1.0, %v3107
        %v3109 = vmul.f32 %v3106, %v3108
        %v3110 = vadd.f32 %v3106, %v3109
        %vm3111 = vweird.f32 %v1886
        %vm3112 = vweird.f32 %v3106
        %vm3113 = vmor %vm3111, %vm3112
        %v3114 = vsel %vm3113, %v3106, %v3110
        %v3115 = vand.u32 2147483647, %v1886
        %vm3116 = vcmp.eq.f32.partialorder %v3115, 8.507059e+37
        %v3117 = vand.u32 %v1886, 2147483648
        %v3118 = vor.u32 1.1754944e-38, %v3117
        %v3119 = vsel %vm3116, %v3118, %v3114
        %v3120 = vmul.f32 1.0, %v3119
        %v3121 = vrcp.pop %v1887
        %v3122 = vmul.f32 %v1887, %v3121
        %v3123 = vsub.f32 1.0, %v3122
        %v3124 = vmul.f32 %v3121, %v3123
        %v3125 = vadd.f32 %v3121, %v3124
        %vm3126 = vweird.f32 %v1887
        %vm3127 = vweird.f32 %v3121
        %vm3128 = vmor %vm3126, %vm3127
        %v3129 = vsel %vm3128, %v3121, %v3125
        %v3130 = vand.u32 2147483647, %v1887
        %vm3131 = vcmp.eq.f32.partialorder %v3130, 8.507059e+37
        %v3132 = vand.u32 %v1887, 2147483648
        %v3133 = vor.u32 1.1754944e-38, %v3132
        %v3134 = vsel %vm3131, %v3133, %v3129
        %v3135 = vmul.f32 1.0, %v3134
        %v3136 = vrcp.pop %v1888
        %v3137 = vmul.f32 %v1888, %v3136
        %v3138 = vsub.f32 1.0, %v3137
        %v3139 = vmul.f32 %v3136, %v3138
        %v3140 = vadd.f32 %v3136, %v3139
        %vm3141 = vweird.f32 %v1888
        %vm3142 = vweird.f32 %v3136
        %vm3143 = vmor %vm3141, %vm3142
        %v3144 = vsel %vm3143, %v3136, %v3140
        %v3145 = vand.u32 2147483647, %v1888
        %vm3146 = vcmp.eq.f32.partialorder %v3145, 8.507059e+37
        %v3147 = vand.u32 %v1888, 2147483648
        %v3148 = vor.u32 1.1754944e-38, %v3147
        %v3149 = vsel %vm3146, %v3148, %v3144
        %v3150 = vmul.f32 1.0, %v3149
        %v3151 = vrcp.pop %v1889
        %v3152 = vmul.f32 %v1889, %v3151
        %v3153 = vsub.f32 1.0, %v3152
        %v3154 = vmul.f32 %v3151, %v3153
        %v3155 = vadd.f32 %v3151, %v3154
        %vm3156 = vweird.f32 %v1889
        %vm3157 = vweird.f32 %v3151
        %vm3158 = vmor %vm3156, %vm3157
        %v3159 = vsel %vm3158, %v3151, %v3155
        %v3160 = vand.u32 2147483647, %v1889
        %vm3161 = vcmp.eq.f32.partialorder %v3160, 8.507059e+37
        %v3162 = vand.u32 %v1889, 2147483648
        %v3163 = vor.u32 1.1754944e-38, %v3162
        %v3164 = vsel %vm3161, %v3163, %v3159
        %v3165 = vmul.f32 1.0, %v3164
        %v3166 = vrcp.pop %v1890
        %v3167 = vmul.f32 %v1890, %v3166
        %v3168 = vsub.f32 1.0, %v3167
        %v3169 = vmul.f32 %v3166, %v3168
        %v3170 = vadd.f32 %v3166, %v3169
        %vm3171 = vweird.f32 %v1890
        %vm3172 = vweird.f32 %v3166
        %vm3173 = vmor %vm3171, %vm3172
        %v3174 = vsel %vm3173, %v3166, %v3170
        %v3175 = vand.u32 2147483647, %v1890
        %vm3176 = vcmp.eq.f32.partialorder %v3175, 8.507059e+37
        %v3177 = vand.u32 %v1890, 2147483648
        %v3178 = vor.u32 1.1754944e-38, %v3177
        %v3179 = vsel %vm3176, %v3178, %v3174
        %v3180 = vmul.f32 1.0, %v3179
        %v3181 = vrcp.pop %v1891
        %v3182 = vmul.f32 %v1891, %v3181
        %v3183 = vsub.f32 1.0, %v3182
        %v3184 = vmul.f32 %v3181, %v3183
        %v3185 = vadd.f32 %v3181, %v3184
        %vm3186 = vweird.f32 %v1891
        %vm3187 = vweird.f32 %v3181
        %vm3188 = vmor %vm3186, %vm3187
        %v3189 = vsel %vm3188, %v3181, %v3185
        %v3190 = vand.u32 2147483647, %v1891
        %vm3191 = vcmp.eq.f32.partialorder %v3190, 8.507059e+37
        %v3192 = vand.u32 %v1891, 2147483648
        %v3193 = vor.u32 1.1754944e-38, %v3192
        %v3194 = vsel %vm3191, %v3193, %v3189
        %v3195 = vmul.f32 1.0, %v3194
        %v3196 = vrcp.pop %v1892
        %v3197 = vmul.f32 %v1892, %v3196
        %v3198 = vsub.f32 1.0, %v3197
        %v3199 = vmul.f32 %v3196, %v3198
        %v3200 = vadd.f32 %v3196, %v3199
        %vm3201 = vweird.f32 %v1892
        %vm3202 = vweird.f32 %v3196
        %vm3203 = vmor %vm3201, %vm3202
        %v3204 = vsel %vm3203, %v3196, %v3200
        %v3205 = vand.u32 2147483647, %v1892
        %vm3206 = vcmp.eq.f32.partialorder %v3205, 8.507059e+37
        %v3207 = vand.u32 %v1892, 2147483648
        %v3208 = vor.u32 1.1754944e-38, %v3207
        %v3209 = vsel %vm3206, %v3208, %v3204
        %v3210 = vmul.f32 1.0, %v3209
        %v3211 = vrcp.pop %v1893
        %v3212 = vmul.f32 %v1893, %v3211
        %v3213 = vsub.f32 1.0, %v3212
        %v3214 = vmul.f32 %v3211, %v3213
        %v3215 = vadd.f32 %v3211, %v3214
        %vm3216 = vweird.f32 %v1893
        %vm3217 = vweird.f32 %v3211
        %vm3218 = vmor %vm3216, %vm3217
        %v3219 = vsel %vm3218, %v3211, %v3215
        %v3220 = vand.u32 2147483647, %v1893
        %vm3221 = vcmp.eq.f32.partialorder %v3220, 8.507059e+37
        %v3222 = vand.u32 %v1893, 2147483648
        %v3223 = vor.u32 1.1754944e-38, %v3222
        %v3224 = vsel %vm3221, %v3223, %v3219
        %v3225 = vmul.f32 1.0, %v3224
        %v3226 = vrcp.pop %v1894
        %v3227 = vmul.f32 %v1894, %v3226
        %v3228 = vsub.f32 1.0, %v3227
        %v3229 = vmul.f32 %v3226, %v3228
        %v3230 = vadd.f32 %v3226, %v3229
        %vm3231 = vweird.f32 %v1894
        %vm3232 = vweird.f32 %v3226
        %vm3233 = vmor %vm3231, %vm3232
        %v3234 = vsel %vm3233, %v3226, %v3230
        %v3235 = vand.u32 2147483647, %v1894
        %vm3236 = vcmp.eq.f32.partialorder %v3235, 8.507059e+37
        %v3237 = vand.u32 %v1894, 2147483648
        %v3238 = vor.u32 1.1754944e-38, %v3237
        %v3239 = vsel %vm3236, %v3238, %v3234
        %v3240 = vmul.f32 1.0, %v3239
        %v3241 = vrcp.pop %v1895
        %v3242 = vmul.f32 %v1895, %v3241
        %v3243 = vsub.f32 1.0, %v3242
        %v3244 = vmul.f32 %v3241, %v3243
        %v3245 = vadd.f32 %v3241, %v3244
        %vm3246 = vweird.f32 %v1895
        %vm3247 = vweird.f32 %v3241
        %vm3248 = vmor %vm3246, %vm3247
        %v3249 = vsel %vm3248, %v3241, %v3245
        %v3250 = vand.u32 2147483647, %v1895
        %vm3251 = vcmp.eq.f32.partialorder %v3250, 8.507059e+37
        %v3252 = vand.u32 %v1895, 2147483648
        %v3253 = vor.u32 1.1754944e-38, %v3252
        %v3254 = vsel %vm3251, %v3253, %v3249
        %v3255 = vmul.f32 1.0, %v3254
        %v3256 = vrcp.pop %v1896
        %v3257 = vmul.f32 %v1896, %v3256
        %v3258 = vsub.f32 1.0, %v3257
        %v3259 = vmul.f32 %v3256, %v3258
        %v3260 = vadd.f32 %v3256, %v3259
        %vm3261 = vweird.f32 %v1896
        %vm3262 = vweird.f32 %v3256
        %vm3263 = vmor %vm3261, %vm3262
        %v3264 = vsel %vm3263, %v3256, %v3260
        %v3265 = vand.u32 2147483647, %v1896
        %vm3266 = vcmp.eq.f32.partialorder %v3265, 8.507059e+37
        %v3267 = vand.u32 %v1896, 2147483648
        %v3268 = vor.u32 1.1754944e-38, %v3267
        %v3269 = vsel %vm3266, %v3268, %v3264
        %v3270 = vmul.f32 1.0, %v3269
        %v3271 = vrcp.pop %v1897
        %v3272 = vmul.f32 %v1897, %v3271
        %v3273 = vsub.f32 1.0, %v3272
        %v3274 = vmul.f32 %v3271, %v3273
        %v3275 = vadd.f32 %v3271, %v3274
        %vm3276 = vweird.f32 %v1897
        %vm3277 = vweird.f32 %v3271
        %vm3278 = vmor %vm3276, %vm3277
        %v3279 = vsel %vm3278, %v3271, %v3275
        %v3280 = vand.u32 2147483647, %v1897
        %vm3281 = vcmp.eq.f32.partialorder %v3280, 8.507059e+37
        %v3282 = vand.u32 %v1897, 2147483648
        %v3283 = vor.u32 1.1754944e-38, %v3282
        %v3284 = vsel %vm3281, %v3283, %v3279
        %v3285 = vmul.f32 1.0, %v3284
        %v3286 = vrcp.pop %v1898
        %v3287 = vmul.f32 %v1898, %v3286
        %v3288 = vsub.f32 1.0, %v3287
        %v3289 = vmul.f32 %v3286, %v3288
        %v3290 = vadd.f32 %v3286, %v3289
        %vm3291 = vweird.f32 %v1898
        %vm3292 = vweird.f32 %v3286
        %vm3293 = vmor %vm3291, %vm3292
        %v3294 = vsel %vm3293, %v3286, %v3290
        %v3295 = vand.u32 2147483647, %v1898
        %vm3296 = vcmp.eq.f32.partialorder %v3295, 8.507059e+37
        %v3297 = vand.u32 %v1898, 2147483648
        %v3298 = vor.u32 1.1754944e-38, %v3297
        %v3299 = vsel %vm3296, %v3298, %v3294
        %v3300 = vmul.f32 1.0, %v3299
        %v3301 = vrcp.pop %v1899
        %v3302 = vmul.f32 %v1899, %v3301
        %v3303 = vsub.f32 1.0, %v3302
        %v3304 = vmul.f32 %v3301, %v3303
        %v3305 = vadd.f32 %v3301, %v3304
        %vm3306 = vweird.f32 %v1899
        %vm3307 = vweird.f32 %v3301
        %vm3308 = vmor %vm3306, %vm3307
        %v3309 = vsel %vm3308, %v3301, %v3305
        %v3310 = vand.u32 2147483647, %v1899
        %vm3311 = vcmp.eq.f32.partialorder %v3310, 8.507059e+37
        %v3312 = vand.u32 %v1899, 2147483648
        %v3313 = vor.u32 1.1754944e-38, %v3312
        %v3314 = vsel %vm3311, %v3313, %v3309
        %v3315 = vmul.f32 1.0, %v3314
        %v3316 = vrcp.pop %v1900
        %v3317 = vmul.f32 %v1900, %v3316
        %v3318 = vsub.f32 1.0, %v3317
        %v3319 = vmul.f32 %v3316, %v3318
        %v3320 = vadd.f32 %v3316, %v3319
        %vm3321 = vweird.f32 %v1900
        %vm3322 = vweird.f32 %v3316
        %vm3323 = vmor %vm3321, %vm3322
        %v3324 = vsel %vm3323, %v3316, %v3320
        %v3325 = vand.u32 2147483647, %v1900
        %vm3326 = vcmp.eq.f32.partialorder %v3325, 8.507059e+37
        %v3327 = vand.u32 %v1900, 2147483648
        %v3328 = vor.u32 1.1754944e-38, %v3327
        %v3329 = vsel %vm3326, %v3328, %v3324
        %v3330 = vmul.f32 1.0, %v3329
        %v3331 = vrcp.pop %v1901
        %v3332 = vmul.f32 %v1901, %v3331
        %v3333 = vsub.f32 1.0, %v3332
        %v3334 = vmul.f32 %v3331, %v3333
        %v3335 = vadd.f32 %v3331, %v3334
        %vm3336 = vweird.f32 %v1901
        %vm3337 = vweird.f32 %v3331
        %vm3338 = vmor %vm3336, %vm3337
        %v3339 = vsel %vm3338, %v3331, %v3335
        %v3340 = vand.u32 2147483647, %v1901
        %vm3341 = vcmp.eq.f32.partialorder %v3340, 8.507059e+37
        %v3342 = vand.u32 %v1901, 2147483648
        %v3343 = vor.u32 1.1754944e-38, %v3342
        %v3344 = vsel %vm3341, %v3343, %v3339
        %v3345 = vmul.f32 1.0, %v3344
        %v3346 = vrcp.pop %v1902
        %v3347 = vmul.f32 %v1902, %v3346
        %v3348 = vsub.f32 1.0, %v3347
        %v3349 = vmul.f32 %v3346, %v3348
        %v3350 = vadd.f32 %v3346, %v3349
        %vm3351 = vweird.f32 %v1902
        %vm3352 = vweird.f32 %v3346
        %vm3353 = vmor %vm3351, %vm3352
        %v3354 = vsel %vm3353, %v3346, %v3350
        %v3355 = vand.u32 2147483647, %v1902
        %vm3356 = vcmp.eq.f32.partialorder %v3355, 8.507059e+37
        %v3357 = vand.u32 %v1902, 2147483648
        %v3358 = vor.u32 1.1754944e-38, %v3357
        %v3359 = vsel %vm3356, %v3358, %v3354
        %v3360 = vmul.f32 1.0, %v3359
        %v3361 = vrcp.pop %v1903
        %v3362 = vmul.f32 %v1903, %v3361
        %v3363 = vsub.f32 1.0, %v3362
        %v3364 = vmul.f32 %v3361, %v3363
        %v3365 = vadd.f32 %v3361, %v3364
        %vm3366 = vweird.f32 %v1903
        %vm3367 = vweird.f32 %v3361
        %vm3368 = vmor %vm3366, %vm3367
        %v3369 = vsel %vm3368, %v3361, %v3365
        %v3370 = vand.u32 2147483647, %v1903
        %vm3371 = vcmp.eq.f32.partialorder %v3370, 8.507059e+37
        %v3372 = vand.u32 %v1903, 2147483648
        %v3373 = vor.u32 1.1754944e-38, %v3372
        %v3374 = vsel %vm3371, %v3373, %v3369
        %v3375 = vmul.f32 1.0, %v3374
        %v3376 = vrcp.pop %v1904
        %v3377 = vmul.f32 %v1904, %v3376
        %v3378 = vsub.f32 1.0, %v3377
        %v3379 = vmul.f32 %v3376, %v3378
        %v3380 = vadd.f32 %v3376, %v3379
        %vm3381 = vweird.f32 %v1904
        %vm3382 = vweird.f32 %v3376
        %vm3383 = vmor %vm3381, %vm3382
        %v3384 = vsel %vm3383, %v3376, %v3380
        %v3385 = vand.u32 2147483647, %v1904
        %vm3386 = vcmp.eq.f32.partialorder %v3385, 8.507059e+37
        %v3387 = vand.u32 %v1904, 2147483648
        %v3388 = vor.u32 1.1754944e-38, %v3387
        %v3389 = vsel %vm3386, %v3388, %v3384
        %v3390 = vmul.f32 1.0, %v3389
        %v3391 = vrcp.pop %v1905
        %v3392 = vmul.f32 %v1905, %v3391
        %v3393 = vsub.f32 1.0, %v3392
        %v3394 = vmul.f32 %v3391, %v3393
        %v3395 = vadd.f32 %v3391, %v3394
        %vm3396 = vweird.f32 %v1905
        %vm3397 = vweird.f32 %v3391
        %vm3398 = vmor %vm3396, %vm3397
        %v3399 = vsel %vm3398, %v3391, %v3395
        %v3400 = vand.u32 2147483647, %v1905
        %vm3401 = vcmp.eq.f32.partialorder %v3400, 8.507059e+37
        %v3402 = vand.u32 %v1905, 2147483648
        %v3403 = vor.u32 1.1754944e-38, %v3402
        %v3404 = vsel %vm3401, %v3403, %v3399
        %v3405 = vmul.f32 1.0, %v3404
        %v3406 = vrcp.pop %v1906
        %v3407 = vmul.f32 %v1906, %v3406
        %v3408 = vsub.f32 1.0, %v3407
        %v3409 = vmul.f32 %v3406, %v3408
        %v3410 = vadd.f32 %v3406, %v3409
        %vm3411 = vweird.f32 %v1906
        %vm3412 = vweird.f32 %v3406
        %vm3413 = vmor %vm3411, %vm3412
        %v3414 = vsel %vm3413, %v3406, %v3410
        %v3415 = vand.u32 2147483647, %v1906
        %vm3416 = vcmp.eq.f32.partialorder %v3415, 8.507059e+37
        %v3417 = vand.u32 %v1906, 2147483648
        %v3418 = vor.u32 1.1754944e-38, %v3417
        %v3419 = vsel %vm3416, %v3418, %v3414
        %v3420 = vmul.f32 1.0, %v3419
        %v3421 = vrcp.pop %v1907
        %v3422 = vmul.f32 %v1907, %v3421
        %v3423 = vsub.f32 1.0, %v3422
        %v3424 = vmul.f32 %v3421, %v3423
        %v3425 = vadd.f32 %v3421, %v3424
        %vm3426 = vweird.f32 %v1907
        %vm3427 = vweird.f32 %v3421
        %vm3428 = vmor %vm3426, %vm3427
        %v3429 = vsel %vm3428, %v3421, %v3425
        %v3430 = vand.u32 2147483647, %v1907
        %vm3431 = vcmp.eq.f32.partialorder %v3430, 8.507059e+37
        %v3432 = vand.u32 %v1907, 2147483648
        %v3433 = vor.u32 1.1754944e-38, %v3432
        %v3434 = vsel %vm3431, %v3433, %v3429
        %v3435 = vmul.f32 1.0, %v3434
        %v3436 = vrcp.pop %v1908
        %v3437 = vmul.f32 %v1908, %v3436
        %v3438 = vsub.f32 1.0, %v3437
        %v3439 = vmul.f32 %v3436, %v3438
        %v3440 = vadd.f32 %v3436, %v3439
        %vm3441 = vweird.f32 %v1908
        %vm3442 = vweird.f32 %v3436
        %vm3443 = vmor %vm3441, %vm3442
        %v3444 = vsel %vm3443, %v3436, %v3440
        %v3445 = vand.u32 2147483647, %v1908
        %vm3446 = vcmp.eq.f32.partialorder %v3445, 8.507059e+37
        %v3447 = vand.u32 %v1908, 2147483648
        %v3448 = vor.u32 1.1754944e-38, %v3447
        %v3449 = vsel %vm3446, %v3448, %v3444
        %v3450 = vmul.f32 1.0, %v3449
        %v3451 = vrcp.pop %v1909
        %v3452 = vmul.f32 %v1909, %v3451
        %v3453 = vsub.f32 1.0, %v3452
        %v3454 = vmul.f32 %v3451, %v3453
        %v3455 = vadd.f32 %v3451, %v3454
        %vm3456 = vweird.f32 %v1909
        %vm3457 = vweird.f32 %v3451
        %vm3458 = vmor %vm3456, %vm3457
        %v3459 = vsel %vm3458, %v3451, %v3455
        %v3460 = vand.u32 2147483647, %v1909
        %vm3461 = vcmp.eq.f32.partialorder %v3460, 8.507059e+37
        %v3462 = vand.u32 %v1909, 2147483648
        %v3463 = vor.u32 1.1754944e-38, %v3462
        %v3464 = vsel %vm3461, %v3463, %v3459
        %v3465 = vmul.f32 1.0, %v3464
        %v3466 = vrcp.pop %v1910
        %v3467 = vmul.f32 %v1910, %v3466
        %v3468 = vsub.f32 1.0, %v3467
        %v3469 = vmul.f32 %v3466, %v3468
        %v3470 = vadd.f32 %v3466, %v3469
        %vm3471 = vweird.f32 %v1910
        %vm3472 = vweird.f32 %v3466
        %vm3473 = vmor %vm3471, %vm3472
        %v3474 = vsel %vm3473, %v3466, %v3470
        %v3475 = vand.u32 2147483647, %v1910
        %vm3476 = vcmp.eq.f32.partialorder %v3475, 8.507059e+37
        %v3477 = vand.u32 %v1910, 2147483648
        %v3478 = vor.u32 1.1754944e-38, %v3477
        %v3479 = vsel %vm3476, %v3478, %v3474
        %v3480 = vmul.f32 1.0, %v3479
        %v3481 = vrcp.pop %v1911
        %v3482 = vmul.f32 %v1911, %v3481
        %v3483 = vsub.f32 1.0, %v3482
        %v3484 = vmul.f32 %v3481, %v3483
        %v3485 = vadd.f32 %v3481, %v3484
        %vm3486 = vweird.f32 %v1911
        %vm3487 = vweird.f32 %v3481
        %vm3488 = vmor %vm3486, %vm3487
        %v3489 = vsel %vm3488, %v3481, %v3485
        %v3490 = vand.u32 2147483647, %v1911
        %vm3491 = vcmp.eq.f32.partialorder %v3490, 8.507059e+37
        %v3492 = vand.u32 %v1911, 2147483648
        %v3493 = vor.u32 1.1754944e-38, %v3492
        %v3494 = vsel %vm3491, %v3493, %v3489
        %v3495 = vmul.f32 1.0, %v3494
        %v3496 = vrcp.pop %v1912
        %v3497 = vmul.f32 %v1912, %v3496
        %v3498 = vsub.f32 1.0, %v3497
        %v3499 = vmul.f32 %v3496, %v3498
        %v3500 = vadd.f32 %v3496, %v3499
        %vm3501 = vweird.f32 %v1912
        %vm3502 = vweird.f32 %v3496
        %vm3503 = vmor %vm3501, %vm3502
        %v3504 = vsel %vm3503, %v3496, %v3500
        %v3505 = vand.u32 2147483647, %v1912
        %vm3506 = vcmp.eq.f32.partialorder %v3505, 8.507059e+37
        %v3507 = vand.u32 %v1912, 2147483648
        %v3508 = vor.u32 1.1754944e-38, %v3507
        %v3509 = vsel %vm3506, %v3508, %v3504
        %v3510 = vmul.f32 1.0, %v3509
        %v3511 = vrcp.pop %v1913
        %v3512 = vmul.f32 %v1913, %v3511
        %v3513 = vsub.f32 1.0, %v3512
        %v3514 = vmul.f32 %v3511, %v3513
        %v3515 = vadd.f32 %v3511, %v3514
        %vm3516 = vweird.f32 %v1913
        %vm3517 = vweird.f32 %v3511
        %vm3518 = vmor %vm3516, %vm3517
        %v3519 = vsel %vm3518, %v3511, %v3515
        %v3520 = vand.u32 2147483647, %v1913
        %vm3521 = vcmp.eq.f32.partialorder %v3520, 8.507059e+37
        %v3522 = vand.u32 %v1913, 2147483648
        %v3523 = vor.u32 1.1754944e-38, %v3522
        %v3524 = vsel %vm3521, %v3523, %v3519
        %v3525 = vmul.f32 1.0, %v3524
        %v3526 = vrcp.pop %v1914
        %v3527 = vmul.f32 %v1914, %v3526
        %v3528 = vsub.f32 1.0, %v3527
        %v3529 = vmul.f32 %v3526, %v3528
        %v3530 = vadd.f32 %v3526, %v3529
        %vm3531 = vweird.f32 %v1914
        %vm3532 = vweird.f32 %v3526
        %vm3533 = vmor %vm3531, %vm3532
        %v3534 = vsel %vm3533, %v3526, %v3530
        %v3535 = vand.u32 2147483647, %v1914
        %vm3536 = vcmp.eq.f32.partialorder %v3535, 8.507059e+37
        %v3537 = vand.u32 %v1914, 2147483648
        %v3538 = vor.u32 1.1754944e-38, %v3537
        %v3539 = vsel %vm3536, %v3538, %v3534
        %v3540 = vmul.f32 1.0, %v3539
        %v3541 = vrcp.pop %v1915
        %v3542 = vmul.f32 %v1915, %v3541
        %v3543 = vsub.f32 1.0, %v3542
        %v3544 = vmul.f32 %v3541, %v3543
        %v3545 = vadd.f32 %v3541, %v3544
        %vm3546 = vweird.f32 %v1915
        %vm3547 = vweird.f32 %v3541
        %vm3548 = vmor %vm3546, %vm3547
        %v3549 = vsel %vm3548, %v3541, %v3545
        %v3550 = vand.u32 2147483647, %v1915
        %vm3551 = vcmp.eq.f32.partialorder %v3550, 8.507059e+37
        %v3552 = vand.u32 %v1915, 2147483648
        %v3553 = vor.u32 1.1754944e-38, %v3552
        %v3554 = vsel %vm3551, %v3553, %v3549
        %v3555 = vmul.f32 1.0, %v3554
        %v3556 = vrcp.pop %v1916
        %v3557 = vmul.f32 %v1916, %v3556
        %v3558 = vsub.f32 1.0, %v3557
        %v3559 = vmul.f32 %v3556, %v3558
        %v3560 = vadd.f32 %v3556, %v3559
        %vm3561 = vweird.f32 %v1916
        %vm3562 = vweird.f32 %v3556
        %vm3563 = vmor %vm3561, %vm3562
        %v3564 = vsel %vm3563, %v3556, %v3560
        %v3565 = vand.u32 2147483647, %v1916
        %vm3566 = vcmp.eq.f32.partialorder %v3565, 8.507059e+37
        %v3567 = vand.u32 %v1916, 2147483648
        %v3568 = vor.u32 1.1754944e-38, %v3567
        %v3569 = vsel %vm3566, %v3568, %v3564
        %v3570 = vmul.f32 1.0, %v3569
        %v3571 = vrcp.pop %v1917
        %v3572 = vmul.f32 %v1917, %v3571
        %v3573 = vsub.f32 1.0, %v3572
        %v3574 = vmul.f32 %v3571, %v3573
        %v3575 = vadd.f32 %v3571, %v3574
        %vm3576 = vweird.f32 %v1917
        %vm3577 = vweird.f32 %v3571
        %vm3578 = vmor %vm3576, %vm3577
        %v3579 = vsel %vm3578, %v3571, %v3575
        %v3580 = vand.u32 2147483647, %v1917
        %vm3581 = vcmp.eq.f32.partialorder %v3580, 8.507059e+37
        %v3582 = vand.u32 %v1917, 2147483648
        %v3583 = vor.u32 1.1754944e-38, %v3582
        %v3584 = vsel %vm3581, %v3583, %v3579
        %v3585 = vmul.f32 1.0, %v3584
        %v3586 = vrcp.pop %v1918
        %v3587 = vmul.f32 %v1918, %v3586
        %v3588 = vsub.f32 1.0, %v3587
        %v3589 = vmul.f32 %v3586, %v3588
        %v3590 = vadd.f32 %v3586, %v3589
        %vm3591 = vweird.f32 %v1918
        %vm3592 = vweird.f32 %v3586
        %vm3593 = vmor %vm3591, %vm3592
        %v3594 = vsel %vm3593, %v3586, %v3590
        %v3595 = vand.u32 2147483647, %v1918
        %vm3596 = vcmp.eq.f32.partialorder %v3595, 8.507059e+37
        %v3597 = vand.u32 %v1918, 2147483648
        %v3598 = vor.u32 1.1754944e-38, %v3597
        %v3599 = vsel %vm3596, %v3598, %v3594
        %v3600 = vmul.f32 1.0, %v3599
        %v3601 = vrcp.pop %v1919
        %v3602 = vmul.f32 %v1919, %v3601
        %v3603 = vsub.f32 1.0, %v3602
        %v3604 = vmul.f32 %v3601, %v3603
        %v3605 = vadd.f32 %v3601, %v3604
        %vm3606 = vweird.f32 %v1919
        %vm3607 = vweird.f32 %v3601
        %vm3608 = vmor %vm3606, %vm3607
        %v3609 = vsel %vm3608, %v3601, %v3605
        %v3610 = vand.u32 2147483647, %v1919
        %vm3611 = vcmp.eq.f32.partialorder %v3610, 8.507059e+37
        %v3612 = vand.u32 %v1919, 2147483648
        %v3613 = vor.u32 1.1754944e-38, %v3612
        %v3614 = vsel %vm3611, %v3613, %v3609
        %v3615 = vmul.f32 1.0, %v3614
        %v3616 = vrcp.pop %v1920
        %v3617 = vmul.f32 %v1920, %v3616
        %v3618 = vsub.f32 1.0, %v3617
        %v3619 = vmul.f32 %v3616, %v3618
        %v3620 = vadd.f32 %v3616, %v3619
        %vm3621 = vweird.f32 %v1920
        %vm3622 = vweird.f32 %v3616
        %vm3623 = vmor %vm3621, %vm3622
        %v3624 = vsel %vm3623, %v3616, %v3620
        %v3625 = vand.u32 2147483647, %v1920
        %vm3626 = vcmp.eq.f32.partialorder %v3625, 8.507059e+37
        %v3627 = vand.u32 %v1920, 2147483648
        %v3628 = vor.u32 1.1754944e-38, %v3627
        %v3629 = vsel %vm3626, %v3628, %v3624
        %v3630 = vmul.f32 1.0, %v3629
        %v3631 = vrcp.pop %v1921
        %v3632 = vmul.f32 %v1921, %v3631
        %v3633 = vsub.f32 1.0, %v3632
        %v3634 = vmul.f32 %v3631, %v3633
        %v3635 = vadd.f32 %v3631, %v3634
        %vm3636 = vweird.f32 %v1921
        %vm3637 = vweird.f32 %v3631
        %vm3638 = vmor %vm3636, %vm3637
        %v3639 = vsel %vm3638, %v3631, %v3635
        %v3640 = vand.u32 2147483647, %v1921
        %vm3641 = vcmp.eq.f32.partialorder %v3640, 8.507059e+37
        %v3642 = vand.u32 %v1921, 2147483648
        %v3643 = vor.u32 1.1754944e-38, %v3642
        %v3644 = vsel %vm3641, %v3643, %v3639
        %v3645 = vmul.f32 1.0, %v3644
        %v3646 = vrcp.pop %v1922
        %v3647 = vmul.f32 %v1922, %v3646
        %v3648 = vsub.f32 1.0, %v3647
        %v3649 = vmul.f32 %v3646, %v3648
        %v3650 = vadd.f32 %v3646, %v3649
        %vm3651 = vweird.f32 %v1922
        %vm3652 = vweird.f32 %v3646
        %vm3653 = vmor %vm3651, %vm3652
        %v3654 = vsel %vm3653, %v3646, %v3650
        %v3655 = vand.u32 2147483647, %v1922
        %vm3656 = vcmp.eq.f32.partialorder %v3655, 8.507059e+37
        %v3657 = vand.u32 %v1922, 2147483648
        %v3658 = vor.u32 1.1754944e-38, %v3657
        %v3659 = vsel %vm3656, %v3658, %v3654
        %v3660 = vmul.f32 1.0, %v3659
        %v3661 = vrcp.pop %v1923
        %v3662 = vmul.f32 %v1923, %v3661
        %v3663 = vsub.f32 1.0, %v3662
        %v3664 = vmul.f32 %v3661, %v3663
        %v3665 = vadd.f32 %v3661, %v3664
        %vm3666 = vweird.f32 %v1923
        %vm3667 = vweird.f32 %v3661
        %vm3668 = vmor %vm3666, %vm3667
        %v3669 = vsel %vm3668, %v3661, %v3665
        %v3670 = vand.u32 2147483647, %v1923
        %vm3671 = vcmp.eq.f32.partialorder %v3670, 8.507059e+37
        %v3672 = vand.u32 %v1923, 2147483648
        %v3673 = vor.u32 1.1754944e-38, %v3672
        %v3674 = vsel %vm3671, %v3673, %v3669
        %v3675 = vmul.f32 1.0, %v3674
        %v3676 = vrcp.pop %v1924
        %v3677 = vmul.f32 %v1924, %v3676
        %v3678 = vsub.f32 1.0, %v3677
        %v3679 = vmul.f32 %v3676, %v3678
        %v3680 = vadd.f32 %v3676, %v3679
        %vm3681 = vweird.f32 %v1924
        %vm3682 = vweird.f32 %v3676
        %vm3683 = vmor %vm3681, %vm3682
        %v3684 = vsel %vm3683, %v3676, %v3680
        %v3685 = vand.u32 2147483647, %v1924
        %vm3686 = vcmp.eq.f32.partialorder %v3685, 8.507059e+37
        %v3687 = vand.u32 %v1924, 2147483648
        %v3688 = vor.u32 1.1754944e-38, %v3687
        %v3689 = vsel %vm3686, %v3688, %v3684
        %v3690 = vmul.f32 1.0, %v3689
        %v3691 = vrcp.pop %v1925
        %v3692 = vmul.f32 %v1925, %v3691
        %v3693 = vsub.f32 1.0, %v3692
        %v3694 = vmul.f32 %v3691, %v3693
        %v3695 = vadd.f32 %v3691, %v3694
        %vm3696 = vweird.f32 %v1925
        %vm3697 = vweird.f32 %v3691
        %vm3698 = vmor %vm3696, %vm3697
        %v3699 = vsel %vm3698, %v3691, %v3695
        %v3700 = vand.u32 2147483647, %v1925
        %vm3701 = vcmp.eq.f32.partialorder %v3700, 8.507059e+37
        %v3702 = vand.u32 %v1925, 2147483648
        %v3703 = vor.u32 1.1754944e-38, %v3702
        %v3704 = vsel %vm3701, %v3703, %v3699
        %v3705 = vmul.f32 1.0, %v3704
        %v3706 = vrcp.pop %v1926
        %v3707 = vmul.f32 %v1926, %v3706
        %v3708 = vsub.f32 1.0, %v3707
        %v3709 = vmul.f32 %v3706, %v3708
        %v3710 = vadd.f32 %v3706, %v3709
        %vm3711 = vweird.f32 %v1926
        %vm3712 = vweird.f32 %v3706
        %vm3713 = vmor %vm3711, %vm3712
        %v3714 = vsel %vm3713, %v3706, %v3710
        %v3715 = vand.u32 2147483647, %v1926
        %vm3716 = vcmp.eq.f32.partialorder %v3715, 8.507059e+37
        %v3717 = vand.u32 %v1926, 2147483648
        %v3718 = vor.u32 1.1754944e-38, %v3717
        %v3719 = vsel %vm3716, %v3718, %v3714
        %v3720 = vmul.f32 1.0, %v3719
        %v3721 = vrcp.pop %v1927
        %v3722 = vmul.f32 %v1927, %v3721
        %v3723 = vsub.f32 1.0, %v3722
        %v3724 = vmul.f32 %v3721, %v3723
        %v3725 = vadd.f32 %v3721, %v3724
        %vm3726 = vweird.f32 %v1927
        %vm3727 = vweird.f32 %v3721
        %vm3728 = vmor %vm3726, %vm3727
        %v3729 = vsel %vm3728, %v3721, %v3725
        %v3730 = vand.u32 2147483647, %v1927
        %vm3731 = vcmp.eq.f32.partialorder %v3730, 8.507059e+37
        %v3732 = vand.u32 %v1927, 2147483648
        %v3733 = vor.u32 1.1754944e-38, %v3732
        %v3734 = vsel %vm3731, %v3733, %v3729
        %v3735 = vmul.f32 1.0, %v3734
        %v3736 = vrcp.pop %v1928
        %v3737 = vmul.f32 %v1928, %v3736
        %v3738 = vsub.f32 1.0, %v3737
        %v3739 = vmul.f32 %v3736, %v3738
        %v3740 = vadd.f32 %v3736, %v3739
        %vm3741 = vweird.f32 %v1928
        %vm3742 = vweird.f32 %v3736
        %vm3743 = vmor %vm3741, %vm3742
        %v3744 = vsel %vm3743, %v3736, %v3740
        %v3745 = vand.u32 2147483647, %v1928
        %vm3746 = vcmp.eq.f32.partialorder %v3745, 8.507059e+37
        %v3747 = vand.u32 %v1928, 2147483648
        %v3748 = vor.u32 1.1754944e-38, %v3747
        %v3749 = vsel %vm3746, %v3748, %v3744
        %v3750 = vmul.f32 1.0, %v3749
        %v3751 = vrcp.pop %v1929
        %v3752 = vmul.f32 %v1929, %v3751
        %v3753 = vsub.f32 1.0, %v3752
        %v3754 = vmul.f32 %v3751, %v3753
        %v3755 = vadd.f32 %v3751, %v3754
        %vm3756 = vweird.f32 %v1929
        %vm3757 = vweird.f32 %v3751
        %vm3758 = vmor %vm3756, %vm3757
        %v3759 = vsel %vm3758, %v3751, %v3755
        %v3760 = vand.u32 2147483647, %v1929
        %vm3761 = vcmp.eq.f32.partialorder %v3760, 8.507059e+37
        %v3762 = vand.u32 %v1929, 2147483648
        %v3763 = vor.u32 1.1754944e-38, %v3762
        %v3764 = vsel %vm3761, %v3763, %v3759
        %v3765 = vmul.f32 1.0, %v3764
        %v3766 = vrcp.pop %v1930
        %v3767 = vmul.f32 %v1930, %v3766
        %v3768 = vsub.f32 1.0, %v3767
        %v3769 = vmul.f32 %v3766, %v3768
        %v3770 = vadd.f32 %v3766, %v3769
        %vm3771 = vweird.f32 %v1930
        %vm3772 = vweird.f32 %v3766
        %vm3773 = vmor %vm3771, %vm3772
        %v3774 = vsel %vm3773, %v3766, %v3770
        %v3775 = vand.u32 2147483647, %v1930
        %vm3776 = vcmp.eq.f32.partialorder %v3775, 8.507059e+37
        %v3777 = vand.u32 %v1930, 2147483648
        %v3778 = vor.u32 1.1754944e-38, %v3777
        %v3779 = vsel %vm3776, %v3778, %v3774
        %v3780 = vmul.f32 1.0, %v3779
        %v3781 = vrcp.pop %v1931
        %v3782 = vmul.f32 %v1931, %v3781
        %v3783 = vsub.f32 1.0, %v3782
        %v3784 = vmul.f32 %v3781, %v3783
        %v3785 = vadd.f32 %v3781, %v3784
        %vm3786 = vweird.f32 %v1931
        %vm3787 = vweird.f32 %v3781
        %vm3788 = vmor %vm3786, %vm3787
        %v3789 = vsel %vm3788, %v3781, %v3785
        %v3790 = vand.u32 2147483647, %v1931
        %vm3791 = vcmp.eq.f32.partialorder %v3790, 8.507059e+37
        %v3792 = vand.u32 %v1931, 2147483648
        %v3793 = vor.u32 1.1754944e-38, %v3792
        %v3794 = vsel %vm3791, %v3793, %v3789
        %v3795 = vmul.f32 1.0, %v3794
        %v3796 = vrcp.pop %v1932
        %v3797 = vmul.f32 %v1932, %v3796
        %v3798 = vsub.f32 1.0, %v3797
        %v3799 = vmul.f32 %v3796, %v3798
        %v3800 = vadd.f32 %v3796, %v3799
        %vm3801 = vweird.f32 %v1932
        %vm3802 = vweird.f32 %v3796
        %vm3803 = vmor %vm3801, %vm3802
        %v3804 = vsel %vm3803, %v3796, %v3800
        %v3805 = vand.u32 2147483647, %v1932
        %vm3806 = vcmp.eq.f32.partialorder %v3805, 8.507059e+37
        %v3807 = vand.u32 %v1932, 2147483648
        %v3808 = vor.u32 1.1754944e-38, %v3807
        %v3809 = vsel %vm3806, %v3808, %v3804
        %v3810 = vmul.f32 1.0, %v3809
        %v3811 = vrcp.pop %v1933
        %v3812 = vmul.f32 %v1933, %v3811
        %v3813 = vsub.f32 1.0, %v3812
        %v3814 = vmul.f32 %v3811, %v3813
        %v3815 = vadd.f32 %v3811, %v3814
        %vm3816 = vweird.f32 %v1933
        %vm3817 = vweird.f32 %v3811
        %vm3818 = vmor %vm3816, %vm3817
        %v3819 = vsel %vm3818, %v3811, %v3815
        %v3820 = vand.u32 2147483647, %v1933
        %vm3821 = vcmp.eq.f32.partialorder %v3820, 8.507059e+37
        %v3822 = vand.u32 %v1933, 2147483648
        %v3823 = vor.u32 1.1754944e-38, %v3822
        %v3824 = vsel %vm3821, %v3823, %v3819
        %v3825 = vmul.f32 1.0, %v3824
        %v3826 = vrcp.pop %v1934
        %v3827 = vmul.f32 %v1934, %v3826
        %v3828 = vsub.f32 1.0, %v3827
        %v3829 = vmul.f32 %v3826, %v3828
        %v3830 = vadd.f32 %v3826, %v3829
        %vm3831 = vweird.f32 %v1934
        %vm3832 = vweird.f32 %v3826
        %vm3833 = vmor %vm3831, %vm3832
        %v3834 = vsel %vm3833, %v3826, %v3830
        %v3835 = vand.u32 2147483647, %v1934
        %vm3836 = vcmp.eq.f32.partialorder %v3835, 8.507059e+37
        %v3837 = vand.u32 %v1934, 2147483648
        %v3838 = vor.u32 1.1754944e-38, %v3837
        %v3839 = vsel %vm3836, %v3838, %v3834
        %v3840 = vmul.f32 1.0, %v3839
        %v3841 = vrcp.pop %v1935
        %v3842 = vmul.f32 %v1935, %v3841
        %v3843 = vsub.f32 1.0, %v3842
        %v3844 = vmul.f32 %v3841, %v3843
        %v3845 = vadd.f32 %v3841, %v3844
        %vm3846 = vweird.f32 %v1935
        %vm3847 = vweird.f32 %v3841
        %vm3848 = vmor %vm3846, %vm3847
        %v3849 = vsel %vm3848, %v3841, %v3845
        %v3850 = vand.u32 2147483647, %v1935
        %vm3851 = vcmp.eq.f32.partialorder %v3850, 8.507059e+37
        %v3852 = vand.u32 %v1935, 2147483648
        %v3853 = vor.u32 1.1754944e-38, %v3852
        %v3854 = vsel %vm3851, %v3853, %v3849
        %v3855 = vmul.f32 1.0, %v3854
        %v3856 = vmul.f32 %v1078, %v1950
        %v3857 = vmul.f32 %v1167, %v1965
        %v3858 = vmul.f32 %v1256, %v1980
        %v3859 = vmul.f32 %v1345, %v1995
        %v3860 = vmul.f32 %v1080, %v2010
        %v3861 = vmul.f32 %v1169, %v2025
        %v3862 = vmul.f32 %v1258, %v2040
        %v3863 = vmul.f32 %v1347, %v2055
        %v3864 = vmul.f32 %v1083, %v2070
        %v3865 = vmul.f32 %v1172, %v2085
        %v3866 = vmul.f32 %v1261, %v2100
        %v3867 = vmul.f32 %v1350, %v2115
        %v3868 = vmul.f32 %v1085, %v2130
        %v3869 = vmul.f32 %v1174, %v2145
        %v3870 = vmul.f32 %v1263, %v2160
        %v3871 = vmul.f32 %v1352, %v2175
        %v3872 = vmul.f32 %v1088, %v2190
        %v3873 = vmul.f32 %v1177, %v2205
        %v3874 = vmul.f32 %v1266, %v2220
        %v3875 = vmul.f32 %v1355, %v2235
        %v3876 = vmul.f32 %v1090, %v2250
        %v3877 = vmul.f32 %v1179, %v2265
        %v3878 = vmul.f32 %v1268, %v2280
        %v3879 = vmul.f32 %v1357, %v2295
        %v3880 = vmul.f32 %v1093, %v2310
        %v3881 = vmul.f32 %v1182, %v2325
        %v3882 = vmul.f32 %v1271, %v2340
        %v3883 = vmul.f32 %v1360, %v2355
        %v3884 = vmul.f32 %v1095, %v2370
        %v3885 = vmul.f32 %v1184, %v2385
        %v3886 = vmul.f32 %v1273, %v2400
        %v3887 = vmul.f32 %v1362, %v2415
        %v3888 = vmul.f32 %v1098, %v2430
        %v3889 = vmul.f32 %v1187, %v2445
        %v3890 = vmul.f32 %v1276, %v2460
        %v3891 = vmul.f32 %v1365, %v2475
        %v3892 = vmul.f32 %v1100, %v2490
        %v3893 = vmul.f32 %v1189, %v2505
        %v3894 = vmul.f32 %v1278, %v2520
        %v3895 = vmul.f32 %v1367, %v2535
        %v3896 = vmul.f32 %v1103, %v2550
        %v3897 = vmul.f32 %v1192, %v2565
        %v3898 = vmul.f32 %v1281, %v2580
        %v3899 = vmul.f32 %v1370, %v2595
        %v3900 = vmul.f32 %v1105, %v2610
        %v3901 = vmul.f32 %v1194, %v2625
        %v3902 = vmul.f32 %v1283, %v2640
        %v3903 = vmul.f32 %v1372, %v2655
        %v3904 = vmul.f32 %v1108, %v2670
        %v3905 = vmul.f32 %v1197, %v2685
        %v3906 = vmul.f32 %v1286, %v2700
        %v3907 = vmul.f32 %v1375, %v2715
        %v3908 = vmul.f32 %v1110, %v2730
        %v3909 = vmul.f32 %v1199, %v2745
        %v3910 = vmul.f32 %v1288, %v2760
        %v3911 = vmul.f32 %v1377, %v2775
        %v3912 = vmul.f32 %v1113, %v2790
        %v3913 = vmul.f32 %v1202, %v2805
        %v3914 = vmul.f32 %v1291, %v2820
        %v3915 = vmul.f32 %v1380, %v2835
        %v3916 = vmul.f32 %v1115, %v2850
        %v3917 = vmul.f32 %v1204, %v2865
        %v3918 = vmul.f32 %v1293, %v2880
        %v3919 = vmul.f32 %v1382, %v2895
        %v3920 = vmul.f32 %v1118, %v2910
        %v3921 = vmul.f32 %v1207, %v2925
        %v3922 = vmul.f32 %v1296, %v2940
        %v3923 = vmul.f32 %v1385, %v2955
        %v3924 = vmul.f32 %v1120, %v2970
        %v3925 = vmul.f32 %v1209, %v2985
        %v3926 = vmul.f32 %v1298, %v3000
        %v3927 = vmul.f32 %v1387, %v3015
        %v3928 = vmul.f32 %v1123, %v3030
        %v3929 = vmul.f32 %v1212, %v3045
        %v3930 = vmul.f32 %v1301, %v3060
        %v3931 = vmul.f32 %v1390, %v3075
        %v3932 = vmul.f32 %v1125, %v3090
        %v3933 = vmul.f32 %v1214, %v3105
        %v3934 = vmul.f32 %v1303, %v3120
        %v3935 = vmul.f32 %v1392, %v3135
        %v3936 = vmul.f32 %v1128, %v3150
        %v3937 = vmul.f32 %v1217, %v3165
        %v3938 = vmul.f32 %v1306, %v3180
        %v3939 = vmul.f32 %v1395, %v3195
        %v3940 = vmul.f32 %v1130, %v3210
        %v3941 = vmul.f32 %v1219, %v3225
        %v3942 = vmul.f32 %v1308, %v3240
        %v3943 = vmul.f32 %v1397, %v3255
        %v3944 = vmul.f32 %v1133, %v3270
        %v3945 = vmul.f32 %v1222, %v3285
        %v3946 = vmul.f32 %v1311, %v3300
        %v3947 = vmul.f32 %v1400, %v3315
        %v3948 = vmul.f32 %v1135, %v3330
        %v3949 = vmul.f32 %v1224, %v3345
        %v3950 = vmul.f32 %v1313, %v3360
        %v3951 = vmul.f32 %v1402, %v3375
        %v3952 = vmul.f32 %v1138, %v3390
        %v3953 = vmul.f32 %v1227, %v3405
        %v3954 = vmul.f32 %v1316, %v3420
        %v3955 = vmul.f32 %v1405, %v3435
        %v3956 = vmul.f32 %v1140, %v3450
        %v3957 = vmul.f32 %v1229, %v3465
        %v3958 = vmul.f32 %v1318, %v3480
        %v3959 = vmul.f32 %v1407, %v3495
        %v3960 = vmul.f32 %v1143, %v3510
        %v3961 = vmul.f32 %v1232, %v3525
        %v3962 = vmul.f32 %v1321, %v3540
        %v3963 = vmul.f32 %v1410, %v3555
        %v3964 = vmul.f32 %v1145, %v3570
        %v3965 = vmul.f32 %v1234, %v3585
        %v3966 = vmul.f32 %v1323, %v3600
        %v3967 = vmul.f32 %v1412, %v3615
        %v3968 = vmul.f32 %v1148, %v3630
        %v3969 = vmul.f32 %v1237, %v3645
        %v3970 = vmul.f32 %v1326, %v3660
        %v3971 = vmul.f32 %v1415, %v3675
        %v3972 = vmul.f32 %v1150, %v3690
        %v3973 = vmul.f32 %v1239, %v3705
        %v3974 = vmul.f32 %v1328, %v3720
        %v3975 = vmul.f32 %v1417, %v3735
        %v3976 = vmul.f32 %v1153, %v3750
        %v3977 = vmul.f32 %v1242, %v3765
        %v3978 = vmul.f32 %v1331, %v3780
        %v3979 = vmul.f32 %v1420, %v3795
        %v3980 = vmul.f32 %v1155, %v3810
        %v3981 = vmul.f32 %v1244, %v3825
        %v3982 = vmul.f32 %v1333, %v3840
        %v3983 = vmul.f32 %v1422, %v3855
        %v3984 = vpack.c.bf16 %v3857, %v3856
        %v3985 = vpack.c.bf16 %v3859, %v3858
        %v3986 = vpack.c.bf16 %v3861, %v3860
        %v3987 = vpack.c.bf16 %v3863, %v3862
        %v3988 = vpack.c.bf16 %v3865, %v3864
        %v3989 = vpack.c.bf16 %v3867, %v3866
        %v3990 = vpack.c.bf16 %v3869, %v3868
        %v3991 = vpack.c.bf16 %v3871, %v3870
        %v3992 = vpack.c.bf16 %v3873, %v3872
        %v3993 = vpack.c.bf16 %v3875, %v3874
        %v3994 = vpack.c.bf16 %v3877, %v3876
        %v3995 = vpack.c.bf16 %v3879, %v3878
        %v3996 = vpack.c.bf16 %v3881, %v3880
        %v3997 = vpack.c.bf16 %v3883, %v3882
        %v3998 = vpack.c.bf16 %v3885, %v3884
        %v3999 = vpack.c.bf16 %v3887, %v3886
        %v4000 = vpack.c.bf16 %v3889, %v3888
        %v4001 = vpack.c.bf16 %v3891, %v3890
        %v4002 = vpack.c.bf16 %v3893, %v3892
        %v4003 = vpack.c.bf16 %v3895, %v3894
        %v4004 = vpack.c.bf16 %v3897, %v3896
        %v4005 = vpack.c.bf16 %v3899, %v3898
        %v4006 = vpack.c.bf16 %v3901, %v3900
        %v4007 = vpack.c.bf16 %v3903, %v3902
        %v4008 = vpack.c.bf16 %v3905, %v3904
        %v4009 = vpack.c.bf16 %v3907, %v3906
        %v4010 = vpack.c.bf16 %v3909, %v3908
        %v4011 = vpack.c.bf16 %v3911, %v3910
        %v4012 = vpack.c.bf16 %v3913, %v3912
        %v4013 = vpack.c.bf16 %v3915, %v3914
        %v4014 = vpack.c.bf16 %v3917, %v3916
        %v4015 = vpack.c.bf16 %v3919, %v3918
        %v4016 = vpack.c.bf16 %v3921, %v3920
        %v4017 = vpack.c.bf16 %v3923, %v3922
        %v4018 = vpack.c.bf16 %v3925, %v3924
        %v4019 = vpack.c.bf16 %v3927, %v3926
        %v4020 = vpack.c.bf16 %v3929, %v3928
        %v4021 = vpack.c.bf16 %v3931, %v3930
        %v4022 = vpack.c.bf16 %v3933, %v3932
        %v4023 = vpack.c.bf16 %v3935, %v3934
        %v4024 = vpack.c.bf16 %v3937, %v3936
        %v4025 = vpack.c.bf16 %v3939, %v3938
        %v4026 = vpack.c.bf16 %v3941, %v3940
        %v4027 = vpack.c.bf16 %v3943, %v3942
        %v4028 = vpack.c.bf16 %v3945, %v3944
        %v4029 = vpack.c.bf16 %v3947, %v3946
        %v4030 = vpack.c.bf16 %v3949, %v3948
        %v4031 = vpack.c.bf16 %v3951, %v3950
        %v4032 = vpack.c.bf16 %v3953, %v3952
        %v4033 = vpack.c.bf16 %v3955, %v3954
        %v4034 = vpack.c.bf16 %v3957, %v3956
        %v4035 = vpack.c.bf16 %v3959, %v3958
        %v4036 = vpack.c.bf16 %v3961, %v3960
        %v4037 = vpack.c.bf16 %v3963, %v3962
        %v4038 = vpack.c.bf16 %v3965, %v3964
        %v4039 = vpack.c.bf16 %v3967, %v3966
        %v4040 = vpack.c.bf16 %v3969, %v3968
        %v4041 = vpack.c.bf16 %v3971, %v3970
        %v4042 = vpack.c.bf16 %v3973, %v3972
        %v4043 = vpack.c.bf16 %v3975, %v3974
        %v4044 = vpack.c.bf16 %v3977, %v3976
        %v4045 = vpack.c.bf16 %v3979, %v3978
        %v4046 = vpack.c.bf16 %v3981, %v3980
        %v4047 = vpack.c.bf16 %v3983, %v3982
        %v4048 = vld [vmem:[%s309] sm:$0xf]
        %4050 = vst [vmem:[#allocation1] ss:$9 sm:$0xff] %v4048
        %v4051 = vld [vmem:[#allocation1] sm:$0xff]
        %v4052 = vld [vmem:[#allocation1 + $0x9] sm:$0xff]
        %v4053 = vld [vmem:[#allocation1 + $0x12] sm:$0xff]
        %v4054 = vld [vmem:[#allocation1 + $0x1b] sm:$0xff]
        %v4055 = vpack.i.b16 %v4051, %v4051
        %v4057 = vperm.slane %v4055, 0
        %v4058 = vpack.i.b16 %v4052, %v4052
        %v4060 = vperm.slane %v4058, 0
        %v4061 = vpack.i.b16 %v4053, %v4053
        %v4063 = vperm.slane %v4061, 0
        %v4064 = vpack.i.b16 %v4054, %v4054
        %v4066 = vperm.slane %v4064, 0
        %v4067 = vunpack.c.l.bf16 %v3984
        %v4068 = vunpack.c.h.bf16 %v3984
        %v4069 = vunpack.c.l.bf16 %v3985
        %v4070 = vunpack.c.h.bf16 %v3985
        %v4071 = vunpack.c.l.bf16 %v3986
        %v4072 = vunpack.c.h.bf16 %v3986
        %v4073 = vunpack.c.l.bf16 %v3987
        %v4074 = vunpack.c.h.bf16 %v3987
        %v4075 = vunpack.c.l.bf16 %v3988
        %v4076 = vunpack.c.h.bf16 %v3988
        %v4077 = vunpack.c.l.bf16 %v3989
        %v4078 = vunpack.c.h.bf16 %v3989
        %v4079 = vunpack.c.l.bf16 %v3990
        %v4080 = vunpack.c.h.bf16 %v3990
        %v4081 = vunpack.c.l.bf16 %v3991
        %v4082 = vunpack.c.h.bf16 %v3991
        %v4083 = vunpack.c.l.bf16 %v3992
        %v4084 = vunpack.c.h.bf16 %v3992
        %v4085 = vunpack.c.l.bf16 %v3993
        %v4086 = vunpack.c.h.bf16 %v3993
        %v4087 = vunpack.c.l.bf16 %v3994
        %v4088 = vunpack.c.h.bf16 %v3994
        %v4089 = vunpack.c.l.bf16 %v3995
        %v4090 = vunpack.c.h.bf16 %v3995
        %v4091 = vunpack.c.l.bf16 %v3996
        %v4092 = vunpack.c.h.bf16 %v3996
        %v4093 = vunpack.c.l.bf16 %v3997
        %v4094 = vunpack.c.h.bf16 %v3997
        %v4095 = vunpack.c.l.bf16 %v3998
        %v4096 = vunpack.c.h.bf16 %v3998
        %v4097 = vunpack.c.l.bf16 %v3999
        %v4098 = vunpack.c.h.bf16 %v3999
        %v4099 = vunpack.c.l.bf16 %v4000
        %v4100 = vunpack.c.h.bf16 %v4000
        %v4101 = vunpack.c.l.bf16 %v4001
        %v4102 = vunpack.c.h.bf16 %v4001
        %v4103 = vunpack.c.l.bf16 %v4002
        %v4104 = vunpack.c.h.bf16 %v4002
        %v4105 = vunpack.c.l.bf16 %v4003
        %v4106 = vunpack.c.h.bf16 %v4003
        %v4107 = vunpack.c.l.bf16 %v4004
        %v4108 = vunpack.c.h.bf16 %v4004
        %v4109 = vunpack.c.l.bf16 %v4005
        %v4110 = vunpack.c.h.bf16 %v4005
        %v4111 = vunpack.c.l.bf16 %v4006
        %v4112 = vunpack.c.h.bf16 %v4006
        %v4113 = vunpack.c.l.bf16 %v4007
        %v4114 = vunpack.c.h.bf16 %v4007
        %v4115 = vunpack.c.l.bf16 %v4008
        %v4116 = vunpack.c.h.bf16 %v4008
        %v4117 = vunpack.c.l.bf16 %v4009
        %v4118 = vunpack.c.h.bf16 %v4009
        %v4119 = vunpack.c.l.bf16 %v4010
        %v4120 = vunpack.c.h.bf16 %v4010
        %v4121 = vunpack.c.l.bf16 %v4011
        %v4122 = vunpack.c.h.bf16 %v4011
        %v4123 = vunpack.c.l.bf16 %v4012
        %v4124 = vunpack.c.h.bf16 %v4012
        %v4125 = vunpack.c.l.bf16 %v4013
        %v4126 = vunpack.c.h.bf16 %v4013
        %v4127 = vunpack.c.l.bf16 %v4014
        %v4128 = vunpack.c.h.bf16 %v4014
        %v4129 = vunpack.c.l.bf16 %v4015
        %v4130 = vunpack.c.h.bf16 %v4015
        %v4131 = vunpack.c.l.bf16 %v4016
        %v4132 = vunpack.c.h.bf16 %v4016
        %v4133 = vunpack.c.l.bf16 %v4017
        %v4134 = vunpack.c.h.bf16 %v4017
        %v4135 = vunpack.c.l.bf16 %v4018
        %v4136 = vunpack.c.h.bf16 %v4018
        %v4137 = vunpack.c.l.bf16 %v4019
        %v4138 = vunpack.c.h.bf16 %v4019
        %v4139 = vunpack.c.l.bf16 %v4020
        %v4140 = vunpack.c.h.bf16 %v4020
        %v4141 = vunpack.c.l.bf16 %v4021
        %v4142 = vunpack.c.h.bf16 %v4021
        %v4143 = vunpack.c.l.bf16 %v4022
        %v4144 = vunpack.c.h.bf16 %v4022
        %v4145 = vunpack.c.l.bf16 %v4023
        %v4146 = vunpack.c.h.bf16 %v4023
        %v4147 = vunpack.c.l.bf16 %v4024
        %v4148 = vunpack.c.h.bf16 %v4024
        %v4149 = vunpack.c.l.bf16 %v4025
        %v4150 = vunpack.c.h.bf16 %v4025
        %v4151 = vunpack.c.l.bf16 %v4026
        %v4152 = vunpack.c.h.bf16 %v4026
        %v4153 = vunpack.c.l.bf16 %v4027
        %v4154 = vunpack.c.h.bf16 %v4027
        %v4155 = vunpack.c.l.bf16 %v4028
        %v4156 = vunpack.c.h.bf16 %v4028
        %v4157 = vunpack.c.l.bf16 %v4029
        %v4158 = vunpack.c.h.bf16 %v4029
        %v4159 = vunpack.c.l.bf16 %v4030
        %v4160 = vunpack.c.h.bf16 %v4030
        %v4161 = vunpack.c.l.bf16 %v4031
        %v4162 = vunpack.c.h.bf16 %v4031
        %v4163 = vunpack.c.l.bf16 %v4032
        %v4164 = vunpack.c.h.bf16 %v4032
        %v4165 = vunpack.c.l.bf16 %v4033
        %v4166 = vunpack.c.h.bf16 %v4033
        %v4167 = vunpack.c.l.bf16 %v4034
        %v4168 = vunpack.c.h.bf16 %v4034
        %v4169 = vunpack.c.l.bf16 %v4035
        %v4170 = vunpack.c.h.bf16 %v4035
        %v4171 = vunpack.c.l.bf16 %v4036
        %v4172 = vunpack.c.h.bf16 %v4036
        %v4173 = vunpack.c.l.bf16 %v4037
        %v4174 = vunpack.c.h.bf16 %v4037
        %v4175 = vunpack.c.l.bf16 %v4038
        %v4176 = vunpack.c.h.bf16 %v4038
        %v4177 = vunpack.c.l.bf16 %v4039
        %v4178 = vunpack.c.h.bf16 %v4039
        %v4179 = vunpack.c.l.bf16 %v4040
        %v4180 = vunpack.c.h.bf16 %v4040
        %v4181 = vunpack.c.l.bf16 %v4041
        %v4182 = vunpack.c.h.bf16 %v4041
        %v4183 = vunpack.c.l.bf16 %v4042
        %v4184 = vunpack.c.h.bf16 %v4042
        %v4185 = vunpack.c.l.bf16 %v4043
        %v4186 = vunpack.c.h.bf16 %v4043
        %v4187 = vunpack.c.l.bf16 %v4044
        %v4188 = vunpack.c.h.bf16 %v4044
        %v4189 = vunpack.c.l.bf16 %v4045
        %v4190 = vunpack.c.h.bf16 %v4045
        %v4191 = vunpack.c.l.bf16 %v4046
        %v4192 = vunpack.c.h.bf16 %v4046
        %v4193 = vunpack.c.l.bf16 %v4047
        %v4194 = vunpack.c.h.bf16 %v4047
        %v4195 = vunpack.c.l.bf16 %v4057
        %v4196 = vunpack.c.l.bf16 %v4060
        %v4197 = vunpack.c.l.bf16 %v4063
        %v4198 = vunpack.c.l.bf16 %v4066
        %v4199 = vmul.f32 %v4067, %v4195
        %v4200 = vmul.f32 %v4068, %v4196
        %v4201 = vmul.f32 %v4069, %v4197
        %v4202 = vmul.f32 %v4070, %v4198
        %v4203 = vmul.f32 %v4071, %v4195
        %v4204 = vmul.f32 %v4072, %v4196
        %v4205 = vmul.f32 %v4073, %v4197
        %v4206 = vmul.f32 %v4074, %v4198
        %v4207 = vmul.f32 %v4075, %v4195
        %v4208 = vmul.f32 %v4076, %v4196
        %v4209 = vmul.f32 %v4077, %v4197
        %v4210 = vmul.f32 %v4078, %v4198
        %v4211 = vmul.f32 %v4079, %v4195
        %v4212 = vmul.f32 %v4080, %v4196
        %v4213 = vmul.f32 %v4081, %v4197
        %v4214 = vmul.f32 %v4082, %v4198
        %v4215 = vmul.f32 %v4083, %v4195
        %v4216 = vmul.f32 %v4084, %v4196
        %v4217 = vmul.f32 %v4085, %v4197
        %v4218 = vmul.f32 %v4086, %v4198
        %v4219 = vmul.f32 %v4087, %v4195
        %v4220 = vmul.f32 %v4088, %v4196
        %v4221 = vmul.f32 %v4089, %v4197
        %v4222 = vmul.f32 %v4090, %v4198
        %v4223 = vmul.f32 %v4091, %v4195
        %v4224 = vmul.f32 %v4092, %v4196
        %v4225 = vmul.f32 %v4093, %v4197
        %v4226 = vmul.f32 %v4094, %v4198
        %v4227 = vmul.f32 %v4095, %v4195
        %v4228 = vmul.f32 %v4096, %v4196
        %v4229 = vmul.f32 %v4097, %v4197
        %v4230 = vmul.f32 %v4098, %v4198
        %v4231 = vmul.f32 %v4099, %v4195
        %v4232 = vmul.f32 %v4100, %v4196
        %v4233 = vmul.f32 %v4101, %v4197
        %v4234 = vmul.f32 %v4102, %v4198
        %v4235 = vmul.f32 %v4103, %v4195
        %v4236 = vmul.f32 %v4104, %v4196
        %v4237 = vmul.f32 %v4105, %v4197
        %v4238 = vmul.f32 %v4106, %v4198
        %v4239 = vmul.f32 %v4107, %v4195
        %v4240 = vmul.f32 %v4108, %v4196
        %v4241 = vmul.f32 %v4109, %v4197
        %v4242 = vmul.f32 %v4110, %v4198
        %v4243 = vmul.f32 %v4111, %v4195
        %v4244 = vmul.f32 %v4112, %v4196
        %v4245 = vmul.f32 %v4113, %v4197
        %v4246 = vmul.f32 %v4114, %v4198
        %v4247 = vmul.f32 %v4115, %v4195
        %v4248 = vmul.f32 %v4116, %v4196
        %v4249 = vmul.f32 %v4117, %v4197
        %v4250 = vmul.f32 %v4118, %v4198
        %v4251 = vmul.f32 %v4119, %v4195
        %v4252 = vmul.f32 %v4120, %v4196
        %v4253 = vmul.f32 %v4121, %v4197
        %v4254 = vmul.f32 %v4122, %v4198
        %v4255 = vmul.f32 %v4123, %v4195
        %v4256 = vmul.f32 %v4124, %v4196
        %v4257 = vmul.f32 %v4125, %v4197
        %v4258 = vmul.f32 %v4126, %v4198
        %v4259 = vmul.f32 %v4127, %v4195
        %v4260 = vmul.f32 %v4128, %v4196
        %v4261 = vmul.f32 %v4129, %v4197
        %v4262 = vmul.f32 %v4130, %v4198
        %v4263 = vmul.f32 %v4131, %v4195
        %v4264 = vmul.f32 %v4132, %v4196
        %v4265 = vmul.f32 %v4133, %v4197
        %v4266 = vmul.f32 %v4134, %v4198
        %v4267 = vmul.f32 %v4135, %v4195
        %v4268 = vmul.f32 %v4136, %v4196
        %v4269 = vmul.f32 %v4137, %v4197
        %v4270 = vmul.f32 %v4138, %v4198
        %v4271 = vmul.f32 %v4139, %v4195
        %v4272 = vmul.f32 %v4140, %v4196
        %v4273 = vmul.f32 %v4141, %v4197
        %v4274 = vmul.f32 %v4142, %v4198
        %v4275 = vmul.f32 %v4143, %v4195
        %v4276 = vmul.f32 %v4144, %v4196
        %v4277 = vmul.f32 %v4145, %v4197
        %v4278 = vmul.f32 %v4146, %v4198
        %v4279 = vmul.f32 %v4147, %v4195
        %v4280 = vmul.f32 %v4148, %v4196
        %v4281 = vmul.f32 %v4149, %v4197
        %v4282 = vmul.f32 %v4150, %v4198
        %v4283 = vmul.f32 %v4151, %v4195
        %v4284 = vmul.f32 %v4152, %v4196
        %v4285 = vmul.f32 %v4153, %v4197
        %v4286 = vmul.f32 %v4154, %v4198
        %v4287 = vmul.f32 %v4155, %v4195
        %v4288 = vmul.f32 %v4156, %v4196
        %v4289 = vmul.f32 %v4157, %v4197
        %v4290 = vmul.f32 %v4158, %v4198
        %v4291 = vmul.f32 %v4159, %v4195
        %v4292 = vmul.f32 %v4160, %v4196
        %v4293 = vmul.f32 %v4161, %v4197
        %v4294 = vmul.f32 %v4162, %v4198
        %v4295 = vmul.f32 %v4163, %v4195
        %v4296 = vmul.f32 %v4164, %v4196
        %v4297 = vmul.f32 %v4165, %v4197
        %v4298 = vmul.f32 %v4166, %v4198
        %v4299 = vmul.f32 %v4167, %v4195
        %v4300 = vmul.f32 %v4168, %v4196
        %v4301 = vmul.f32 %v4169, %v4197
        %v4302 = vmul.f32 %v4170, %v4198
        %v4303 = vmul.f32 %v4171, %v4195
        %v4304 = vmul.f32 %v4172, %v4196
        %v4305 = vmul.f32 %v4173, %v4197
        %v4306 = vmul.f32 %v4174, %v4198
        %v4307 = vmul.f32 %v4175, %v4195
        %v4308 = vmul.f32 %v4176, %v4196
        %v4309 = vmul.f32 %v4177, %v4197
        %v4310 = vmul.f32 %v4178, %v4198
        %v4311 = vmul.f32 %v4179, %v4195
        %v4312 = vmul.f32 %v4180, %v4196
        %v4313 = vmul.f32 %v4181, %v4197
        %v4314 = vmul.f32 %v4182, %v4198
        %v4315 = vmul.f32 %v4183, %v4195
        %v4316 = vmul.f32 %v4184, %v4196
        %v4317 = vmul.f32 %v4185, %v4197
        %v4318 = vmul.f32 %v4186, %v4198
        %v4319 = vmul.f32 %v4187, %v4195
        %v4320 = vmul.f32 %v4188, %v4196
        %v4321 = vmul.f32 %v4189, %v4197
        %v4322 = vmul.f32 %v4190, %v4198
        %v4323 = vmul.f32 %v4191, %v4195
        %v4324 = vmul.f32 %v4192, %v4196
        %v4325 = vmul.f32 %v4193, %v4197
        %v4326 = vmul.f32 %v4194, %v4198
        %v4327 = vpack.c.bf16 %v4200, %v4199
        %v4328 = vpack.c.bf16 %v4202, %v4201
        %v4329 = vpack.c.bf16 %v4204, %v4203
        %v4330 = vpack.c.bf16 %v4206, %v4205
        %v4331 = vpack.c.bf16 %v4208, %v4207
        %v4332 = vpack.c.bf16 %v4210, %v4209
        %v4333 = vpack.c.bf16 %v4212, %v4211
        %v4334 = vpack.c.bf16 %v4214, %v4213
        %v4335 = vpack.c.bf16 %v4216, %v4215
        %v4336 = vpack.c.bf16 %v4218, %v4217
        %v4337 = vpack.c.bf16 %v4220, %v4219
        %v4338 = vpack.c.bf16 %v4222, %v4221
        %v4339 = vpack.c.bf16 %v4224, %v4223
        %v4340 = vpack.c.bf16 %v4226, %v4225
        %v4341 = vpack.c.bf16 %v4228, %v4227
        %v4342 = vpack.c.bf16 %v4230, %v4229
        %v4343 = vpack.c.bf16 %v4232, %v4231
        %v4344 = vpack.c.bf16 %v4234, %v4233
        %v4345 = vpack.c.bf16 %v4236, %v4235
        %v4346 = vpack.c.bf16 %v4238, %v4237
        %v4347 = vpack.c.bf16 %v4240, %v4239
        %v4348 = vpack.c.bf16 %v4242, %v4241
        %v4349 = vpack.c.bf16 %v4244, %v4243
        %v4350 = vpack.c.bf16 %v4246, %v4245
        %v4351 = vpack.c.bf16 %v4248, %v4247
        %v4352 = vpack.c.bf16 %v4250, %v4249
        %v4353 = vpack.c.bf16 %v4252, %v4251
        %v4354 = vpack.c.bf16 %v4254, %v4253
        %v4355 = vpack.c.bf16 %v4256, %v4255
        %v4356 = vpack.c.bf16 %v4258, %v4257
        %v4357 = vpack.c.bf16 %v4260, %v4259
        %v4358 = vpack.c.bf16 %v4262, %v4261
        %v4359 = vpack.c.bf16 %v4264, %v4263
        %v4360 = vpack.c.bf16 %v4266, %v4265
        %v4361 = vpack.c.bf16 %v4268, %v4267
        %v4362 = vpack.c.bf16 %v4270, %v4269
        %v4363 = vpack.c.bf16 %v4272, %v4271
        %v4364 = vpack.c.bf16 %v4274, %v4273
        %v4365 = vpack.c.bf16 %v4276, %v4275
        %v4366 = vpack.c.bf16 %v4278, %v4277
        %v4367 = vpack.c.bf16 %v4280, %v4279
        %v4368 = vpack.c.bf16 %v4282, %v4281
        %v4369 = vpack.c.bf16 %v4284, %v4283
        %v4370 = vpack.c.bf16 %v4286, %v4285
        %v4371 = vpack.c.bf16 %v4288, %v4287
        %v4372 = vpack.c.bf16 %v4290, %v4289
        %v4373 = vpack.c.bf16 %v4292, %v4291
        %v4374 = vpack.c.bf16 %v4294, %v4293
        %v4375 = vpack.c.bf16 %v4296, %v4295
        %v4376 = vpack.c.bf16 %v4298, %v4297
        %v4377 = vpack.c.bf16 %v4300, %v4299
        %v4378 = vpack.c.bf16 %v4302, %v4301
        %v4379 = vpack.c.bf16 %v4304, %v4303
        %v4380 = vpack.c.bf16 %v4306, %v4305
        %v4381 = vpack.c.bf16 %v4308, %v4307
        %v4382 = vpack.c.bf16 %v4310, %v4309
        %v4383 = vpack.c.bf16 %v4312, %v4311
        %v4384 = vpack.c.bf16 %v4314, %v4313
        %v4385 = vpack.c.bf16 %v4316, %v4315
        %v4386 = vpack.c.bf16 %v4318, %v4317
        %v4387 = vpack.c.bf16 %v4320, %v4319
        %v4388 = vpack.c.bf16 %v4322, %v4321
        %v4389 = vpack.c.bf16 %v4324, %v4323
        %v4390 = vpack.c.bf16 %v4326, %v4325
        %v4391 = vld [vmem:[%s313] sm:$0xf]
        %4393 = vst [vmem:[#allocation1] ss:$9 sm:$0xff] %v4391
        %v4394 = vld [vmem:[#allocation1] sm:$0xff]
        %v4395 = vld [vmem:[#allocation1 + $0x9] sm:$0xff]
        %v4396 = vld [vmem:[#allocation1 + $0x12] sm:$0xff]
        %v4397 = vld [vmem:[#allocation1 + $0x1b] sm:$0xff]
        %v4398 = vpack.i.b16 %v4394, %v4394
        %v4400 = vperm.slane %v4398, 0
        %v4401 = vpack.i.b16 %v4395, %v4395
        %v4403 = vperm.slane %v4401, 0
        %v4404 = vpack.i.b16 %v4396, %v4396
        %v4406 = vperm.slane %v4404, 0
        %v4407 = vpack.i.b16 %v4397, %v4397
        %v4409 = vperm.slane %v4407, 0
        %v4410 = vunpack.c.l.bf16 %v4327
        %v4411 = vunpack.c.h.bf16 %v4327
        %v4412 = vunpack.c.l.bf16 %v4328
        %v4413 = vunpack.c.h.bf16 %v4328
        %v4414 = vunpack.c.l.bf16 %v4329
        %v4415 = vunpack.c.h.bf16 %v4329
        %v4416 = vunpack.c.l.bf16 %v4330
        %v4417 = vunpack.c.h.bf16 %v4330
        %v4418 = vunpack.c.l.bf16 %v4331
        %v4419 = vunpack.c.h.bf16 %v4331
        %v4420 = vunpack.c.l.bf16 %v4332
        %v4421 = vunpack.c.h.bf16 %v4332
        %v4422 = vunpack.c.l.bf16 %v4333
        %v4423 = vunpack.c.h.bf16 %v4333
        %v4424 = vunpack.c.l.bf16 %v4334
        %v4425 = vunpack.c.h.bf16 %v4334
        %v4426 = vunpack.c.l.bf16 %v4335
        %v4427 = vunpack.c.h.bf16 %v4335
        %v4428 = vunpack.c.l.bf16 %v4336
        %v4429 = vunpack.c.h.bf16 %v4336
        %v4430 = vunpack.c.l.bf16 %v4337
        %v4431 = vunpack.c.h.bf16 %v4337
        %v4432 = vunpack.c.l.bf16 %v4338
        %v4433 = vunpack.c.h.bf16 %v4338
        %v4434 = vunpack.c.l.bf16 %v4339
        %v4435 = vunpack.c.h.bf16 %v4339
        %v4436 = vunpack.c.l.bf16 %v4340
        %v4437 = vunpack.c.h.bf16 %v4340
        %v4438 = vunpack.c.l.bf16 %v4341
        %v4439 = vunpack.c.h.bf16 %v4341
        %v4440 = vunpack.c.l.bf16 %v4342
        %v4441 = vunpack.c.h.bf16 %v4342
        %v4442 = vunpack.c.l.bf16 %v4343
        %v4443 = vunpack.c.h.bf16 %v4343
        %v4444 = vunpack.c.l.bf16 %v4344
        %v4445 = vunpack.c.h.bf16 %v4344
        %v4446 = vunpack.c.l.bf16 %v4345
        %v4447 = vunpack.c.h.bf16 %v4345
        %v4448 = vunpack.c.l.bf16 %v4346
        %v4449 = vunpack.c.h.bf16 %v4346
        %v4450 = vunpack.c.l.bf16 %v4347
        %v4451 = vunpack.c.h.bf16 %v4347
        %v4452 = vunpack.c.l.bf16 %v4348
        %v4453 = vunpack.c.h.bf16 %v4348
        %v4454 = vunpack.c.l.bf16 %v4349
        %v4455 = vunpack.c.h.bf16 %v4349
        %v4456 = vunpack.c.l.bf16 %v4350
        %v4457 = vunpack.c.h.bf16 %v4350
        %v4458 = vunpack.c.l.bf16 %v4351
        %v4459 = vunpack.c.h.bf16 %v4351
        %v4460 = vunpack.c.l.bf16 %v4352
        %v4461 = vunpack.c.h.bf16 %v4352
        %v4462 = vunpack.c.l.bf16 %v4353
        %v4463 = vunpack.c.h.bf16 %v4353
        %v4464 = vunpack.c.l.bf16 %v4354
        %v4465 = vunpack.c.h.bf16 %v4354
        %v4466 = vunpack.c.l.bf16 %v4355
        %v4467 = vunpack.c.h.bf16 %v4355
        %v4468 = vunpack.c.l.bf16 %v4356
        %v4469 = vunpack.c.h.bf16 %v4356
        %v4470 = vunpack.c.l.bf16 %v4357
        %v4471 = vunpack.c.h.bf16 %v4357
        %v4472 = vunpack.c.l.bf16 %v4358
        %v4473 = vunpack.c.h.bf16 %v4358
        %v4474 = vunpack.c.l.bf16 %v4359
        %v4475 = vunpack.c.h.bf16 %v4359
        %v4476 = vunpack.c.l.bf16 %v4360
        %v4477 = vunpack.c.h.bf16 %v4360
        %v4478 = vunpack.c.l.bf16 %v4361
        %v4479 = vunpack.c.h.bf16 %v4361
        %v4480 = vunpack.c.l.bf16 %v4362
        %v4481 = vunpack.c.h.bf16 %v4362
        %v4482 = vunpack.c.l.bf16 %v4363
        %v4483 = vunpack.c.h.bf16 %v4363
        %v4484 = vunpack.c.l.bf16 %v4364
        %v4485 = vunpack.c.h.bf16 %v4364
        %v4486 = vunpack.c.l.bf16 %v4365
        %v4487 = vunpack.c.h.bf16 %v4365
        %v4488 = vunpack.c.l.bf16 %v4366
        %v4489 = vunpack.c.h.bf16 %v4366
        %v4490 = vunpack.c.l.bf16 %v4367
        %v4491 = vunpack.c.h.bf16 %v4367
        %v4492 = vunpack.c.l.bf16 %v4368
        %v4493 = vunpack.c.h.bf16 %v4368
        %v4494 = vunpack.c.l.bf16 %v4369
        %v4495 = vunpack.c.h.bf16 %v4369
        %v4496 = vunpack.c.l.bf16 %v4370
        %v4497 = vunpack.c.h.bf16 %v4370
        %v4498 = vunpack.c.l.bf16 %v4371
        %v4499 = vunpack.c.h.bf16 %v4371
        %v4500 = vunpack.c.l.bf16 %v4372
        %v4501 = vunpack.c.h.bf16 %v4372
        %v4502 = vunpack.c.l.bf16 %v4373
        %v4503 = vunpack.c.h.bf16 %v4373
        %v4504 = vunpack.c.l.bf16 %v4374
        %v4505 = vunpack.c.h.bf16 %v4374
        %v4506 = vunpack.c.l.bf16 %v4375
        %v4507 = vunpack.c.h.bf16 %v4375
        %v4508 = vunpack.c.l.bf16 %v4376
        %v4509 = vunpack.c.h.bf16 %v4376
        %v4510 = vunpack.c.l.bf16 %v4377
        %v4511 = vunpack.c.h.bf16 %v4377
        %v4512 = vunpack.c.l.bf16 %v4378
        %v4513 = vunpack.c.h.bf16 %v4378
        %v4514 = vunpack.c.l.bf16 %v4379
        %v4515 = vunpack.c.h.bf16 %v4379
        %v4516 = vunpack.c.l.bf16 %v4380
        %v4517 = vunpack.c.h.bf16 %v4380
        %v4518 = vunpack.c.l.bf16 %v4381
        %v4519 = vunpack.c.h.bf16 %v4381
        %v4520 = vunpack.c.l.bf16 %v4382
        %v4521 = vunpack.c.h.bf16 %v4382
        %v4522 = vunpack.c.l.bf16 %v4383
        %v4523 = vunpack.c.h.bf16 %v4383
        %v4524 = vunpack.c.l.bf16 %v4384
        %v4525 = vunpack.c.h.bf16 %v4384
        %v4526 = vunpack.c.l.bf16 %v4385
        %v4527 = vunpack.c.h.bf16 %v4385
        %v4528 = vunpack.c.l.bf16 %v4386
        %v4529 = vunpack.c.h.bf16 %v4386
        %v4530 = vunpack.c.l.bf16 %v4387
        %v4531 = vunpack.c.h.bf16 %v4387
        %v4532 = vunpack.c.l.bf16 %v4388
        %v4533 = vunpack.c.h.bf16 %v4388
        %v4534 = vunpack.c.l.bf16 %v4389
        %v4535 = vunpack.c.h.bf16 %v4389
        %v4536 = vunpack.c.l.bf16 %v4390
        %v4537 = vunpack.c.h.bf16 %v4390
        %v4538 = vunpack.c.l.bf16 %v4400
        %v4539 = vunpack.c.l.bf16 %v4403
        %v4540 = vunpack.c.l.bf16 %v4406
        %v4541 = vunpack.c.l.bf16 %v4409
        %v4542 = vadd.f32 %v4410, %v4538
        %v4543 = vadd.f32 %v4411, %v4539
        %v4544 = vadd.f32 %v4412, %v4540
        %v4545 = vadd.f32 %v4413, %v4541
        %v4546 = vadd.f32 %v4414, %v4538
        %v4547 = vadd.f32 %v4415, %v4539
        %v4548 = vadd.f32 %v4416, %v4540
        %v4549 = vadd.f32 %v4417, %v4541
        %v4550 = vadd.f32 %v4418, %v4538
        %v4551 = vadd.f32 %v4419, %v4539
        %v4552 = vadd.f32 %v4420, %v4540
        %v4553 = vadd.f32 %v4421, %v4541
        %v4554 = vadd.f32 %v4422, %v4538
        %v4555 = vadd.f32 %v4423, %v4539
        %v4556 = vadd.f32 %v4424, %v4540
        %v4557 = vadd.f32 %v4425, %v4541
        %v4558 = vadd.f32 %v4426, %v4538
        %v4559 = vadd.f32 %v4427, %v4539
        %v4560 = vadd.f32 %v4428, %v4540
        %v4561 = vadd.f32 %v4429, %v4541
        %v4562 = vadd.f32 %v4430, %v4538
        %v4563 = vadd.f32 %v4431, %v4539
        %v4564 = vadd.f32 %v4432, %v4540
        %v4565 = vadd.f32 %v4433, %v4541
        %v4566 = vadd.f32 %v4434, %v4538
        %v4567 = vadd.f32 %v4435, %v4539
        %v4568 = vadd.f32 %v4436, %v4540
        %v4569 = vadd.f32 %v4437, %v4541
        %v4570 = vadd.f32 %v4438, %v4538
        %v4571 = vadd.f32 %v4439, %v4539
        %v4572 = vadd.f32 %v4440, %v4540
        %v4573 = vadd.f32 %v4441, %v4541
        %v4574 = vadd.f32 %v4442, %v4538
        %v4575 = vadd.f32 %v4443, %v4539
        %v4576 = vadd.f32 %v4444, %v4540
        %v4577 = vadd.f32 %v4445, %v4541
        %v4578 = vadd.f32 %v4446, %v4538
        %v4579 = vadd.f32 %v4447, %v4539
        %v4580 = vadd.f32 %v4448, %v4540
        %v4581 = vadd.f32 %v4449, %v4541
        %v4582 = vadd.f32 %v4450, %v4538
        %v4583 = vadd.f32 %v4451, %v4539
        %v4584 = vadd.f32 %v4452, %v4540
        %v4585 = vadd.f32 %v4453, %v4541
        %v4586 = vadd.f32 %v4454, %v4538
        %v4587 = vadd.f32 %v4455, %v4539
        %v4588 = vadd.f32 %v4456, %v4540
        %v4589 = vadd.f32 %v4457, %v4541
        %v4590 = vadd.f32 %v4458, %v4538
        %v4591 = vadd.f32 %v4459, %v4539
        %v4592 = vadd.f32 %v4460, %v4540
        %v4593 = vadd.f32 %v4461, %v4541
        %v4594 = vadd.f32 %v4462, %v4538
        %v4595 = vadd.f32 %v4463, %v4539
        %v4596 = vadd.f32 %v4464, %v4540
        %v4597 = vadd.f32 %v4465, %v4541
        %v4598 = vadd.f32 %v4466, %v4538
        %v4599 = vadd.f32 %v4467, %v4539
        %v4600 = vadd.f32 %v4468, %v4540
        %v4601 = vadd.f32 %v4469, %v4541
        %v4602 = vadd.f32 %v4470, %v4538
        %v4603 = vadd.f32 %v4471, %v4539
        %v4604 = vadd.f32 %v4472, %v4540
        %v4605 = vadd.f32 %v4473, %v4541
        %v4606 = vadd.f32 %v4474, %v4538
        %v4607 = vadd.f32 %v4475, %v4539
        %v4608 = vadd.f32 %v4476, %v4540
        %v4609 = vadd.f32 %v4477, %v4541
        %v4610 = vadd.f32 %v4478, %v4538
        %v4611 = vadd.f32 %v4479, %v4539
        %v4612 = vadd.f32 %v4480, %v4540
        %v4613 = vadd.f32 %v4481, %v4541
        %v4614 = vadd.f32 %v4482, %v4538
        %v4615 = vadd.f32 %v4483, %v4539
        %v4616 = vadd.f32 %v4484, %v4540
        %v4617 = vadd.f32 %v4485, %v4541
        %v4618 = vadd.f32 %v4486, %v4538
        %v4619 = vadd.f32 %v4487, %v4539
        %v4620 = vadd.f32 %v4488, %v4540
        %v4621 = vadd.f32 %v4489, %v4541
        %v4622 = vadd.f32 %v4490, %v4538
        %v4623 = vadd.f32 %v4491, %v4539
        %v4624 = vadd.f32 %v4492, %v4540
        %v4625 = vadd.f32 %v4493, %v4541
        %v4626 = vadd.f32 %v4494, %v4538
        %v4627 = vadd.f32 %v4495, %v4539
        %v4628 = vadd.f32 %v4496, %v4540
        %v4629 = vadd.f32 %v4497, %v4541
        %v4630 = vadd.f32 %v4498, %v4538
        %v4631 = vadd.f32 %v4499, %v4539
        %v4632 = vadd.f32 %v4500, %v4540
        %v4633 = vadd.f32 %v4501, %v4541
        %v4634 = vadd.f32 %v4502, %v4538
        %v4635 = vadd.f32 %v4503, %v4539
        %v4636 = vadd.f32 %v4504, %v4540
        %v4637 = vadd.f32 %v4505, %v4541
        %v4638 = vadd.f32 %v4506, %v4538
        %v4639 = vadd.f32 %v4507, %v4539
        %v4640 = vadd.f32 %v4508, %v4540
        %v4641 = vadd.f32 %v4509, %v4541
        %v4642 = vadd.f32 %v4510, %v4538
        %v4643 = vadd.f32 %v4511, %v4539
        %v4644 = vadd.f32 %v4512, %v4540
        %v4645 = vadd.f32 %v4513, %v4541
        %v4646 = vadd.f32 %v4514, %v4538
        %v4647 = vadd.f32 %v4515, %v4539
        %v4648 = vadd.f32 %v4516, %v4540
        %v4649 = vadd.f32 %v4517, %v4541
        %v4650 = vadd.f32 %v4518, %v4538
        %v4651 = vadd.f32 %v4519, %v4539
        %v4652 = vadd.f32 %v4520, %v4540
        %v4653 = vadd.f32 %v4521, %v4541
        %v4654 = vadd.f32 %v4522, %v4538
        %v4655 = vadd.f32 %v4523, %v4539
        %v4656 = vadd.f32 %v4524, %v4540
        %v4657 = vadd.f32 %v4525, %v4541
        %v4658 = vadd.f32 %v4526, %v4538
        %v4659 = vadd.f32 %v4527, %v4539
        %v4660 = vadd.f32 %v4528, %v4540
        %v4661 = vadd.f32 %v4529, %v4541
        %v4662 = vadd.f32 %v4530, %v4538
        %v4663 = vadd.f32 %v4531, %v4539
        %v4664 = vadd.f32 %v4532, %v4540
        %v4665 = vadd.f32 %v4533, %v4541
        %v4666 = vadd.f32 %v4534, %v4538
        %v4667 = vadd.f32 %v4535, %v4539
        %v4668 = vadd.f32 %v4536, %v4540
        %v4669 = vadd.f32 %v4537, %v4541
        %v4670 = vpack.c.bf16 %v4546, %v4542
        %v4671 = vpack.c.bf16 %v4547, %v4543
        %v4672 = vpack.c.bf16 %v4548, %v4544
        %v4673 = vpack.c.bf16 %v4549, %v4545
        %v4674 = vpack.c.bf16 %v4554, %v4550
        %v4675 = vpack.c.bf16 %v4555, %v4551
        %v4676 = vpack.c.bf16 %v4556, %v4552
        %v4677 = vpack.c.bf16 %v4557, %v4553
        %v4678 = vpack.c.bf16 %v4562, %v4558
        %v4679 = vpack.c.bf16 %v4563, %v4559
        %v4680 = vpack.c.bf16 %v4564, %v4560
        %v4681 = vpack.c.bf16 %v4565, %v4561
        %v4682 = vpack.c.bf16 %v4570, %v4566
        %v4683 = vpack.c.bf16 %v4571, %v4567
        %v4684 = vpack.c.bf16 %v4572, %v4568
        %v4685 = vpack.c.bf16 %v4573, %v4569
        %v4686 = vpack.c.bf16 %v4578, %v4574
        %v4687 = vpack.c.bf16 %v4579, %v4575
        %v4688 = vpack.c.bf16 %v4580, %v4576
        %v4689 = vpack.c.bf16 %v4581, %v4577
        %v4690 = vpack.c.bf16 %v4586, %v4582
        %v4691 = vpack.c.bf16 %v4587, %v4583
        %v4692 = vpack.c.bf16 %v4588, %v4584
        %v4693 = vpack.c.bf16 %v4589, %v4585
        %v4694 = vpack.c.bf16 %v4594, %v4590
        %v4695 = vpack.c.bf16 %v4595, %v4591
        %v4696 = vpack.c.bf16 %v4596, %v4592
        %v4697 = vpack.c.bf16 %v4597, %v4593
        %v4698 = vpack.c.bf16 %v4602, %v4598
        %v4699 = vpack.c.bf16 %v4603, %v4599
        %v4700 = vpack.c.bf16 %v4604, %v4600
        %v4701 = vpack.c.bf16 %v4605, %v4601
        %v4702 = vpack.c.bf16 %v4610, %v4606
        %v4703 = vpack.c.bf16 %v4611, %v4607
        %v4704 = vpack.c.bf16 %v4612, %v4608
        %v4705 = vpack.c.bf16 %v4613, %v4609
        %v4706 = vpack.c.bf16 %v4618, %v4614
        %v4707 = vpack.c.bf16 %v4619, %v4615
        %v4708 = vpack.c.bf16 %v4620, %v4616
        %v4709 = vpack.c.bf16 %v4621, %v4617
        %v4710 = vpack.c.bf16 %v4626, %v4622
        %v4711 = vpack.c.bf16 %v4627, %v4623
        %v4712 = vpack.c.bf16 %v4628, %v4624
        %v4713 = vpack.c.bf16 %v4629, %v4625
        %v4714 = vpack.c.bf16 %v4634, %v4630
        %v4715 = vpack.c.bf16 %v4635, %v4631
        %v4716 = vpack.c.bf16 %v4636, %v4632
        %v4717 = vpack.c.bf16 %v4637, %v4633
        %v4718 = vpack.c.bf16 %v4642, %v4638
        %v4719 = vpack.c.bf16 %v4643, %v4639
        %v4720 = vpack.c.bf16 %v4644, %v4640
        %v4721 = vpack.c.bf16 %v4645, %v4641
        %v4722 = vpack.c.bf16 %v4650, %v4646
        %v4723 = vpack.c.bf16 %v4651, %v4647
        %v4724 = vpack.c.bf16 %v4652, %v4648
        %v4725 = vpack.c.bf16 %v4653, %v4649
        %v4726 = vpack.c.bf16 %v4658, %v4654
        %v4727 = vpack.c.bf16 %v4659, %v4655
        %v4728 = vpack.c.bf16 %v4660, %v4656
        %v4729 = vpack.c.bf16 %v4661, %v4657
        %v4730 = vpack.c.bf16 %v4666, %v4662
        %v4731 = vpack.c.bf16 %v4667, %v4663
        %v4732 = vpack.c.bf16 %v4668, %v4664
        %v4733 = vpack.c.bf16 %v4669, %v4665
        %v4734 = vld [vmem:[#allocation5] sm:$0xf]
        %v4735 = vld [vmem:[#allocation5 + $0x4] sm:$0xf]
        %v4736 = vld [vmem:[#allocation5 + $0x8] sm:$0xf]
        %v4737 = vld [vmem:[#allocation5 + $0xc] sm:$0xf]
        %v4738 = vld [vmem:[#allocation5 + $0x10] sm:$0xf]
        %v4739 = vld [vmem:[#allocation5 + $0x14] sm:$0xf]
        %v4740 = vld [vmem:[#allocation5 + $0x18] sm:$0xf]
        %v4741 = vld [vmem:[#allocation5 + $0x1c] sm:$0xf]
        %v4742 = vld [vmem:[#allocation5 + $0x20] sm:$0xf]
        %v4743 = vld [vmem:[#allocation5 + $0x24] sm:$0xf]
        %v4744 = vld [vmem:[#allocation5 + $0x28] sm:$0xf]
        %v4745 = vld [vmem:[#allocation5 + $0x2c] sm:$0xf]
        %v4746 = vld [vmem:[#allocation5 + $0x30] sm:$0xf]
        %v4747 = vld [vmem:[#allocation5 + $0x34] sm:$0xf]
        %v4748 = vld [vmem:[#allocation5 + $0x38] sm:$0xf]
        %v4749 = vld [vmem:[#allocation5 + $0x3c] sm:$0xf]
        %v4750 = vld [vmem:[#allocation5 + $0x40] sm:$0xf]
        %v4751 = vld [vmem:[#allocation5 + $0x44] sm:$0xf]
        %v4752 = vld [vmem:[#allocation5 + $0x48] sm:$0xf]
        %v4753 = vld [vmem:[#allocation5 + $0x4c] sm:$0xf]
        %v4754 = vld [vmem:[#allocation5 + $0x50] sm:$0xf]
        %v4755 = vld [vmem:[#allocation5 + $0x54] sm:$0xf]
        %v4756 = vld [vmem:[#allocation5 + $0x58] sm:$0xf]
        %v4757 = vld [vmem:[#allocation5 + $0x5c] sm:$0xf]
        %v4758 = vld [vmem:[#allocation5 + $0x60] sm:$0xf]
        %v4759 = vld [vmem:[#allocation5 + $0x64] sm:$0xf]
        %v4760 = vld [vmem:[#allocation5 + $0x68] sm:$0xf]
        %v4761 = vld [vmem:[#allocation5 + $0x6c] sm:$0xf]
        %v4762 = vld [vmem:[#allocation5 + $0x70] sm:$0xf]
        %v4763 = vld [vmem:[#allocation5 + $0x74] sm:$0xf]
        %v4764 = vld [vmem:[#allocation5 + $0x78] sm:$0xf]
        %v4765 = vld [vmem:[#allocation5 + $0x7c] sm:$0xf]
        %v4766 = vld [vmem:[#allocation5 + $0x80] sm:$0xf]
        %v4767 = vld [vmem:[#allocation5 + $0x84] sm:$0xf]
        %v4768 = vld [vmem:[#allocation5 + $0x88] sm:$0xf]
        %v4769 = vld [vmem:[#allocation5 + $0x8c] sm:$0xf]
        %v4770 = vld [vmem:[#allocation5 + $0x90] sm:$0xf]
        %v4771 = vld [vmem:[#allocation5 + $0x94] sm:$0xf]
        %v4772 = vld [vmem:[#allocation5 + $0x98] sm:$0xf]
        %v4773 = vld [vmem:[#allocation5 + $0x9c] sm:$0xf]
        %v4774 = vld [vmem:[#allocation5 + $0xa0] sm:$0xf]
        %v4775 = vld [vmem:[#allocation5 + $0xa4] sm:$0xf]
        %v4776 = vld [vmem:[#allocation5 + $0xa8] sm:$0xf]
        %v4777 = vld [vmem:[#allocation5 + $0xac] sm:$0xf]
        %v4778 = vld [vmem:[#allocation5 + $0xb0] sm:$0xf]
        %v4779 = vld [vmem:[#allocation5 + $0xb4] sm:$0xf]
        %v4780 = vld [vmem:[#allocation5 + $0xb8] sm:$0xf]
        %v4781 = vld [vmem:[#allocation5 + $0xbc] sm:$0xf]
        %v4782 = vld [vmem:[#allocation5 + $0xc0] sm:$0xf]
        %v4783 = vld [vmem:[#allocation5 + $0xc4] sm:$0xf]
        %v4784 = vld [vmem:[#allocation5 + $0xc8] sm:$0xf]
        %v4785 = vld [vmem:[#allocation5 + $0xcc] sm:$0xf]
        %v4786 = vld [vmem:[#allocation5 + $0xd0] sm:$0xf]
        %v4787 = vld [vmem:[#allocation5 + $0xd4] sm:$0xf]
        %v4788 = vld [vmem:[#allocation5 + $0xd8] sm:$0xf]
        %v4789 = vld [vmem:[#allocation5 + $0xdc] sm:$0xf]
        %v4790 = vld [vmem:[#allocation5 + $0xe0] sm:$0xf]
        %v4791 = vld [vmem:[#allocation5 + $0xe4] sm:$0xf]
        %v4792 = vld [vmem:[#allocation5 + $0xe8] sm:$0xf]
        %v4793 = vld [vmem:[#allocation5 + $0xec] sm:$0xf]
        %v4794 = vld [vmem:[#allocation5 + $0xf0] sm:$0xf]
        %v4795 = vld [vmem:[#allocation5 + $0xf4] sm:$0xf]
        %v4796 = vld [vmem:[#allocation5 + $0xf8] sm:$0xf]
        %v4797 = vld [vmem:[#allocation5 + $0xfc] sm:$0xf]
        %v4862 = vunpack.c.l.b16 %v4734
        %v4863 = vunpack.c.l.b16 %v4735
        %v4864 = vunpack.c.l.b16 %v4736
        %v4865 = vunpack.c.l.b16 %v4737
        %v4866 = vunpack.c.l.b16 %v4738
        %v4867 = vunpack.c.l.b16 %v4739
        %v4868 = vunpack.c.l.b16 %v4740
        %v4869 = vunpack.c.l.b16 %v4741
        %v4870 = vunpack.c.l.b16 %v4742
        %v4871 = vunpack.c.l.b16 %v4743
        %v4872 = vunpack.c.l.b16 %v4744
        %v4873 = vunpack.c.l.b16 %v4745
        %v4874 = vunpack.c.l.b16 %v4746
        %v4875 = vunpack.c.l.b16 %v4747
        %v4876 = vunpack.c.l.b16 %v4748
        %v4877 = vunpack.c.l.b16 %v4749
        %v4878 = vunpack.c.l.b16 %v4750
        %v4879 = vunpack.c.l.b16 %v4751
        %v4880 = vunpack.c.l.b16 %v4752
        %v4881 = vunpack.c.l.b16 %v4753
        %v4882 = vunpack.c.l.b16 %v4754
        %v4883 = vunpack.c.l.b16 %v4755
        %v4884 = vunpack.c.l.b16 %v4756
        %v4885 = vunpack.c.l.b16 %v4757
        %v4886 = vunpack.c.l.b16 %v4758
        %v4887 = vunpack.c.l.b16 %v4759
        %v4888 = vunpack.c.l.b16 %v4760
        %v4889 = vunpack.c.l.b16 %v4761
        %v4890 = vunpack.c.l.b16 %v4762
        %v4891 = vunpack.c.l.b16 %v4763
        %v4892 = vunpack.c.l.b16 %v4764
        %v4893 = vunpack.c.l.b16 %v4765
        %v4894 = vunpack.c.l.b16 %v4766
        %v4895 = vunpack.c.l.b16 %v4767
        %v4896 = vunpack.c.l.b16 %v4768
        %v4897 = vunpack.c.l.b16 %v4769
        %v4898 = vunpack.c.l.b16 %v4770
        %v4899 = vunpack.c.l.b16 %v4771
        %v4900 = vunpack.c.l.b16 %v4772
        %v4901 = vunpack.c.l.b16 %v4773
        %v4902 = vunpack.c.l.b16 %v4774
        %v4903 = vunpack.c.l.b16 %v4775
        %v4904 = vunpack.c.l.b16 %v4776
        %v4905 = vunpack.c.l.b16 %v4777
        %v4906 = vunpack.c.l.b16 %v4778
        %v4907 = vunpack.c.l.b16 %v4779
        %v4908 = vunpack.c.l.b16 %v4780
        %v4909 = vunpack.c.l.b16 %v4781
        %v4910 = vunpack.c.l.b16 %v4782
        %v4911 = vunpack.c.l.b16 %v4783
        %v4912 = vunpack.c.l.b16 %v4784
        %v4913 = vunpack.c.l.b16 %v4785
        %v4914 = vunpack.c.l.b16 %v4786
        %v4915 = vunpack.c.l.b16 %v4787
        %v4916 = vunpack.c.l.b16 %v4788
        %v4917 = vunpack.c.l.b16 %v4789
        %v4918 = vunpack.c.l.b16 %v4790
        %v4919 = vunpack.c.l.b16 %v4791
        %v4920 = vunpack.c.l.b16 %v4792
        %v4921 = vunpack.c.l.b16 %v4793
        %v4922 = vunpack.c.l.b16 %v4794
        %v4923 = vunpack.c.l.b16 %v4795
        %v4924 = vunpack.c.l.b16 %v4796
        %v4925 = vunpack.c.l.b16 %v4797
        %v4926 = vpack.c.b16 %v4863, %v4862
        %v4927 = vpack.c.b16 %v4865, %v4864
        %v4928 = vpack.c.b16 %v4867, %v4866
        %v4929 = vpack.c.b16 %v4869, %v4868
        %v4930 = vpack.c.b16 %v4871, %v4870
        %v4931 = vpack.c.b16 %v4873, %v4872
        %v4932 = vpack.c.b16 %v4875, %v4874
        %v4933 = vpack.c.b16 %v4877, %v4876
        %v4934 = vpack.c.b16 %v4879, %v4878
        %v4935 = vpack.c.b16 %v4881, %v4880
        %v4936 = vpack.c.b16 %v4883, %v4882
        %v4937 = vpack.c.b16 %v4885, %v4884
        %v4938 = vpack.c.b16 %v4887, %v4886
        %v4939 = vpack.c.b16 %v4889, %v4888
        %v4940 = vpack.c.b16 %v4891, %v4890
        %v4941 = vpack.c.b16 %v4893, %v4892
        %v4942 = vpack.c.b16 %v4895, %v4894
        %v4943 = vpack.c.b16 %v4897, %v4896
        %v4944 = vpack.c.b16 %v4899, %v4898
        %v4945 = vpack.c.b16 %v4901, %v4900
        %v4946 = vpack.c.b16 %v4903, %v4902
        %v4947 = vpack.c.b16 %v4905, %v4904
        %v4948 = vpack.c.b16 %v4907, %v4906
        %v4949 = vpack.c.b16 %v4909, %v4908
        %v4950 = vpack.c.b16 %v4911, %v4910
        %v4951 = vpack.c.b16 %v4913, %v4912
        %v4952 = vpack.c.b16 %v4915, %v4914
        %v4953 = vpack.c.b16 %v4917, %v4916
        %v4954 = vpack.c.b16 %v4919, %v4918
        %v4955 = vpack.c.b16 %v4921, %v4920
        %v4956 = vpack.c.b16 %v4923, %v4922
        %v4957 = vpack.c.b16 %v4925, %v4924
        %4990 = vmatpush.bf16.msra.mxu0 %v4933
        %4991 = vmatpush.bf16.msra.mxu0 %v4932
        %4992 = vmatpush.bf16.msra.mxu0 %v4931
        %4993 = vmatpush.bf16.msra.mxu0 %v4930
        %4994 = vmatpush.bf16.msra.mxu0 %v4929
        %4995 = vmatpush.bf16.msra.mxu0 %v4928
        %4996 = vmatpush.bf16.msra.mxu0 %v4927
        %4997 = vmatpush.bf16.msra.mxu0 %v4926
        %4998 = vmatmul.bf16.gmra.mxu0 %v4670
        %v4999 = vpop.f32.mrf.mxu0
        %v5000 = vadd.f32 0.0, %v4999
        %v5001 = vpop.f32.mrf.mxu0
        %v5002 = vadd.f32 0.0, %v5001
        %5003 = vmatmul.bf16.gmra.mxu0 %v4674
        %v5004 = vpop.f32.mrf.mxu0
        %v5005 = vadd.f32 0.0, %v5004
        %v5006 = vpop.f32.mrf.mxu0
        %v5007 = vadd.f32 0.0, %v5006
        %5008 = vmatmul.bf16.gmra.mxu0 %v4678
        %v5009 = vpop.f32.mrf.mxu0
        %v5010 = vadd.f32 0.0, %v5009
        %v5011 = vpop.f32.mrf.mxu0
        %v5012 = vadd.f32 0.0, %v5011
        %5013 = vmatmul.bf16.gmra.mxu0 %v4682
        %v5014 = vpop.f32.mrf.mxu0
        %v5015 = vadd.f32 0.0, %v5014
        %v5016 = vpop.f32.mrf.mxu0
        %v5017 = vadd.f32 0.0, %v5016
        %5018 = vmatmul.bf16.gmra.mxu0 %v4686
        %v5019 = vpop.f32.mrf.mxu0
        %v5020 = vadd.f32 0.0, %v5019
        %v5021 = vpop.f32.mrf.mxu0
        %v5022 = vadd.f32 0.0, %v5021
        %5023 = vmatmul.bf16.gmra.mxu0 %v4690
        %v5024 = vpop.f32.mrf.mxu0
        %v5025 = vadd.f32 0.0, %v5024
        %v5026 = vpop.f32.mrf.mxu0
        %v5027 = vadd.f32 0.0, %v5026
        %5028 = vmatmul.bf16.gmra.mxu0 %v4694
        %v5029 = vpop.f32.mrf.mxu0
        %v5030 = vadd.f32 0.0, %v5029
        %v5031 = vpop.f32.mrf.mxu0
        %v5032 = vadd.f32 0.0, %v5031
        %5033 = vmatmul.bf16.gmra.mxu0 %v4698
        %v5034 = vpop.f32.mrf.mxu0
        %v5035 = vadd.f32 0.0, %v5034
        %v5036 = vpop.f32.mrf.mxu0
        %v5037 = vadd.f32 0.0, %v5036
        %5038 = vmatmul.bf16.gmra.mxu0 %v4702
        %v5039 = vpop.f32.mrf.mxu0
        %v5040 = vadd.f32 0.0, %v5039
        %v5041 = vpop.f32.mrf.mxu0
        %v5042 = vadd.f32 0.0, %v5041
        %5043 = vmatmul.bf16.gmra.mxu0 %v4706
        %v5044 = vpop.f32.mrf.mxu0
        %v5045 = vadd.f32 0.0, %v5044
        %v5046 = vpop.f32.mrf.mxu0
        %v5047 = vadd.f32 0.0, %v5046
        %5048 = vmatmul.bf16.gmra.mxu0 %v4710
        %v5049 = vpop.f32.mrf.mxu0
        %v5050 = vadd.f32 0.0, %v5049
        %v5051 = vpop.f32.mrf.mxu0
        %v5052 = vadd.f32 0.0, %v5051
        %5053 = vmatmul.bf16.gmra.mxu0 %v4714
        %v5054 = vpop.f32.mrf.mxu0
        %v5055 = vadd.f32 0.0, %v5054
        %v5056 = vpop.f32.mrf.mxu0
        %v5057 = vadd.f32 0.0, %v5056
        %5058 = vmatmul.bf16.gmra.mxu0 %v4718
        %v5059 = vpop.f32.mrf.mxu0
        %v5060 = vadd.f32 0.0, %v5059
        %v5061 = vpop.f32.mrf.mxu0
        %v5062 = vadd.f32 0.0, %v5061
        %5063 = vmatmul.bf16.gmra.mxu0 %v4722
        %v5064 = vpop.f32.mrf.mxu0
        %v5065 = vadd.f32 0.0, %v5064
        %v5066 = vpop.f32.mrf.mxu0
        %v5067 = vadd.f32 0.0, %v5066
        %5068 = vmatmul.bf16.gmra.mxu0 %v4726
        %v5069 = vpop.f32.mrf.mxu0
        %v5070 = vadd.f32 0.0, %v5069
        %v5071 = vpop.f32.mrf.mxu0
        %v5072 = vadd.f32 0.0, %v5071
        %5073 = vmatmul.bf16.gmra.mxu0 %v4730
        %v5074 = vpop.f32.mrf.mxu0
        %v5075 = vadd.f32 0.0, %v5074
        %v5076 = vpop.f32.mrf.mxu0
        %v5077 = vadd.f32 0.0, %v5076
        %5078 = vdwg.mxu0
        %5079 = vmatpush.bf16.msra.mxu0 %v4941
        %5080 = vmatpush.bf16.msra.mxu0 %v4940
        %5081 = vmatpush.bf16.msra.mxu0 %v4939
        %5082 = vmatpush.bf16.msra.mxu0 %v4938
        %5083 = vmatpush.bf16.msra.mxu0 %v4937
        %5084 = vmatpush.bf16.msra.mxu0 %v4936
        %5085 = vmatpush.bf16.msra.mxu0 %v4935
        %5086 = vmatpush.bf16.msra.mxu0 %v4934
        %5087 = vmatmul.bf16.gmra.mxu0 %v4671
        %v5088 = vpop.f32.mrf.mxu0
        %v5089 = vadd.f32 %v5000, %v5088
        %v5090 = vpop.f32.mrf.mxu0
        %v5091 = vadd.f32 %v5002, %v5090
        %5092 = vmatmul.bf16.gmra.mxu0 %v4675
        %v5093 = vpop.f32.mrf.mxu0
        %v5094 = vadd.f32 %v5005, %v5093
        %v5095 = vpop.f32.mrf.mxu0
        %v5096 = vadd.f32 %v5007, %v5095
        %5097 = vmatmul.bf16.gmra.mxu0 %v4679
        %v5098 = vpop.f32.mrf.mxu0
        %v5099 = vadd.f32 %v5010, %v5098
        %v5100 = vpop.f32.mrf.mxu0
        %v5101 = vadd.f32 %v5012, %v5100
        %5102 = vmatmul.bf16.gmra.mxu0 %v4683
        %v5103 = vpop.f32.mrf.mxu0
        %v5104 = vadd.f32 %v5015, %v5103
        %v5105 = vpop.f32.mrf.mxu0
        %v5106 = vadd.f32 %v5017, %v5105
        %5107 = vmatmul.bf16.gmra.mxu0 %v4687
        %v5108 = vpop.f32.mrf.mxu0
        %v5109 = vadd.f32 %v5020, %v5108
        %v5110 = vpop.f32.mrf.mxu0
        %v5111 = vadd.f32 %v5022, %v5110
        %5112 = vmatmul.bf16.gmra.mxu0 %v4691
        %v5113 = vpop.f32.mrf.mxu0
        %v5114 = vadd.f32 %v5025, %v5113
        %v5115 = vpop.f32.mrf.mxu0
        %v5116 = vadd.f32 %v5027, %v5115
        %5117 = vmatmul.bf16.gmra.mxu0 %v4695
        %v5118 = vpop.f32.mrf.mxu0
        %v5119 = vadd.f32 %v5030, %v5118
        %v5120 = vpop.f32.mrf.mxu0
        %v5121 = vadd.f32 %v5032, %v5120
        %5122 = vmatmul.bf16.gmra.mxu0 %v4699
        %v5123 = vpop.f32.mrf.mxu0
        %v5124 = vadd.f32 %v5035, %v5123
        %v5125 = vpop.f32.mrf.mxu0
        %v5126 = vadd.f32 %v5037, %v5125
        %5127 = vmatmul.bf16.gmra.mxu0 %v4703
        %v5128 = vpop.f32.mrf.mxu0
        %v5129 = vadd.f32 %v5040, %v5128
        %v5130 = vpop.f32.mrf.mxu0
        %v5131 = vadd.f32 %v5042, %v5130
        %5132 = vmatmul.bf16.gmra.mxu0 %v4707
        %v5133 = vpop.f32.mrf.mxu0
        %v5134 = vadd.f32 %v5045, %v5133
        %v5135 = vpop.f32.mrf.mxu0
        %v5136 = vadd.f32 %v5047, %v5135
        %5137 = vmatmul.bf16.gmra.mxu0 %v4711
        %v5138 = vpop.f32.mrf.mxu0
        %v5139 = vadd.f32 %v5050, %v5138
        %v5140 = vpop.f32.mrf.mxu0
        %v5141 = vadd.f32 %v5052, %v5140
        %5142 = vmatmul.bf16.gmra.mxu0 %v4715
        %v5143 = vpop.f32.mrf.mxu0
        %v5144 = vadd.f32 %v5055, %v5143
        %v5145 = vpop.f32.mrf.mxu0
        %v5146 = vadd.f32 %v5057, %v5145
        %5147 = vmatmul.bf16.gmra.mxu0 %v4719
        %v5148 = vpop.f32.mrf.mxu0
        %v5149 = vadd.f32 %v5060, %v5148
        %v5150 = vpop.f32.mrf.mxu0
        %v5151 = vadd.f32 %v5062, %v5150
        %5152 = vmatmul.bf16.gmra.mxu0 %v4723
        %v5153 = vpop.f32.mrf.mxu0
        %v5154 = vadd.f32 %v5065, %v5153
        %v5155 = vpop.f32.mrf.mxu0
        %v5156 = vadd.f32 %v5067, %v5155
        %5157 = vmatmul.bf16.gmra.mxu0 %v4727
        %v5158 = vpop.f32.mrf.mxu0
        %v5159 = vadd.f32 %v5070, %v5158
        %v5160 = vpop.f32.mrf.mxu0
        %v5161 = vadd.f32 %v5072, %v5160
        %5162 = vmatmul.bf16.gmra.mxu0 %v4731
        %v5163 = vpop.f32.mrf.mxu0
        %v5164 = vadd.f32 %v5075, %v5163
        %v5165 = vpop.f32.mrf.mxu0
        %v5166 = vadd.f32 %v5077, %v5165
        %5167 = vdwg.mxu0
        %5168 = vmatpush.bf16.msra.mxu0 %v4949
        %5169 = vmatpush.bf16.msra.mxu0 %v4948
        %5170 = vmatpush.bf16.msra.mxu0 %v4947
        %5171 = vmatpush.bf16.msra.mxu0 %v4946
        %5172 = vmatpush.bf16.msra.mxu0 %v4945
        %5173 = vmatpush.bf16.msra.mxu0 %v4944
        %5174 = vmatpush.bf16.msra.mxu0 %v4943
        %5175 = vmatpush.bf16.msra.mxu0 %v4942
        %5176 = vmatmul.bf16.gmra.mxu0 %v4672
        %v5177 = vpop.f32.mrf.mxu0
        %v5178 = vadd.f32 %v5089, %v5177
        %v5179 = vpop.f32.mrf.mxu0
        %v5180 = vadd.f32 %v5091, %v5179
        %5181 = vmatmul.bf16.gmra.mxu0 %v4676
        %v5182 = vpop.f32.mrf.mxu0
        %v5183 = vadd.f32 %v5094, %v5182
        %v5184 = vpop.f32.mrf.mxu0
        %v5185 = vadd.f32 %v5096, %v5184
        %5186 = vmatmul.bf16.gmra.mxu0 %v4680
        %v5187 = vpop.f32.mrf.mxu0
        %v5188 = vadd.f32 %v5099, %v5187
        %v5189 = vpop.f32.mrf.mxu0
        %v5190 = vadd.f32 %v5101, %v5189
        %5191 = vmatmul.bf16.gmra.mxu0 %v4684
        %v5192 = vpop.f32.mrf.mxu0
        %v5193 = vadd.f32 %v5104, %v5192
        %v5194 = vpop.f32.mrf.mxu0
        %v5195 = vadd.f32 %v5106, %v5194
        %5196 = vmatmul.bf16.gmra.mxu0 %v4688
        %v5197 = vpop.f32.mrf.mxu0
        %v5198 = vadd.f32 %v5109, %v5197
        %v5199 = vpop.f32.mrf.mxu0
        %v5200 = vadd.f32 %v5111, %v5199
        %5201 = vmatmul.bf16.gmra.mxu0 %v4692
        %v5202 = vpop.f32.mrf.mxu0
        %v5203 = vadd.f32 %v5114, %v5202
        %v5204 = vpop.f32.mrf.mxu0
        %v5205 = vadd.f32 %v5116, %v5204
        %5206 = vmatmul.bf16.gmra.mxu0 %v4696
        %v5207 = vpop.f32.mrf.mxu0
        %v5208 = vadd.f32 %v5119, %v5207
        %v5209 = vpop.f32.mrf.mxu0
        %v5210 = vadd.f32 %v5121, %v5209
        %5211 = vmatmul.bf16.gmra.mxu0 %v4700
        %v5212 = vpop.f32.mrf.mxu0
        %v5213 = vadd.f32 %v5124, %v5212
        %v5214 = vpop.f32.mrf.mxu0
        %v5215 = vadd.f32 %v5126, %v5214
        %5216 = vmatmul.bf16.gmra.mxu0 %v4704
        %v5217 = vpop.f32.mrf.mxu0
        %v5218 = vadd.f32 %v5129, %v5217
        %v5219 = vpop.f32.mrf.mxu0
        %v5220 = vadd.f32 %v5131, %v5219
        %5221 = vmatmul.bf16.gmra.mxu0 %v4708
        %v5222 = vpop.f32.mrf.mxu0
        %v5223 = vadd.f32 %v5134, %v5222
        %v5224 = vpop.f32.mrf.mxu0
        %v5225 = vadd.f32 %v5136, %v5224
        %5226 = vmatmul.bf16.gmra.mxu0 %v4712
        %v5227 = vpop.f32.mrf.mxu0
        %v5228 = vadd.f32 %v5139, %v5227
        %v5229 = vpop.f32.mrf.mxu0
        %v5230 = vadd.f32 %v5141, %v5229
        %5231 = vmatmul.bf16.gmra.mxu0 %v4716
        %v5232 = vpop.f32.mrf.mxu0
        %v5233 = vadd.f32 %v5144, %v5232
        %v5234 = vpop.f32.mrf.mxu0
        %v5235 = vadd.f32 %v5146, %v5234
        %5236 = vmatmul.bf16.gmra.mxu0 %v4720
        %v5237 = vpop.f32.mrf.mxu0
        %v5238 = vadd.f32 %v5149, %v5237
        %v5239 = vpop.f32.mrf.mxu0
        %v5240 = vadd.f32 %v5151, %v5239
        %5241 = vmatmul.bf16.gmra.mxu0 %v4724
        %v5242 = vpop.f32.mrf.mxu0
        %v5243 = vadd.f32 %v5154, %v5242
        %v5244 = vpop.f32.mrf.mxu0
        %v5245 = vadd.f32 %v5156, %v5244
        %5246 = vmatmul.bf16.gmra.mxu0 %v4728
        %v5247 = vpop.f32.mrf.mxu0
        %v5248 = vadd.f32 %v5159, %v5247
        %v5249 = vpop.f32.mrf.mxu0
        %v5250 = vadd.f32 %v5161, %v5249
        %5251 = vmatmul.bf16.gmra.mxu0 %v4732
        %v5252 = vpop.f32.mrf.mxu0
        %v5253 = vadd.f32 %v5164, %v5252
        %v5254 = vpop.f32.mrf.mxu0
        %v5255 = vadd.f32 %v5166, %v5254
        %5256 = vdwg.mxu0
        %5257 = vmatpush.bf16.msra.mxu0 %v4957
        %5258 = vmatpush.bf16.msra.mxu0 %v4956
        %5259 = vmatpush.bf16.msra.mxu0 %v4955
        %5260 = vmatpush.bf16.msra.mxu0 %v4954
        %5261 = vmatpush.bf16.msra.mxu0 %v4953
        %5262 = vmatpush.bf16.msra.mxu0 %v4952
        %5263 = vmatpush.bf16.msra.mxu0 %v4951
        %5264 = vmatpush.bf16.msra.mxu0 %v4950
        %5265 = vmatmul.bf16.gmra.mxu0 %v4673
        %v5266 = vpop.f32.mrf.mxu0
        %v5267 = vadd.f32 %v5178, %v5266
        %v5268 = vpop.f32.mrf.mxu0
        %v5269 = vadd.f32 %v5180, %v5268
        %5270 = vmatmul.bf16.gmra.mxu0 %v4677
        %v5271 = vpop.f32.mrf.mxu0
        %v5272 = vadd.f32 %v5183, %v5271
        %v5273 = vpop.f32.mrf.mxu0
        %v5274 = vadd.f32 %v5185, %v5273
        %5275 = vmatmul.bf16.gmra.mxu0 %v4681
        %v5276 = vpop.f32.mrf.mxu0
        %v5277 = vadd.f32 %v5188, %v5276
        %v5278 = vpop.f32.mrf.mxu0
        %v5279 = vadd.f32 %v5190, %v5278
        %5280 = vmatmul.bf16.gmra.mxu0 %v4685
        %v5281 = vpop.f32.mrf.mxu0
        %v5282 = vadd.f32 %v5193, %v5281
        %v5283 = vpop.f32.mrf.mxu0
        %v5284 = vadd.f32 %v5195, %v5283
        %5285 = vmatmul.bf16.gmra.mxu0 %v4689
        %v5286 = vpop.f32.mrf.mxu0
        %v5287 = vadd.f32 %v5198, %v5286
        %v5288 = vpop.f32.mrf.mxu0
        %v5289 = vadd.f32 %v5200, %v5288
        %5290 = vmatmul.bf16.gmra.mxu0 %v4693
        %v5291 = vpop.f32.mrf.mxu0
        %v5292 = vadd.f32 %v5203, %v5291
        %v5293 = vpop.f32.mrf.mxu0
        %v5294 = vadd.f32 %v5205, %v5293
        %5295 = vmatmul.bf16.gmra.mxu0 %v4697
        %v5296 = vpop.f32.mrf.mxu0
        %v5297 = vadd.f32 %v5208, %v5296
        %v5298 = vpop.f32.mrf.mxu0
        %v5299 = vadd.f32 %v5210, %v5298
        %5300 = vmatmul.bf16.gmra.mxu0 %v4701
        %v5301 = vpop.f32.mrf.mxu0
        %v5302 = vadd.f32 %v5213, %v5301
        %v5303 = vpop.f32.mrf.mxu0
        %v5304 = vadd.f32 %v5215, %v5303
        %5305 = vmatmul.bf16.gmra.mxu0 %v4705
        %v5306 = vpop.f32.mrf.mxu0
        %v5307 = vadd.f32 %v5218, %v5306
        %v5308 = vpop.f32.mrf.mxu0
        %v5309 = vadd.f32 %v5220, %v5308
        %5310 = vmatmul.bf16.gmra.mxu0 %v4709
        %v5311 = vpop.f32.mrf.mxu0
        %v5312 = vadd.f32 %v5223, %v5311
        %v5313 = vpop.f32.mrf.mxu0
        %v5314 = vadd.f32 %v5225, %v5313
        %5315 = vmatmul.bf16.gmra.mxu0 %v4713
        %v5316 = vpop.f32.mrf.mxu0
        %v5317 = vadd.f32 %v5228, %v5316
        %v5318 = vpop.f32.mrf.mxu0
        %v5319 = vadd.f32 %v5230, %v5318
        %5320 = vmatmul.bf16.gmra.mxu0 %v4717
        %v5321 = vpop.f32.mrf.mxu0
        %v5322 = vadd.f32 %v5233, %v5321
        %v5323 = vpop.f32.mrf.mxu0
        %v5324 = vadd.f32 %v5235, %v5323
        %5325 = vmatmul.bf16.gmra.mxu0 %v4721
        %v5326 = vpop.f32.mrf.mxu0
        %v5327 = vadd.f32 %v5238, %v5326
        %v5328 = vpop.f32.mrf.mxu0
        %v5329 = vadd.f32 %v5240, %v5328
        %5330 = vmatmul.bf16.gmra.mxu0 %v4725
        %v5331 = vpop.f32.mrf.mxu0
        %v5332 = vadd.f32 %v5243, %v5331
        %v5333 = vpop.f32.mrf.mxu0
        %v5334 = vadd.f32 %v5245, %v5333
        %5335 = vmatmul.bf16.gmra.mxu0 %v4729
        %v5336 = vpop.f32.mrf.mxu0
        %v5337 = vadd.f32 %v5248, %v5336
        %v5338 = vpop.f32.mrf.mxu0
        %v5339 = vadd.f32 %v5250, %v5338
        %5340 = vmatmul.bf16.gmra.mxu0 %v4733
        %v5341 = vpop.f32.mrf.mxu0
        %v5342 = vadd.f32 %v5253, %v5341
        %v5343 = vpop.f32.mrf.mxu0
        %v5344 = vadd.f32 %v5255, %v5343
        %5345 = vdwg.mxu0
        %5346 = vst [vmem:[%s305] sm:$0xff] %v5267
        %5347 = vst [vmem:[%s305 + $0x8] sm:$0xff] %v5269
        %5348 = vst [vmem:[%s305 + $0x10] sm:$0xff] %v5272
        %5349 = vst [vmem:[%s305 + $0x18] sm:$0xff] %v5274
        %5350 = vst [vmem:[%s305 + $0x20] sm:$0xff] %v5277
        %5351 = vst [vmem:[%s305 + $0x28] sm:$0xff] %v5279
        %5352 = vst [vmem:[%s305 + $0x30] sm:$0xff] %v5282
        %5353 = vst [vmem:[%s305 + $0x38] sm:$0xff] %v5284
        %5354 = vst [vmem:[%s305 + $0x40] sm:$0xff] %v5287
        %5355 = vst [vmem:[%s305 + $0x48] sm:$0xff] %v5289
        %5356 = vst [vmem:[%s305 + $0x50] sm:$0xff] %v5292
        %5357 = vst [vmem:[%s305 + $0x58] sm:$0xff] %v5294
        %5358 = vst [vmem:[%s305 + $0x60] sm:$0xff] %v5297
        %5359 = vst [vmem:[%s305 + $0x68] sm:$0xff] %v5299
        %5360 = vst [vmem:[%s305 + $0x70] sm:$0xff] %v5302
        %5361 = vst [vmem:[%s305 + $0x78] sm:$0xff] %v5304
        %5362 = vst [vmem:[%s305 + $0x80] sm:$0xff] %v5307
        %5363 = vst [vmem:[%s305 + $0x88] sm:$0xff] %v5309
        %5364 = vst [vmem:[%s305 + $0x90] sm:$0xff] %v5312
        %5365 = vst [vmem:[%s305 + $0x98] sm:$0xff] %v5314
        %5366 = vst [vmem:[%s305 + $0xa0] sm:$0xff] %v5317
        %5367 = vst [vmem:[%s305 + $0xa8] sm:$0xff] %v5319
        %5368 = vst [vmem:[%s305 + $0xb0] sm:$0xff] %v5322
        %5369 = vst [vmem:[%s305 + $0xb8] sm:$0xff] %v5324
        %5370 = vst [vmem:[%s305 + $0xc0] sm:$0xff] %v5327
        %5371 = vst [vmem:[%s305 + $0xc8] sm:$0xff] %v5329
        %5372 = vst [vmem:[%s305 + $0xd0] sm:$0xff] %v5332
        %5373 = vst [vmem:[%s305 + $0xd8] sm:$0xff] %v5334
        %5374 = vst [vmem:[%s305 + $0xe0] sm:$0xff] %v5337
        %5375 = vst [vmem:[%s305 + $0xe8] sm:$0xff] %v5339
        %5376 = vst [vmem:[%s305 + $0xf0] sm:$0xff] %v5342
        %5377 = vst [vmem:[%s305 + $0xf8] sm:$0xff] %v5344
        %s5378 = sand.u32 %s167, 1
        %s5379 = scalar_lea.sflag [#allocation4], %s5378
        %s5380 = sand.u32 %s167, 1
        %s5381 = smul.addr %s5380, 256
        %s5382 = scalar_lea.vmem [#allocation7], %s5381
        // Predicated region
        $region49: #{_lambda_.1} parent=39 // pred_check
          %p5383 = pneg %p177
        $region50: #{_lambda_.1} parent=39 // pred_check_branch
          %5385 = sbr.rel (%p5383) target = $region52
        $region51: #{_lambda_.1} parent=39 // pred_region
          %s5386 = smul.u32 32, %s28
          %5388 = vsyncadd %s5379, 0
          %s5389 = smul.addr %s27, 32
          %s5390 = sadd.s32 %s5386, %s5389
          %s5391 = smul.addr %s5390, 8
          %s5392 = scalar_lea.hbm %s5, %s5391
          %s5393 = sshll.u32 %s5382, 4
          %s5394 = int_to_ptr.vmem [resolvable:$true] %s5393
          %s5395 = sshll.u32 %s5392, 4
          %s5396 = int_to_ptr.hbm [resolvable:$true] %s5395
          %5401 = dma.vmem_to_hbm [thread:$0]  %s5394, 4096, %s5396, %s5379, 128, 128, 8
        $region52: #{_lambda_.1} parent=39 // pred_fallthru
          _
      $region40: #{_lambda_.1} parent=5 // pred_fallthru
        _
      %p5402 = scmp.le.s32.totalorder 2, %s18
      // Predicated region
      $region53: #{_lambda_.1} parent=5 // pred_check
        %p5403 = pneg %p5402
      $region54: #{_lambda_.1} parent=5 // pred_check_branch
        %5405 = sbr.rel (%p5403) target = $region56
      $region55: #{_lambda_.1} parent=5 // pred_region
        %s5406 = ssub.s32 %s18, 2
        // Predicated region
        $region57: #{_lambda_.1} parent=55 // pred_check
          %p5407 = pneg %p183
        $region58: #{_lambda_.1} parent=55 // pred_check_branch
          %5409 = sbr.rel (%p5407) target = $region60
        $region59: #{_lambda_.1} parent=55 // pred_region
          %s5410 = sand.u32 %s168, 1
          %s5411 = scalar_lea.sflag [#allocation4], %s5410
          %s5412 = sand.u32 %s168, 1
          %s5413 = smul.addr %s5412, 256
          %s5414 = scalar_lea.vmem [#allocation7], %s5413
          %5416 = dma.done %s5411, 4096
        $region60: #{_lambda_.1} parent=55 // pred_fallthru
          _
      $region56: #{_lambda_.1} parent=5 // pred_fallthru
        _
    $region6: #{_lambda_.1} parent=1 // loop_footer
      %s22 = sadd.s32 1, %s18
    $region7: #{_lambda_.1} parent=1 // loop_footer_branch
      %17 = sbr.rel target = $region3
    $region8: #{_lambda_.1} parent=1 // loop_exit
      _
    %5417 = vsyncpa [#allocation3], 1
    %s5418 = scalar_lea.sflag [#allocation3], 1
    %5419 = vsyncpa %s5418, 1
    %5420 = vsyncpa [#allocation6], 1
    %5421 = vsyncpa [#allocation4], 1
    %s5422 = scalar_lea.sflag [#allocation4], 1
    %5423 = vsyncpa %s5422, 1

</llo_original>
